<compile_context>
chip_gen: v7x
topology: tpu7x:2x2x1
jax: 0.10.0
libtpu: 0.0.40
codegen_flags: <defaults>
</compile_context>

<pallas_src>
import numpy as np
import jax
import jax.numpy as jnp
from jax.experimental import pallas as pl
from jax.experimental.pallas import tpu as pltpu

# ----- synthetic chain configuration (stand-in for the URDF; deterministic) -----
N_JOINTS = 8                  # qpos width D == N_JOINTS (global_transform=False -> start=0)
N_LINKS = 2 + N_JOINTS        # 'base_link', 'palm', then one link per chain joint
BLOCK_B = 128                 # lane-dense batch tile
SMALL_ANGLE = 1e-6            # float32-safe small-angle threshold


# ---------------- trace-time symbolic scalars ----------------
# A value is: None (exact zero) | python float (constant) | traced (1,B) array.
def _mul(a, b):
    if a is None or b is None:
        return None
    ac = isinstance(a, (int, float))
    bc = isinstance(b, (int, float))
    if ac and bc:
        v = float(a) * float(b)
        return v if v != 0.0 else None
    if ac:
        const, arr = float(a), b
    elif bc:
        const, arr = float(b), a
    else:
        return a * b
    if const == 0.0:
        return None
    if const == 1.0:
        return arr
    if const == -1.0:
        return -arr
    return const * arr


def _add(a, b):
    if a is None:
        return b
    if b is None:
        return a
    if isinstance(a, (int, float)) and isinstance(b, (int, float)):
        v = float(a) + float(b)
        return v if v != 0.0 else None
    return a + b


def _compose(Ta, Tb):
    """Affine 3x4 compose: [Ra ta; 0 1] @ [Rb tb; 0 1] (never touches the bottom row)."""
    Ra, ta = Ta
    Rb, tb = Tb
    R = []
    for i in range(3):
        for j in range(3):
            acc = None
            for k in range(3):
                acc = _add(acc, _mul(Ra[3 * i + k], Rb[3 * k + j]))
            R.append(acc)
    t = []
    for i in range(3):
        acc = ta[i]
        for k in range(3):
            acc = _add(acc, _mul(Ra[3 * i + k], tb[k]))
        t.append(acc)
    return (R, t)


def _rodrigues_static(axis, s, c):
    """Rodrigues matrix for a compile-time-constant unit axis; s, c are (1,B) traced.

    Returns 9 row-major entries using the symbolic representation so that
    zero / one coefficients fold away at trace time (e.g. axis-aligned joints).
    """
    kx, ky, kz = float(axis[0]), float(axis[1]), float(axis[2])
    one_c = 1.0 - c                       # traced; DCE'd if unused

    def diag(a):
        aa = a * a
        if aa == 0.0:
            return c
        if aa == 1.0:
            return 1.0
        return _add(c, _mul(aa, one_c))

    def off(a, b, sk):
        return _add(_mul(a * b, one_c), _mul(sk, s))

    return [
        diag(kx), off(kx, ky, -kz), off(kx, kz, ky),
        off(ky, kx, kz), diag(ky), off(ky, kz, -kx),
        off(kz, kx, -ky), off(kz, ky, kx), diag(kz),
    ]


def _rodrigues_traced(ux, uy, uz, s, c):
    """Generic Rodrigues for a traced (data-dependent) unit axis."""
    one_c = 1.0 - c
    return [
        c + ux * ux * one_c, ux * uy * one_c - uz * s, ux * uz * one_c + uy * s,
        uy * ux * one_c + uz * s, c + uy * uy * one_c, uy * uz * one_c - ux * s,
        uz * ux * one_c - uy * s, uz * uy * one_c + ux * s, c + uz * uz * one_c,
    ]


# ---------------- Pallas kernel ----------------
def make_fk_kernel(axes_np, origins_np):
    axes_np = np.asarray(axes_np, np.float32)
    origins_np = np.asarray(origins_np, np.float32)

    def fk_kernel(qpos_ref, out_ref):
        # qpos_ref : (D, BLOCK_B) f32 VMEM  -- joint values, batch in lanes
        # out_ref  : (N_LINKS*12, BLOCK_B) f32 VMEM -- top 3x4 rows of each world transform
        q = qpos_ref[...]                       # (D, B)
        B = q.shape[1]

        # One EUP push each for ALL joint sines / cosines.
        S = jnp.sin(q)
        C = jnp.cos(q)

        def row(a, j):
            return a[j:j + 1, :]                # (1, B)

        # ---- global transform: pos = qpos[:, 0:3], axis-angle = qpos[:, 3:6] ----
        px, py, pz = row(q, 0), row(q, 1), row(q, 2)
        ax, ay, az = row(q, 3), row(q, 4), row(q, 5)
        theta = jnp.sqrt(ax * ax + ay * ay + az * az)
        small = theta < SMALL_ANGLE
        inv = 1.0 / jnp.where(small, 1.0, theta)       # single divide, three multiplies
        ux, uy, uz = ax * inv, ay * inv, az * inv
        st = jnp.sin(theta)
        ct = jnp.cos(theta)
        Rg = _rodrigues_traced(ux, uy, uz, st, ct)
        ident = (1.0, 0.0, 0.0, 0.0, 1.0, 0.0, 0.0, 0.0, 1.0)
        Rg = [jnp.where(small, i9, r) for i9, r in zip(ident, Rg)]   # theta -> 0 : identity
        G = (Rg, [px, py, pz])

        # ---- per-joint local transforms (static axes/origins -> constant folded) ----
        A = []
        for j in range(N_JOINTS):
            Rj = _rodrigues_static(axes_np[j], row(S, j), row(C, j))
            tj = [float(origins_np[j, k]) for k in range(3)]
            tj = [None if v == 0.0 else v for v in tj]
            A.append((Rj, tj))

        # ---- Hillis-Steele parallel prefix: P[j] = A_0 @ ... @ A_j in ceil(log2(J)) levels ----
        P = list(A)
        d = 1
        while d < N_JOINTS:
            P = [P[i] if i < d else _compose(P[i - d], P[i]) for i in range(N_JOINTS)]
            d *= 2

        # ---- world transforms: identity links take G directly; others W = G @ P[j] ----
        world = [G, G] + [_compose(G, P[j]) for j in range(N_JOINTS)]

        # ---- pack 3x4 top rows of all links, single lane-dense store ----
        rows = []
        for (R, t) in world:
            vals = [R[0], R[1], R[2], t[0],
                    R[3], R[4], R[5], t[1],
                    R[6], R[7], R[8], t[2]]
            for v in vals:
                if v is None:
                    v = jnp.zeros((1, B), jnp.float32)
                elif isinstance(v, (int, float)):
                    v = jnp.full((1, B), float(v), jnp.float32)
                rows.append(v)
        out_ref[...] = jnp.concatenate(rows, axis=0)    # (N_LINKS*12, B)

    return fk_kernel


def make_kinematics_layer(axes_np, origins_np):
    """Returns forward(qpos) -> (B, N_LINKS, 4, 4) composed world transforms."""
    kernel = make_fk_kernel(axes_np, origins_np)

    @jax.jit
    def forward(qpos):
        qpos = qpos.astype(jnp.float32)
        B, D = qpos.shape
        n_tiles = pl.cdiv(B, BLOCK_B)
        B_pad = n_tiles * BLOCK_B
        qpos_t = jnp.pad(qpos.T, ((0, 0), (0, B_pad - B)))      # (D, B_pad): batch -> lanes

        out = pl.pallas_call(
            kernel,
            out_shape=jax.ShapeDtypeStruct((N_LINKS * 12, B_pad), jnp.float32),
            grid=(n_tiles,),
            in_specs=[pl.BlockSpec((D, BLOCK_B), lambda b: (0, b))],
            out_specs=pl.BlockSpec((N_LINKS * 12, BLOCK_B), lambda b: (0, b)),
            compiler_params=pltpu.CompilerParams(
                dimension_semantics=("parallel",)),
        )(qpos_t)

        top = out[:, :B].T.reshape(B, N_LINKS, 3, 4)            # (B, L, 3, 4)
        bottom = jnp.broadcast_to(
            jnp.array([0.0, 0.0, 0.0, 1.0], jnp.float32), (B, N_LINKS, 1, 4))
        return jnp.concatenate([top, bottom], axis=2)           # (B, L, 4, 4)

    return forward


# ------------------------- pure-JAX reference -------------------------
def _rodrigues_ref(u, theta):
    K = jnp.array([[0.0, -u[2], u[1]],
                   [u[2], 0.0, -u[0]],
                   [-u[1], u[0], 0.0]], jnp.float32)
    return jnp.eye(3, dtype=jnp.float32) + jnp.sin(theta) * K + (1.0 - jnp.cos(theta)) * (K @ K)


def _ref_single(q, axes, origins):
    theta = jnp.linalg.norm(q[3:6])
    u = q[3:6] / jnp.where(theta < SMALL_ANGLE, 1.0, theta)
    R = jnp.where(theta < SMALL_ANGLE, jnp.eye(3, dtype=jnp.float32), _rodrigues_ref(u, theta))
    G = jnp.eye(4, dtype=jnp.float32).at[:3, :3].set(R).at[:3, 3].set(q[0:3])
    links = [jnp.eye(4, dtype=jnp.float32), jnp.eye(4, dtype=jnp.float32)]
    T = jnp.eye(4, dtype=jnp.float32)
    for j in range(N_JOINTS):
        Rj = _rodrigues_ref(axes[j], q[j])
        Aj = jnp.eye(4, dtype=jnp.float32).at[:3, :3].set(Rj).at[:3, 3].set(origins[j])
        T = T @ Aj
        links.append(T)
    return jnp.stack([G @ Tl for Tl in links], axis=0)          # (L, 4, 4)


if __name__ == "__main__":
    # deterministic chain parameters (stand-in for the URDF joint axes / origins);
    # mix of axis-aligned and general unit axes to exercise both folded & generic paths.
    axes_np = np.array([
        [1.0, 0.0, 0.0],
        [0.0, 1.0, 0.0],
        [0.0, 0.0, 1.0],
        [1.0, 0.0, 0.0],
        [0.0, 1.0, 1.0],
        [1.0, 0.0, -1.0],
        [1.0, 1.0, 1.0],
        [0.0, 1.0, 0.0],
    ], np.float32)
    axes_np = axes_np / np.linalg.norm(axes_np, axis=1, keepdims=True)
    orig_np = np.stack(
        [np.array([0.01 * (j + 1), 0.02 * (j + 1), 0.03 * (j + 1)], np.float32)
         for j in range(N_JOINTS)])
    orig_np[1] = 0.0      # exercise the exact-zero translation folding path

    forward = make_kinematics_layer(axes_np, orig_np)
    axes = jnp.asarray(axes_np)
    origins = jnp.asarray(orig_np)
    ref_fn = jax.vmap(_ref_single, in_axes=(0, None, None))

    key = jax.random.PRNGKey(0)
    for batch in (8, 200):                      # 200 -> padded to 256, 2 grid steps
        key, sub = jax.random.split(key)
        qpos = jax.random.normal(sub, (batch, N_JOINTS), jnp.float32)
        out = jax.block_until_ready(forward(qpos))
        ref = ref_fn(qpos, axes, origins)
        assert out.shape == (batch, N_LINKS, 4, 4)
        np.testing.assert_allclose(np.asarray(out), np.asarray(ref), rtol=1e-5, atol=1e-5)

    # TODO(synk): the original forward() is truncated (no return / end_links selection);
    # we return the composed world transforms of ALL links ('base_link', 'palm', chain links).
    print("KERNEL_OK")
</pallas_src>

<mosaic_0001>
module attributes {stable_mosaic.version = 11 : i64} {
  func.func @fk_kernel(%arg0: i32, %arg1: memref<8x128xf32, #tpu.memory_space<vmem>>, %arg2: memref<120x128xf32, #tpu.memory_space<vmem>>) attributes {dimension_semantics = [#tpu.dimension_semantics<parallel>], iteration_bounds = array<i64: 1>, scalar_prefetch = 0 : i64, scratch_operands = 0 : i64, tpu.core_type = #tpu.core_type<tc>, window_params = [{transform_indices = @transform_0, window_bounds = array<i64: 8, 128>}, {transform_indices = @transform_1, window_bounds = array<i64: 120, 128>}]} {
    %c0 = arith.constant 0 : index
    %c0_0 = arith.constant 0 : index
    %0 = vector.load %arg1[%c0, %c0_0] : memref<8x128xf32, #tpu.memory_space<vmem>>, vector<8x128xf32>
    %1 = math.sin %0 : vector<8x128xf32>
    %2 = math.cos %0 : vector<8x128xf32>
    %3 = vector.extract_strided_slice %0 {offsets = [0, 0], sizes = [1, 128], strides = [1, 1]} : vector<8x128xf32> to vector<1x128xf32>
    %4 = vector.extract_strided_slice %0 {offsets = [1, 0], sizes = [1, 128], strides = [1, 1]} : vector<8x128xf32> to vector<1x128xf32>
    %5 = vector.extract_strided_slice %0 {offsets = [2, 0], sizes = [1, 128], strides = [1, 1]} : vector<8x128xf32> to vector<1x128xf32>
    %6 = vector.extract_strided_slice %0 {offsets = [3, 0], sizes = [1, 128], strides = [1, 1]} : vector<8x128xf32> to vector<1x128xf32>
    %7 = vector.extract_strided_slice %0 {offsets = [4, 0], sizes = [1, 128], strides = [1, 1]} : vector<8x128xf32> to vector<1x128xf32>
    %8 = vector.extract_strided_slice %0 {offsets = [5, 0], sizes = [1, 128], strides = [1, 1]} : vector<8x128xf32> to vector<1x128xf32>
    %9 = arith.mulf %6, %6 : vector<1x128xf32>
    %10 = arith.mulf %7, %7 : vector<1x128xf32>
    %11 = arith.addf %9, %10 : vector<1x128xf32>
    %12 = arith.mulf %8, %8 : vector<1x128xf32>
    %13 = arith.addf %11, %12 : vector<1x128xf32>
    %14 = math.sqrt %13 : vector<1x128xf32>
    %cst = arith.constant 9.99999997E-7 : f32
    %15 = vector.broadcast %cst : f32 to vector<1x128xf32>
    %16 = arith.cmpf olt, %14, %15 : vector<1x128xf32>
    %cst_1 = arith.constant 1.000000e+00 : f32
    %17 = vector.broadcast %cst_1 : f32 to vector<1x128xf32>
    %18 = arith.select %16, %17, %14 : vector<1x128xi1>, vector<1x128xf32>
    %cst_2 = arith.constant 1.000000e+00 : f32
    %19 = vector.broadcast %cst_2 : f32 to vector<1x128xf32>
    %20 = arith.divf %19, %18 : vector<1x128xf32>
    %21 = arith.mulf %6, %20 : vector<1x128xf32>
    %22 = arith.mulf %7, %20 : vector<1x128xf32>
    %23 = arith.mulf %8, %20 : vector<1x128xf32>
    %24 = math.sin %14 : vector<1x128xf32>
    %25 = math.cos %14 : vector<1x128xf32>
    %cst_3 = arith.constant 1.000000e+00 : f32
    %26 = vector.broadcast %cst_3 : f32 to vector<1x128xf32>
    %27 = arith.subf %26, %25 : vector<1x128xf32>
    %28 = arith.mulf %21, %21 : vector<1x128xf32>
    %29 = arith.mulf %28, %27 : vector<1x128xf32>
    %30 = arith.addf %25, %29 : vector<1x128xf32>
    %31 = arith.mulf %21, %22 : vector<1x128xf32>
    %32 = arith.mulf %31, %27 : vector<1x128xf32>
    %33 = arith.mulf %23, %24 : vector<1x128xf32>
    %34 = arith.subf %32, %33 : vector<1x128xf32>
    %35 = arith.mulf %21, %23 : vector<1x128xf32>
    %36 = arith.mulf %35, %27 : vector<1x128xf32>
    %37 = arith.mulf %22, %24 : vector<1x128xf32>
    %38 = arith.addf %36, %37 : vector<1x128xf32>
    %39 = arith.mulf %22, %21 : vector<1x128xf32>
    %40 = arith.mulf %39, %27 : vector<1x128xf32>
    %41 = arith.mulf %23, %24 : vector<1x128xf32>
    %42 = arith.addf %40, %41 : vector<1x128xf32>
    %43 = arith.mulf %22, %22 : vector<1x128xf32>
    %44 = arith.mulf %43, %27 : vector<1x128xf32>
    %45 = arith.addf %25, %44 : vector<1x128xf32>
    %46 = arith.mulf %22, %23 : vector<1x128xf32>
    %47 = arith.mulf %46, %27 : vector<1x128xf32>
    %48 = arith.mulf %21, %24 : vector<1x128xf32>
    %49 = arith.subf %47, %48 : vector<1x128xf32>
    %50 = arith.mulf %23, %21 : vector<1x128xf32>
    %51 = arith.mulf %50, %27 : vector<1x128xf32>
    %52 = arith.mulf %22, %24 : vector<1x128xf32>
    %53 = arith.subf %51, %52 : vector<1x128xf32>
    %54 = arith.mulf %23, %22 : vector<1x128xf32>
    %55 = arith.mulf %54, %27 : vector<1x128xf32>
    %56 = arith.mulf %21, %24 : vector<1x128xf32>
    %57 = arith.addf %55, %56 : vector<1x128xf32>
    %58 = arith.mulf %23, %23 : vector<1x128xf32>
    %59 = arith.mulf %58, %27 : vector<1x128xf32>
    %60 = arith.addf %25, %59 : vector<1x128xf32>
    %cst_4 = arith.constant 1.000000e+00 : f32
    %61 = vector.broadcast %cst_4 : f32 to vector<1x128xf32>
    %62 = arith.select %16, %61, %30 : vector<1x128xi1>, vector<1x128xf32>
    %cst_5 = arith.constant 0.000000e+00 : f32
    %63 = vector.broadcast %cst_5 : f32 to vector<1x128xf32>
    %64 = arith.select %16, %63, %34 : vector<1x128xi1>, vector<1x128xf32>
    %cst_6 = arith.constant 0.000000e+00 : f32
    %65 = vector.broadcast %cst_6 : f32 to vector<1x128xf32>
    %66 = arith.select %16, %65, %38 : vector<1x128xi1>, vector<1x128xf32>
    %cst_7 = arith.constant 0.000000e+00 : f32
    %67 = vector.broadcast %cst_7 : f32 to vector<1x128xf32>
    %68 = arith.select %16, %67, %42 : vector<1x128xi1>, vector<1x128xf32>
    %cst_8 = arith.constant 1.000000e+00 : f32
    %69 = vector.broadcast %cst_8 : f32 to vector<1x128xf32>
    %70 = arith.select %16, %69, %45 : vector<1x128xi1>, vector<1x128xf32>
    %cst_9 = arith.constant 0.000000e+00 : f32
    %71 = vector.broadcast %cst_9 : f32 to vector<1x128xf32>
    %72 = arith.select %16, %71, %49 : vector<1x128xi1>, vector<1x128xf32>
    %cst_10 = arith.constant 0.000000e+00 : f32
    %73 = vector.broadcast %cst_10 : f32 to vector<1x128xf32>
    %74 = arith.select %16, %73, %53 : vector<1x128xi1>, vector<1x128xf32>
    %cst_11 = arith.constant 0.000000e+00 : f32
    %75 = vector.broadcast %cst_11 : f32 to vector<1x128xf32>
    %76 = arith.select %16, %75, %57 : vector<1x128xi1>, vector<1x128xf32>
    %cst_12 = arith.constant 1.000000e+00 : f32
    %77 = vector.broadcast %cst_12 : f32 to vector<1x128xf32>
    %78 = arith.select %16, %77, %60 : vector<1x128xi1>, vector<1x128xf32>
    %79 = vector.extract_strided_slice %1 {offsets = [0, 0], sizes = [1, 128], strides = [1, 1]} : vector<8x128xf32> to vector<1x128xf32>
    %80 = vector.extract_strided_slice %2 {offsets = [0, 0], sizes = [1, 128], strides = [1, 1]} : vector<8x128xf32> to vector<1x128xf32>
    %cst_13 = arith.constant 0.000000e+00 : f32
    %81 = vector.broadcast %cst_13 : f32 to vector<1x128xf32>
    %82 = arith.subf %81, %79 : vector<1x128xf32>
    %83 = vector.extract_strided_slice %1 {offsets = [1, 0], sizes = [1, 128], strides = [1, 1]} : vector<8x128xf32> to vector<1x128xf32>
    %84 = vector.extract_strided_slice %2 {offsets = [1, 0], sizes = [1, 128], strides = [1, 1]} : vector<8x128xf32> to vector<1x128xf32>
    %cst_14 = arith.constant 0.000000e+00 : f32
    %85 = vector.broadcast %cst_14 : f32 to vector<1x128xf32>
    %86 = arith.subf %85, %83 : vector<1x128xf32>
    %87 = vector.extract_strided_slice %1 {offsets = [2, 0], sizes = [1, 128], strides = [1, 1]} : vector<8x128xf32> to vector<1x128xf32>
    %88 = vector.extract_strided_slice %2 {offsets = [2, 0], sizes = [1, 128], strides = [1, 1]} : vector<8x128xf32> to vector<1x128xf32>
    %cst_15 = arith.constant 0.000000e+00 : f32
    %89 = vector.broadcast %cst_15 : f32 to vector<1x128xf32>
    %90 = arith.subf %89, %87 : vector<1x128xf32>
    %91 = vector.extract_strided_slice %1 {offsets = [3, 0], sizes = [1, 128], strides = [1, 1]} : vector<8x128xf32> to vector<1x128xf32>
    %92 = vector.extract_strided_slice %2 {offsets = [3, 0], sizes = [1, 128], strides = [1, 1]} : vector<8x128xf32> to vector<1x128xf32>
    %cst_16 = arith.constant 0.000000e+00 : f32
    %93 = vector.broadcast %cst_16 : f32 to vector<1x128xf32>
    %94 = arith.subf %93, %91 : vector<1x128xf32>
    %95 = vector.extract_strided_slice %1 {offsets = [4, 0], sizes = [1, 128], strides = [1, 1]} : vector<8x128xf32> to vector<1x128xf32>
    %96 = vector.extract_strided_slice %2 {offsets = [4, 0], sizes = [1, 128], strides = [1, 1]} : vector<8x128xf32> to vector<1x128xf32>
    %cst_17 = arith.constant 1.000000e+00 : f32
    %97 = vector.broadcast %cst_17 : f32 to vector<1x128xf32>
    %98 = arith.subf %97, %96 : vector<1x128xf32>
    %cst_18 = arith.constant -0.707106769 : f32
    %99 = vector.broadcast %cst_18 : f32 to vector<1x128xf32>
    %100 = arith.mulf %99, %95 : vector<1x128xf32>
    %cst_19 = arith.constant 0.707106769 : f32
    %101 = vector.broadcast %cst_19 : f32 to vector<1x128xf32>
    %102 = arith.mulf %101, %95 : vector<1x128xf32>
    %cst_20 = arith.constant 0.707106769 : f32
    %103 = vector.broadcast %cst_20 : f32 to vector<1x128xf32>
    %104 = arith.mulf %103, %95 : vector<1x128xf32>
    %cst_21 = arith.constant 0.49999997 : f32
    %105 = vector.broadcast %cst_21 : f32 to vector<1x128xf32>
    %106 = arith.mulf %105, %98 : vector<1x128xf32>
    %107 = arith.addf %96, %106 : vector<1x128xf32>
    %cst_22 = arith.constant 0.49999997 : f32
    %108 = vector.broadcast %cst_22 : f32 to vector<1x128xf32>
    %109 = arith.mulf %108, %98 : vector<1x128xf32>
    %cst_23 = arith.constant -0.707106769 : f32
    %110 = vector.broadcast %cst_23 : f32 to vector<1x128xf32>
    %111 = arith.mulf %110, %95 : vector<1x128xf32>
    %cst_24 = arith.constant 0.49999997 : f32
    %112 = vector.broadcast %cst_24 : f32 to vector<1x128xf32>
    %113 = arith.mulf %112, %98 : vector<1x128xf32>
    %cst_25 = arith.constant 0.49999997 : f32
    %114 = vector.broadcast %cst_25 : f32 to vector<1x128xf32>
    %115 = arith.mulf %114, %98 : vector<1x128xf32>
    %116 = arith.addf %96, %115 : vector<1x128xf32>
    %117 = vector.extract_strided_slice %1 {offsets = [5, 0], sizes = [1, 128], strides = [1, 1]} : vector<8x128xf32> to vector<1x128xf32>
    %118 = vector.extract_strided_slice %2 {offsets = [5, 0], sizes = [1, 128], strides = [1, 1]} : vector<8x128xf32> to vector<1x128xf32>
    %cst_26 = arith.constant 1.000000e+00 : f32
    %119 = vector.broadcast %cst_26 : f32 to vector<1x128xf32>
    %120 = arith.subf %119, %118 : vector<1x128xf32>
    %cst_27 = arith.constant 0.49999997 : f32
    %121 = vector.broadcast %cst_27 : f32 to vector<1x128xf32>
    %122 = arith.mulf %121, %120 : vector<1x128xf32>
    %123 = arith.addf %118, %122 : vector<1x128xf32>
    %cst_28 = arith.constant 0.707106769 : f32
    %124 = vector.broadcast %cst_28 : f32 to vector<1x128xf32>
    %125 = arith.mulf %124, %117 : vector<1x128xf32>
    %cst_29 = arith.constant -0.49999997 : f32
    %126 = vector.broadcast %cst_29 : f32 to vector<1x128xf32>
    %127 = arith.mulf %126, %120 : vector<1x128xf32>
    %cst_30 = arith.constant -0.707106769 : f32
    %128 = vector.broadcast %cst_30 : f32 to vector<1x128xf32>
    %129 = arith.mulf %128, %117 : vector<1x128xf32>
    %cst_31 = arith.constant -0.707106769 : f32
    %130 = vector.broadcast %cst_31 : f32 to vector<1x128xf32>
    %131 = arith.mulf %130, %117 : vector<1x128xf32>
    %cst_32 = arith.constant -0.49999997 : f32
    %132 = vector.broadcast %cst_32 : f32 to vector<1x128xf32>
    %133 = arith.mulf %132, %120 : vector<1x128xf32>
    %cst_33 = arith.constant 0.707106769 : f32
    %134 = vector.broadcast %cst_33 : f32 to vector<1x128xf32>
    %135 = arith.mulf %134, %117 : vector<1x128xf32>
    %cst_34 = arith.constant 0.49999997 : f32
    %136 = vector.broadcast %cst_34 : f32 to vector<1x128xf32>
    %137 = arith.mulf %136, %120 : vector<1x128xf32>
    %138 = arith.addf %118, %137 : vector<1x128xf32>
    %139 = vector.extract_strided_slice %1 {offsets = [6, 0], sizes = [1, 128], strides = [1, 1]} : vector<8x128xf32> to vector<1x128xf32>
    %140 = vector.extract_strided_slice %2 {offsets = [6, 0], sizes = [1, 128], strides = [1, 1]} : vector<8x128xf32> to vector<1x128xf32>
    %cst_35 = arith.constant 1.000000e+00 : f32
    %141 = vector.broadcast %cst_35 : f32 to vector<1x128xf32>
    %142 = arith.subf %141, %140 : vector<1x128xf32>
    %cst_36 = arith.constant 0.333333313 : f32
    %143 = vector.broadcast %cst_36 : f32 to vector<1x128xf32>
    %144 = arith.mulf %143, %142 : vector<1x128xf32>
    %145 = arith.addf %140, %144 : vector<1x128xf32>
    %cst_37 = arith.constant 0.333333313 : f32
    %146 = vector.broadcast %cst_37 : f32 to vector<1x128xf32>
    %147 = arith.mulf %146, %142 : vector<1x128xf32>
    %cst_38 = arith.constant -0.577350259 : f32
    %148 = vector.broadcast %cst_38 : f32 to vector<1x128xf32>
    %149 = arith.mulf %148, %139 : vector<1x128xf32>
    %150 = arith.addf %147, %149 : vector<1x128xf32>
    %cst_39 = arith.constant 0.333333313 : f32
    %151 = vector.broadcast %cst_39 : f32 to vector<1x128xf32>
    %152 = arith.mulf %151, %142 : vector<1x128xf32>
    %cst_40 = arith.constant 0.577350259 : f32
    %153 = vector.broadcast %cst_40 : f32 to vector<1x128xf32>
    %154 = arith.mulf %153, %139 : vector<1x128xf32>
    %155 = arith.addf %152, %154 : vector<1x128xf32>
    %cst_41 = arith.constant 0.333333313 : f32
    %156 = vector.broadcast %cst_41 : f32 to vector<1x128xf32>
    %157 = arith.mulf %156, %142 : vector<1x128xf32>
    %cst_42 = arith.constant 0.577350259 : f32
    %158 = vector.broadcast %cst_42 : f32 to vector<1x128xf32>
    %159 = arith.mulf %158, %139 : vector<1x128xf32>
    %160 = arith.addf %157, %159 : vector<1x128xf32>
    %cst_43 = arith.constant 0.333333313 : f32
    %161 = vector.broadcast %cst_43 : f32 to vector<1x128xf32>
    %162 = arith.mulf %161, %142 : vector<1x128xf32>
    %163 = arith.addf %140, %162 : vector<1x128xf32>
    %cst_44 = arith.constant 0.333333313 : f32
    %164 = vector.broadcast %cst_44 : f32 to vector<1x128xf32>
    %165 = arith.mulf %164, %142 : vector<1x128xf32>
    %cst_45 = arith.constant -0.577350259 : f32
    %166 = vector.broadcast %cst_45 : f32 to vector<1x128xf32>
    %167 = arith.mulf %166, %139 : vector<1x128xf32>
    %168 = arith.addf %165, %167 : vector<1x128xf32>
    %cst_46 = arith.constant 0.333333313 : f32
    %169 = vector.broadcast %cst_46 : f32 to vector<1x128xf32>
    %170 = arith.mulf %169, %142 : vector<1x128xf32>
    %cst_47 = arith.constant -0.577350259 : f32
    %171 = vector.broadcast %cst_47 : f32 to vector<1x128xf32>
    %172 = arith.mulf %171, %139 : vector<1x128xf32>
    %173 = arith.addf %170, %172 : vector<1x128xf32>
    %cst_48 = arith.constant 0.333333313 : f32
    %174 = vector.broadcast %cst_48 : f32 to vector<1x128xf32>
    %175 = arith.mulf %174, %142 : vector<1x128xf32>
    %cst_49 = arith.constant 0.577350259 : f32
    %176 = vector.broadcast %cst_49 : f32 to vector<1x128xf32>
    %177 = arith.mulf %176, %139 : vector<1x128xf32>
    %178 = arith.addf %175, %177 : vector<1x128xf32>
    %cst_50 = arith.constant 0.333333313 : f32
    %179 = vector.broadcast %cst_50 : f32 to vector<1x128xf32>
    %180 = arith.mulf %179, %142 : vector<1x128xf32>
    %181 = arith.addf %140, %180 : vector<1x128xf32>
    %182 = vector.extract_strided_slice %1 {offsets = [7, 0], sizes = [1, 128], strides = [1, 1]} : vector<8x128xf32> to vector<1x128xf32>
    %183 = vector.extract_strided_slice %2 {offsets = [7, 0], sizes = [1, 128], strides = [1, 1]} : vector<8x128xf32> to vector<1x128xf32>
    %cst_51 = arith.constant 0.000000e+00 : f32
    %184 = vector.broadcast %cst_51 : f32 to vector<1x128xf32>
    %185 = arith.subf %184, %182 : vector<1x128xf32>
    %186 = arith.mulf %82, %86 : vector<1x128xf32>
    %187 = arith.mulf %82, %84 : vector<1x128xf32>
    %188 = arith.mulf %80, %86 : vector<1x128xf32>
    %189 = arith.mulf %80, %84 : vector<1x128xf32>
    %190 = arith.mulf %84, %88 : vector<1x128xf32>
    %191 = arith.mulf %84, %90 : vector<1x128xf32>
    %192 = arith.mulf %86, %88 : vector<1x128xf32>
    %193 = arith.mulf %86, %90 : vector<1x128xf32>
    %cst_52 = arith.constant 3.000000e-02 : f32
    %194 = vector.broadcast %cst_52 : f32 to vector<1x128xf32>
    %195 = arith.mulf %194, %84 : vector<1x128xf32>
    %cst_53 = arith.constant 9.000000e-02 : f32
    %196 = vector.broadcast %cst_53 : f32 to vector<1x128xf32>
    %197 = arith.mulf %196, %83 : vector<1x128xf32>
    %198 = arith.addf %195, %197 : vector<1x128xf32>
    %cst_54 = arith.constant 3.000000e-02 : f32
    %199 = vector.broadcast %cst_54 : f32 to vector<1x128xf32>
    %200 = arith.mulf %199, %86 : vector<1x128xf32>
    %cst_55 = arith.constant 9.000000e-02 : f32
    %201 = vector.broadcast %cst_55 : f32 to vector<1x128xf32>
    %202 = arith.mulf %201, %84 : vector<1x128xf32>
    %203 = arith.addf %200, %202 : vector<1x128xf32>
    %204 = arith.mulf %90, %92 : vector<1x128xf32>
    %205 = arith.mulf %90, %94 : vector<1x128xf32>
    %206 = arith.mulf %88, %92 : vector<1x128xf32>
    %207 = arith.mulf %88, %94 : vector<1x128xf32>
    %cst_56 = arith.constant 4.000000e-02 : f32
    %208 = vector.broadcast %cst_56 : f32 to vector<1x128xf32>
    %209 = arith.mulf %208, %88 : vector<1x128xf32>
    %cst_57 = arith.constant 3.000000e-02 : f32
    %210 = vector.broadcast %cst_57 : f32 to vector<1x128xf32>
    %211 = arith.addf %210, %209 : vector<1x128xf32>
    %cst_58 = arith.constant 8.000000e-02 : f32
    %212 = vector.broadcast %cst_58 : f32 to vector<1x128xf32>
    %213 = arith.mulf %212, %90 : vector<1x128xf32>
    %214 = arith.addf %211, %213 : vector<1x128xf32>
    %cst_59 = arith.constant 4.000000e-02 : f32
    %215 = vector.broadcast %cst_59 : f32 to vector<1x128xf32>
    %216 = arith.mulf %215, %87 : vector<1x128xf32>
    %cst_60 = arith.constant 6.000000e-02 : f32
    %217 = vector.broadcast %cst_60 : f32 to vector<1x128xf32>
    %218 = arith.addf %217, %216 : vector<1x128xf32>
    %cst_61 = arith.constant 8.000000e-02 : f32
    %219 = vector.broadcast %cst_61 : f32 to vector<1x128xf32>
    %220 = arith.mulf %219, %88 : vector<1x128xf32>
    %221 = arith.addf %218, %220 : vector<1x128xf32>
    %222 = arith.mulf %92, %104 : vector<1x128xf32>
    %223 = arith.mulf %94, %111 : vector<1x128xf32>
    %224 = arith.addf %222, %223 : vector<1x128xf32>
    %225 = arith.mulf %92, %107 : vector<1x128xf32>
    %226 = arith.mulf %94, %113 : vector<1x128xf32>
    %227 = arith.addf %225, %226 : vector<1x128xf32>
    %228 = arith.mulf %92, %109 : vector<1x128xf32>
    %229 = arith.mulf %94, %116 : vector<1x128xf32>
    %230 = arith.addf %228, %229 : vector<1x128xf32>
    %231 = arith.mulf %91, %104 : vector<1x128xf32>
    %232 = arith.mulf %92, %111 : vector<1x128xf32>
    %233 = arith.addf %231, %232 : vector<1x128xf32>
    %234 = arith.mulf %91, %107 : vector<1x128xf32>
    %235 = arith.mulf %92, %113 : vector<1x128xf32>
    %236 = arith.addf %234, %235 : vector<1x128xf32>
    %237 = arith.mulf %91, %109 : vector<1x128xf32>
    %238 = arith.mulf %92, %116 : vector<1x128xf32>
    %239 = arith.addf %237, %238 : vector<1x128xf32>
    %cst_62 = arith.constant 1.000000e-01 : f32
    %240 = vector.broadcast %cst_62 : f32 to vector<1x128xf32>
    %241 = arith.mulf %240, %92 : vector<1x128xf32>
    %cst_63 = arith.constant 8.000000e-02 : f32
    %242 = vector.broadcast %cst_63 : f32 to vector<1x128xf32>
    %243 = arith.addf %242, %241 : vector<1x128xf32>
    %cst_64 = arith.constant 1.500000e-01 : f32
    %244 = vector.broadcast %cst_64 : f32 to vector<1x128xf32>
    %245 = arith.mulf %244, %94 : vector<1x128xf32>
    %246 = arith.addf %243, %245 : vector<1x128xf32>
    %cst_65 = arith.constant 1.000000e-01 : f32
    %247 = vector.broadcast %cst_65 : f32 to vector<1x128xf32>
    %248 = arith.mulf %247, %91 : vector<1x128xf32>
    %cst_66 = arith.constant 1.200000e-01 : f32
    %249 = vector.broadcast %cst_66 : f32 to vector<1x128xf32>
    %250 = arith.addf %249, %248 : vector<1x128xf32>
    %cst_67 = arith.constant 1.500000e-01 : f32
    %251 = vector.broadcast %cst_67 : f32 to vector<1x128xf32>
    %252 = arith.mulf %251, %92 : vector<1x128xf32>
    %253 = arith.addf %250, %252 : vector<1x128xf32>
    %254 = arith.mulf %96, %123 : vector<1x128xf32>
    %255 = arith.mulf %100, %129 : vector<1x128xf32>
    %256 = arith.addf %254, %255 : vector<1x128xf32>
    %257 = arith.mulf %102, %133 : vector<1x128xf32>
    %258 = arith.addf %256, %257 : vector<1x128xf32>
    %259 = arith.mulf %96, %125 : vector<1x128xf32>
    %260 = arith.mulf %100, %118 : vector<1x128xf32>
    %261 = arith.addf %259, %260 : vector<1x128xf32>
    %262 = arith.mulf %102, %135 : vector<1x128xf32>
    %263 = arith.addf %261, %262 : vector<1x128xf32>
    %264 = arith.mulf %96, %127 : vector<1x128xf32>
    %265 = arith.mulf %100, %131 : vector<1x128xf32>
    %266 = arith.addf %264, %265 : vector<1x128xf32>
    %267 = arith.mulf %102, %138 : vector<1x128xf32>
    %268 = arith.addf %266, %267 : vector<1x128xf32>
    %269 = arith.mulf %104, %123 : vector<1x128xf32>
    %270 = arith.mulf %107, %129 : vector<1x128xf32>
    %271 = arith.addf %269, %270 : vector<1x128xf32>
    %272 = arith.mulf %109, %133 : vector<1x128xf32>
    %273 = arith.addf %271, %272 : vector<1x128xf32>
    %274 = arith.mulf %104, %125 : vector<1x128xf32>
    %275 = arith.mulf %107, %118 : vector<1x128xf32>
    %276 = arith.addf %274, %275 : vector<1x128xf32>
    %277 = arith.mulf %109, %135 : vector<1x128xf32>
    %278 = arith.addf %276, %277 : vector<1x128xf32>
    %279 = arith.mulf %104, %127 : vector<1x128xf32>
    %280 = arith.mulf %107, %131 : vector<1x128xf32>
    %281 = arith.addf %279, %280 : vector<1x128xf32>
    %282 = arith.mulf %109, %138 : vector<1x128xf32>
    %283 = arith.addf %281, %282 : vector<1x128xf32>
    %284 = arith.mulf %111, %123 : vector<1x128xf32>
    %285 = arith.mulf %113, %129 : vector<1x128xf32>
    %286 = arith.addf %284, %285 : vector<1x128xf32>
    %287 = arith.mulf %116, %133 : vector<1x128xf32>
    %288 = arith.addf %286, %287 : vector<1x128xf32>
    %289 = arith.mulf %111, %125 : vector<1x128xf32>
    %290 = arith.mulf %113, %118 : vector<1x128xf32>
    %291 = arith.addf %289, %290 : vector<1x128xf32>
    %292 = arith.mulf %116, %135 : vector<1x128xf32>
    %293 = arith.addf %291, %292 : vector<1x128xf32>
    %294 = arith.mulf %111, %127 : vector<1x128xf32>
    %295 = arith.mulf %113, %131 : vector<1x128xf32>
    %296 = arith.addf %294, %295 : vector<1x128xf32>
    %297 = arith.mulf %116, %138 : vector<1x128xf32>
    %298 = arith.addf %296, %297 : vector<1x128xf32>
    %cst_68 = arith.constant 6.000000e-02 : f32
    %299 = vector.broadcast %cst_68 : f32 to vector<1x128xf32>
    %300 = arith.mulf %299, %96 : vector<1x128xf32>
    %cst_69 = arith.constant 5.000000e-02 : f32
    %301 = vector.broadcast %cst_69 : f32 to vector<1x128xf32>
    %302 = arith.addf %301, %300 : vector<1x128xf32>
    %cst_70 = arith.constant 1.200000e-01 : f32
    %303 = vector.broadcast %cst_70 : f32 to vector<1x128xf32>
    %304 = arith.mulf %303, %100 : vector<1x128xf32>
    %305 = arith.addf %302, %304 : vector<1x128xf32>
    %cst_71 = arith.constant 1.800000e-01 : f32
    %306 = vector.broadcast %cst_71 : f32 to vector<1x128xf32>
    %307 = arith.mulf %306, %102 : vector<1x128xf32>
    %308 = arith.addf %305, %307 : vector<1x128xf32>
    %cst_72 = arith.constant 6.000000e-02 : f32
    %309 = vector.broadcast %cst_72 : f32 to vector<1x128xf32>
    %310 = arith.mulf %309, %104 : vector<1x128xf32>
    %cst_73 = arith.constant 1.000000e-01 : f32
    %311 = vector.broadcast %cst_73 : f32 to vector<1x128xf32>
    %312 = arith.addf %311, %310 : vector<1x128xf32>
    %cst_74 = arith.constant 1.200000e-01 : f32
    %313 = vector.broadcast %cst_74 : f32 to vector<1x128xf32>
    %314 = arith.mulf %313, %107 : vector<1x128xf32>
    %315 = arith.addf %312, %314 : vector<1x128xf32>
    %cst_75 = arith.constant 1.800000e-01 : f32
    %316 = vector.broadcast %cst_75 : f32 to vector<1x128xf32>
    %317 = arith.mulf %316, %109 : vector<1x128xf32>
    %318 = arith.addf %315, %317 : vector<1x128xf32>
    %cst_76 = arith.constant 6.000000e-02 : f32
    %319 = vector.broadcast %cst_76 : f32 to vector<1x128xf32>
    %320 = arith.mulf %319, %111 : vector<1x128xf32>
    %cst_77 = arith.constant 1.500000e-01 : f32
    %321 = vector.broadcast %cst_77 : f32 to vector<1x128xf32>
    %322 = arith.addf %321, %320 : vector<1x128xf32>
    %cst_78 = arith.constant 1.200000e-01 : f32
    %323 = vector.broadcast %cst_78 : f32 to vector<1x128xf32>
    %324 = arith.mulf %323, %113 : vector<1x128xf32>
    %325 = arith.addf %322, %324 : vector<1x128xf32>
    %cst_79 = arith.constant 1.800000e-01 : f32
    %326 = vector.broadcast %cst_79 : f32 to vector<1x128xf32>
    %327 = arith.mulf %326, %116 : vector<1x128xf32>
    %328 = arith.addf %325, %327 : vector<1x128xf32>
    %329 = arith.mulf %123, %145 : vector<1x128xf32>
    %330 = arith.mulf %125, %160 : vector<1x128xf32>
    %331 = arith.addf %329, %330 : vector<1x128xf32>
    %332 = arith.mulf %127, %173 : vector<1x128xf32>
    %333 = arith.addf %331, %332 : vector<1x128xf32>
    %334 = arith.mulf %123, %150 : vector<1x128xf32>
    %335 = arith.mulf %125, %163 : vector<1x128xf32>
    %336 = arith.addf %334, %335 : vector<1x128xf32>
    %337 = arith.mulf %127, %178 : vector<1x128xf32>
    %338 = arith.addf %336, %337 : vector<1x128xf32>
    %339 = arith.mulf %123, %155 : vector<1x128xf32>
    %340 = arith.mulf %125, %168 : vector<1x128xf32>
    %341 = arith.addf %339, %340 : vector<1x128xf32>
    %342 = arith.mulf %127, %181 : vector<1x128xf32>
    %343 = arith.addf %341, %342 : vector<1x128xf32>
    %344 = arith.mulf %129, %145 : vector<1x128xf32>
    %345 = arith.mulf %118, %160 : vector<1x128xf32>
    %346 = arith.addf %344, %345 : vector<1x128xf32>
    %347 = arith.mulf %131, %173 : vector<1x128xf32>
    %348 = arith.addf %346, %347 : vector<1x128xf32>
    %349 = arith.mulf %129, %150 : vector<1x128xf32>
    %350 = arith.mulf %118, %163 : vector<1x128xf32>
    %351 = arith.addf %349, %350 : vector<1x128xf32>
    %352 = arith.mulf %131, %178 : vector<1x128xf32>
    %353 = arith.addf %351, %352 : vector<1x128xf32>
    %354 = arith.mulf %129, %155 : vector<1x128xf32>
    %355 = arith.mulf %118, %168 : vector<1x128xf32>
    %356 = arith.addf %354, %355 : vector<1x128xf32>
    %357 = arith.mulf %131, %181 : vector<1x128xf32>
    %358 = arith.addf %356, %357 : vector<1x128xf32>
    %359 = arith.mulf %133, %145 : vector<1x128xf32>
    %360 = arith.mulf %135, %160 : vector<1x128xf32>
    %361 = arith.addf %359, %360 : vector<1x128xf32>
    %362 = arith.mulf %138, %173 : vector<1x128xf32>
    %363 = arith.addf %361, %362 : vector<1x128xf32>
    %364 = arith.mulf %133, %150 : vector<1x128xf32>
    %365 = arith.mulf %135, %163 : vector<1x128xf32>
    %366 = arith.addf %364, %365 : vector<1x128xf32>
    %367 = arith.mulf %138, %178 : vector<1x128xf32>
    %368 = arith.addf %366, %367 : vector<1x128xf32>
    %369 = arith.mulf %133, %155 : vector<1x128xf32>
    %370 = arith.mulf %135, %168 : vector<1x128xf32>
    %371 = arith.addf %369, %370 : vector<1x128xf32>
    %372 = arith.mulf %138, %181 : vector<1x128xf32>
    %373 = arith.addf %371, %372 : vector<1x128xf32>
    %cst_80 = arith.constant 7.000000e-02 : f32
    %374 = vector.broadcast %cst_80 : f32 to vector<1x128xf32>
    %375 = arith.mulf %374, %123 : vector<1x128xf32>
    %cst_81 = arith.constant 6.000000e-02 : f32
    %376 = vector.broadcast %cst_81 : f32 to vector<1x128xf32>
    %377 = arith.addf %376, %375 : vector<1x128xf32>
    %cst_82 = arith.constant 1.400000e-01 : f32
    %378 = vector.broadcast %cst_82 : f32 to vector<1x128xf32>
    %379 = arith.mulf %378, %125 : vector<1x128xf32>
    %380 = arith.addf %377, %379 : vector<1x128xf32>
    %cst_83 = arith.constant 2.100000e-01 : f32
    %381 = vector.broadcast %cst_83 : f32 to vector<1x128xf32>
    %382 = arith.mulf %381, %127 : vector<1x128xf32>
    %383 = arith.addf %380, %382 : vector<1x128xf32>
    %cst_84 = arith.constant 7.000000e-02 : f32
    %384 = vector.broadcast %cst_84 : f32 to vector<1x128xf32>
    %385 = arith.mulf %384, %129 : vector<1x128xf32>
    %cst_85 = arith.constant 1.200000e-01 : f32
    %386 = vector.broadcast %cst_85 : f32 to vector<1x128xf32>
    %387 = arith.addf %386, %385 : vector<1x128xf32>
    %cst_86 = arith.constant 1.400000e-01 : f32
    %388 = vector.broadcast %cst_86 : f32 to vector<1x128xf32>
    %389 = arith.mulf %388, %118 : vector<1x128xf32>
    %390 = arith.addf %387, %389 : vector<1x128xf32>
    %cst_87 = arith.constant 2.100000e-01 : f32
    %391 = vector.broadcast %cst_87 : f32 to vector<1x128xf32>
    %392 = arith.mulf %391, %131 : vector<1x128xf32>
    %393 = arith.addf %390, %392 : vector<1x128xf32>
    %cst_88 = arith.constant 7.000000e-02 : f32
    %394 = vector.broadcast %cst_88 : f32 to vector<1x128xf32>
    %395 = arith.mulf %394, %133 : vector<1x128xf32>
    %cst_89 = arith.constant 1.800000e-01 : f32
    %396 = vector.broadcast %cst_89 : f32 to vector<1x128xf32>
    %397 = arith.addf %396, %395 : vector<1x128xf32>
    %cst_90 = arith.constant 1.400000e-01 : f32
    %398 = vector.broadcast %cst_90 : f32 to vector<1x128xf32>
    %399 = arith.mulf %398, %135 : vector<1x128xf32>
    %400 = arith.addf %397, %399 : vector<1x128xf32>
    %cst_91 = arith.constant 2.100000e-01 : f32
    %401 = vector.broadcast %cst_91 : f32 to vector<1x128xf32>
    %402 = arith.mulf %401, %138 : vector<1x128xf32>
    %403 = arith.addf %400, %402 : vector<1x128xf32>
    %404 = arith.mulf %145, %183 : vector<1x128xf32>
    %405 = arith.mulf %155, %185 : vector<1x128xf32>
    %406 = arith.addf %404, %405 : vector<1x128xf32>
    %407 = arith.mulf %145, %182 : vector<1x128xf32>
    %408 = arith.mulf %155, %183 : vector<1x128xf32>
    %409 = arith.addf %407, %408 : vector<1x128xf32>
    %410 = arith.mulf %160, %183 : vector<1x128xf32>
    %411 = arith.mulf %168, %185 : vector<1x128xf32>
    %412 = arith.addf %410, %411 : vector<1x128xf32>
    %413 = arith.mulf %160, %182 : vector<1x128xf32>
    %414 = arith.mulf %168, %183 : vector<1x128xf32>
    %415 = arith.addf %413, %414 : vector<1x128xf32>
    %416 = arith.mulf %173, %183 : vector<1x128xf32>
    %417 = arith.mulf %181, %185 : vector<1x128xf32>
    %418 = arith.addf %416, %417 : vector<1x128xf32>
    %419 = arith.mulf %173, %182 : vector<1x128xf32>
    %420 = arith.mulf %181, %183 : vector<1x128xf32>
    %421 = arith.addf %419, %420 : vector<1x128xf32>
    %cst_92 = arith.constant 8.000000e-02 : f32
    %422 = vector.broadcast %cst_92 : f32 to vector<1x128xf32>
    %423 = arith.mulf %422, %145 : vector<1x128xf32>
    %cst_93 = arith.constant 7.000000e-02 : f32
    %424 = vector.broadcast %cst_93 : f32 to vector<1x128xf32>
    %425 = arith.addf %424, %423 : vector<1x128xf32>
    %cst_94 = arith.constant 1.600000e-01 : f32
    %426 = vector.broadcast %cst_94 : f32 to vector<1x128xf32>
    %427 = arith.mulf %426, %150 : vector<1x128xf32>
    %428 = arith.addf %425, %427 : vector<1x128xf32>
    %cst_95 = arith.constant 2.400000e-01 : f32
    %429 = vector.broadcast %cst_95 : f32 to vector<1x128xf32>
    %430 = arith.mulf %429, %155 : vector<1x128xf32>
    %431 = arith.addf %428, %430 : vector<1x128xf32>
    %cst_96 = arith.constant 8.000000e-02 : f32
    %432 = vector.broadcast %cst_96 : f32 to vector<1x128xf32>
    %433 = arith.mulf %432, %160 : vector<1x128xf32>
    %cst_97 = arith.constant 1.400000e-01 : f32
    %434 = vector.broadcast %cst_97 : f32 to vector<1x128xf32>
    %435 = arith.addf %434, %433 : vector<1x128xf32>
    %cst_98 = arith.constant 1.600000e-01 : f32
    %436 = vector.broadcast %cst_98 : f32 to vector<1x128xf32>
    %437 = arith.mulf %436, %163 : vector<1x128xf32>
    %438 = arith.addf %435, %437 : vector<1x128xf32>
    %cst_99 = arith.constant 2.400000e-01 : f32
    %439 = vector.broadcast %cst_99 : f32 to vector<1x128xf32>
    %440 = arith.mulf %439, %168 : vector<1x128xf32>
    %441 = arith.addf %438, %440 : vector<1x128xf32>
    %cst_100 = arith.constant 8.000000e-02 : f32
    %442 = vector.broadcast %cst_100 : f32 to vector<1x128xf32>
    %443 = arith.mulf %442, %173 : vector<1x128xf32>
    %cst_101 = arith.constant 2.100000e-01 : f32
    %444 = vector.broadcast %cst_101 : f32 to vector<1x128xf32>
    %445 = arith.addf %444, %443 : vector<1x128xf32>
    %cst_102 = arith.constant 1.600000e-01 : f32
    %446 = vector.broadcast %cst_102 : f32 to vector<1x128xf32>
    %447 = arith.mulf %446, %178 : vector<1x128xf32>
    %448 = arith.addf %445, %447 : vector<1x128xf32>
    %cst_103 = arith.constant 2.400000e-01 : f32
    %449 = vector.broadcast %cst_103 : f32 to vector<1x128xf32>
    %450 = arith.mulf %449, %181 : vector<1x128xf32>
    %451 = arith.addf %448, %450 : vector<1x128xf32>
    %452 = arith.mulf %80, %87 : vector<1x128xf32>
    %453 = arith.mulf %82, %192 : vector<1x128xf32>
    %454 = arith.addf %452, %453 : vector<1x128xf32>
    %455 = arith.mulf %80, %88 : vector<1x128xf32>
    %456 = arith.mulf %82, %193 : vector<1x128xf32>
    %457 = arith.addf %455, %456 : vector<1x128xf32>
    %458 = arith.mulf %82, %84 : vector<1x128xf32>
    %459 = arith.mulf %79, %87 : vector<1x128xf32>
    %460 = arith.mulf %80, %192 : vector<1x128xf32>
    %461 = arith.addf %459, %460 : vector<1x128xf32>
    %462 = arith.mulf %79, %88 : vector<1x128xf32>
    %463 = arith.mulf %80, %193 : vector<1x128xf32>
    %464 = arith.addf %462, %463 : vector<1x128xf32>
    %465 = arith.mulf %80, %84 : vector<1x128xf32>
    %cst_104 = arith.constant 0.00999999977 : f32
    %466 = vector.broadcast %cst_104 : f32 to vector<1x128xf32>
    %467 = arith.addf %466, %198 : vector<1x128xf32>
    %cst_105 = arith.constant 6.000000e-02 : f32
    %468 = vector.broadcast %cst_105 : f32 to vector<1x128xf32>
    %469 = arith.mulf %468, %80 : vector<1x128xf32>
    %cst_106 = arith.constant 2.000000e-02 : f32
    %470 = vector.broadcast %cst_106 : f32 to vector<1x128xf32>
    %471 = arith.addf %470, %469 : vector<1x128xf32>
    %472 = arith.mulf %82, %203 : vector<1x128xf32>
    %473 = arith.addf %471, %472 : vector<1x128xf32>
    %cst_107 = arith.constant 6.000000e-02 : f32
    %474 = vector.broadcast %cst_107 : f32 to vector<1x128xf32>
    %475 = arith.mulf %474, %79 : vector<1x128xf32>
    %cst_108 = arith.constant 3.000000e-02 : f32
    %476 = vector.broadcast %cst_108 : f32 to vector<1x128xf32>
    %477 = arith.addf %476, %475 : vector<1x128xf32>
    %478 = arith.mulf %80, %203 : vector<1x128xf32>
    %479 = arith.addf %477, %478 : vector<1x128xf32>
    %480 = arith.mulf %84, %88 : vector<1x128xf32>
    %481 = arith.mulf %84, %204 : vector<1x128xf32>
    %482 = arith.mulf %83, %91 : vector<1x128xf32>
    %483 = arith.addf %481, %482 : vector<1x128xf32>
    %484 = arith.mulf %84, %205 : vector<1x128xf32>
    %485 = arith.mulf %83, %92 : vector<1x128xf32>
    %486 = arith.addf %484, %485 : vector<1x128xf32>
    %487 = arith.mulf %186, %88 : vector<1x128xf32>
    %488 = arith.mulf %80, %87 : vector<1x128xf32>
    %489 = arith.addf %487, %488 : vector<1x128xf32>
    %490 = arith.mulf %186, %204 : vector<1x128xf32>
    %491 = arith.mulf %80, %206 : vector<1x128xf32>
    %492 = arith.addf %490, %491 : vector<1x128xf32>
    %493 = arith.mulf %187, %91 : vector<1x128xf32>
    %494 = arith.addf %492, %493 : vector<1x128xf32>
    %495 = arith.mulf %186, %205 : vector<1x128xf32>
    %496 = arith.mulf %80, %207 : vector<1x128xf32>
    %497 = arith.addf %495, %496 : vector<1x128xf32>
    %498 = arith.mulf %187, %92 : vector<1x128xf32>
    %499 = arith.addf %497, %498 : vector<1x128xf32>
    %500 = arith.mulf %188, %88 : vector<1x128xf32>
    %501 = arith.mulf %79, %87 : vector<1x128xf32>
    %502 = arith.addf %500, %501 : vector<1x128xf32>
    %503 = arith.mulf %188, %204 : vector<1x128xf32>
    %504 = arith.mulf %79, %206 : vector<1x128xf32>
    %505 = arith.addf %503, %504 : vector<1x128xf32>
    %506 = arith.mulf %189, %91 : vector<1x128xf32>
    %507 = arith.addf %505, %506 : vector<1x128xf32>
    %508 = arith.mulf %188, %205 : vector<1x128xf32>
    %509 = arith.mulf %79, %207 : vector<1x128xf32>
    %510 = arith.addf %508, %509 : vector<1x128xf32>
    %511 = arith.mulf %189, %92 : vector<1x128xf32>
    %512 = arith.addf %510, %511 : vector<1x128xf32>
    %513 = arith.mulf %84, %214 : vector<1x128xf32>
    %cst_109 = arith.constant 0.00999999977 : f32
    %514 = vector.broadcast %cst_109 : f32 to vector<1x128xf32>
    %515 = arith.addf %514, %513 : vector<1x128xf32>
    %cst_110 = arith.constant 0.210000008 : f32
    %516 = vector.broadcast %cst_110 : f32 to vector<1x128xf32>
    %517 = arith.mulf %516, %83 : vector<1x128xf32>
    %518 = arith.addf %515, %517 : vector<1x128xf32>
    %519 = arith.mulf %186, %214 : vector<1x128xf32>
    %cst_111 = arith.constant 2.000000e-02 : f32
    %520 = vector.broadcast %cst_111 : f32 to vector<1x128xf32>
    %521 = arith.addf %520, %519 : vector<1x128xf32>
    %522 = arith.mulf %80, %221 : vector<1x128xf32>
    %523 = arith.addf %521, %522 : vector<1x128xf32>
    %cst_112 = arith.constant 0.210000008 : f32
    %524 = vector.broadcast %cst_112 : f32 to vector<1x128xf32>
    %525 = arith.mulf %524, %187 : vector<1x128xf32>
    %526 = arith.addf %523, %525 : vector<1x128xf32>
    %527 = arith.mulf %188, %214 : vector<1x128xf32>
    %cst_113 = arith.constant 3.000000e-02 : f32
    %528 = vector.broadcast %cst_113 : f32 to vector<1x128xf32>
    %529 = arith.addf %528, %527 : vector<1x128xf32>
    %530 = arith.mulf %79, %221 : vector<1x128xf32>
    %531 = arith.addf %529, %530 : vector<1x128xf32>
    %cst_114 = arith.constant 0.210000008 : f32
    %532 = vector.broadcast %cst_114 : f32 to vector<1x128xf32>
    %533 = arith.mulf %532, %189 : vector<1x128xf32>
    %534 = arith.addf %531, %533 : vector<1x128xf32>
    %535 = arith.mulf %190, %96 : vector<1x128xf32>
    %536 = arith.mulf %191, %224 : vector<1x128xf32>
    %537 = arith.addf %535, %536 : vector<1x128xf32>
    %538 = arith.mulf %83, %233 : vector<1x128xf32>
    %539 = arith.addf %537, %538 : vector<1x128xf32>
    %540 = arith.mulf %190, %100 : vector<1x128xf32>
    %541 = arith.mulf %191, %227 : vector<1x128xf32>
    %542 = arith.addf %540, %541 : vector<1x128xf32>
    %543 = arith.mulf %83, %236 : vector<1x128xf32>
    %544 = arith.addf %542, %543 : vector<1x128xf32>
    %545 = arith.mulf %190, %102 : vector<1x128xf32>
    %546 = arith.mulf %191, %230 : vector<1x128xf32>
    %547 = arith.addf %545, %546 : vector<1x128xf32>
    %548 = arith.mulf %83, %239 : vector<1x128xf32>
    %549 = arith.addf %547, %548 : vector<1x128xf32>
    %550 = arith.mulf %87, %96 : vector<1x128xf32>
    %551 = arith.mulf %88, %224 : vector<1x128xf32>
    %552 = arith.addf %550, %551 : vector<1x128xf32>
    %553 = arith.mulf %87, %100 : vector<1x128xf32>
    %554 = arith.mulf %88, %227 : vector<1x128xf32>
    %555 = arith.addf %553, %554 : vector<1x128xf32>
    %556 = arith.mulf %87, %102 : vector<1x128xf32>
    %557 = arith.mulf %88, %230 : vector<1x128xf32>
    %558 = arith.addf %556, %557 : vector<1x128xf32>
    %559 = arith.mulf %192, %96 : vector<1x128xf32>
    %560 = arith.mulf %193, %224 : vector<1x128xf32>
    %561 = arith.addf %559, %560 : vector<1x128xf32>
    %562 = arith.mulf %84, %233 : vector<1x128xf32>
    %563 = arith.addf %561, %562 : vector<1x128xf32>
    %564 = arith.mulf %192, %100 : vector<1x128xf32>
    %565 = arith.mulf %193, %227 : vector<1x128xf32>
    %566 = arith.addf %564, %565 : vector<1x128xf32>
    %567 = arith.mulf %84, %236 : vector<1x128xf32>
    %568 = arith.addf %566, %567 : vector<1x128xf32>
    %569 = arith.mulf %192, %102 : vector<1x128xf32>
    %570 = arith.mulf %193, %230 : vector<1x128xf32>
    %571 = arith.addf %569, %570 : vector<1x128xf32>
    %572 = arith.mulf %84, %239 : vector<1x128xf32>
    %573 = arith.addf %571, %572 : vector<1x128xf32>
    %cst_115 = arith.constant 9.000000e-02 : f32
    %574 = vector.broadcast %cst_115 : f32 to vector<1x128xf32>
    %575 = arith.mulf %574, %190 : vector<1x128xf32>
    %576 = arith.addf %198, %575 : vector<1x128xf32>
    %577 = arith.mulf %191, %246 : vector<1x128xf32>
    %578 = arith.addf %576, %577 : vector<1x128xf32>
    %579 = arith.mulf %83, %253 : vector<1x128xf32>
    %580 = arith.addf %578, %579 : vector<1x128xf32>
    %cst_116 = arith.constant 9.000000e-02 : f32
    %581 = vector.broadcast %cst_116 : f32 to vector<1x128xf32>
    %582 = arith.mulf %581, %87 : vector<1x128xf32>
    %cst_117 = arith.constant 6.000000e-02 : f32
    %583 = vector.broadcast %cst_117 : f32 to vector<1x128xf32>
    %584 = arith.addf %583, %582 : vector<1x128xf32>
    %585 = arith.mulf %88, %246 : vector<1x128xf32>
    %586 = arith.addf %584, %585 : vector<1x128xf32>
    %cst_118 = arith.constant 9.000000e-02 : f32
    %587 = vector.broadcast %cst_118 : f32 to vector<1x128xf32>
    %588 = arith.mulf %587, %192 : vector<1x128xf32>
    %589 = arith.addf %203, %588 : vector<1x128xf32>
    %590 = arith.mulf %193, %246 : vector<1x128xf32>
    %591 = arith.addf %589, %590 : vector<1x128xf32>
    %592 = arith.mulf %84, %253 : vector<1x128xf32>
    %593 = arith.addf %591, %592 : vector<1x128xf32>
    %594 = arith.mulf %88, %258 : vector<1x128xf32>
    %595 = arith.mulf %204, %273 : vector<1x128xf32>
    %596 = arith.addf %594, %595 : vector<1x128xf32>
    %597 = arith.mulf %205, %288 : vector<1x128xf32>
    %598 = arith.addf %596, %597 : vector<1x128xf32>
    %599 = arith.mulf %88, %263 : vector<1x128xf32>
    %600 = arith.mulf %204, %278 : vector<1x128xf32>
    %601 = arith.addf %599, %600 : vector<1x128xf32>
    %602 = arith.mulf %205, %293 : vector<1x128xf32>
    %603 = arith.addf %601, %602 : vector<1x128xf32>
    %604 = arith.mulf %88, %268 : vector<1x128xf32>
    %605 = arith.mulf %204, %283 : vector<1x128xf32>
    %606 = arith.addf %604, %605 : vector<1x128xf32>
    %607 = arith.mulf %205, %298 : vector<1x128xf32>
    %608 = arith.addf %606, %607 : vector<1x128xf32>
    %609 = arith.mulf %87, %258 : vector<1x128xf32>
    %610 = arith.mulf %206, %273 : vector<1x128xf32>
    %611 = arith.addf %609, %610 : vector<1x128xf32>
    %612 = arith.mulf %207, %288 : vector<1x128xf32>
    %613 = arith.addf %611, %612 : vector<1x128xf32>
    %614 = arith.mulf %87, %263 : vector<1x128xf32>
    %615 = arith.mulf %206, %278 : vector<1x128xf32>
    %616 = arith.addf %614, %615 : vector<1x128xf32>
    %617 = arith.mulf %207, %293 : vector<1x128xf32>
    %618 = arith.addf %616, %617 : vector<1x128xf32>
    %619 = arith.mulf %87, %268 : vector<1x128xf32>
    %620 = arith.mulf %206, %283 : vector<1x128xf32>
    %621 = arith.addf %619, %620 : vector<1x128xf32>
    %622 = arith.mulf %207, %298 : vector<1x128xf32>
    %623 = arith.addf %621, %622 : vector<1x128xf32>
    %624 = arith.mulf %91, %273 : vector<1x128xf32>
    %625 = arith.mulf %92, %288 : vector<1x128xf32>
    %626 = arith.addf %624, %625 : vector<1x128xf32>
    %627 = arith.mulf %91, %278 : vector<1x128xf32>
    %628 = arith.mulf %92, %293 : vector<1x128xf32>
    %629 = arith.addf %627, %628 : vector<1x128xf32>
    %630 = arith.mulf %91, %283 : vector<1x128xf32>
    %631 = arith.mulf %92, %298 : vector<1x128xf32>
    %632 = arith.addf %630, %631 : vector<1x128xf32>
    %633 = arith.mulf %88, %308 : vector<1x128xf32>
    %634 = arith.addf %214, %633 : vector<1x128xf32>
    %635 = arith.mulf %204, %318 : vector<1x128xf32>
    %636 = arith.addf %634, %635 : vector<1x128xf32>
    %637 = arith.mulf %205, %328 : vector<1x128xf32>
    %638 = arith.addf %636, %637 : vector<1x128xf32>
    %639 = arith.mulf %87, %308 : vector<1x128xf32>
    %640 = arith.addf %221, %639 : vector<1x128xf32>
    %641 = arith.mulf %206, %318 : vector<1x128xf32>
    %642 = arith.addf %640, %641 : vector<1x128xf32>
    %643 = arith.mulf %207, %328 : vector<1x128xf32>
    %644 = arith.addf %642, %643 : vector<1x128xf32>
    %645 = arith.mulf %91, %318 : vector<1x128xf32>
    %cst_119 = arith.constant 0.210000008 : f32
    %646 = vector.broadcast %cst_119 : f32 to vector<1x128xf32>
    %647 = arith.addf %646, %645 : vector<1x128xf32>
    %648 = arith.mulf %92, %328 : vector<1x128xf32>
    %649 = arith.addf %647, %648 : vector<1x128xf32>
    %650 = arith.mulf %96, %333 : vector<1x128xf32>
    %651 = arith.mulf %100, %348 : vector<1x128xf32>
    %652 = arith.addf %650, %651 : vector<1x128xf32>
    %653 = arith.mulf %102, %363 : vector<1x128xf32>
    %654 = arith.addf %652, %653 : vector<1x128xf32>
    %655 = arith.mulf %96, %338 : vector<1x128xf32>
    %656 = arith.mulf %100, %353 : vector<1x128xf32>
    %657 = arith.addf %655, %656 : vector<1x128xf32>
    %658 = arith.mulf %102, %368 : vector<1x128xf32>
    %659 = arith.addf %657, %658 : vector<1x128xf32>
    %660 = arith.mulf %96, %343 : vector<1x128xf32>
    %661 = arith.mulf %100, %358 : vector<1x128xf32>
    %662 = arith.addf %660, %661 : vector<1x128xf32>
    %663 = arith.mulf %102, %373 : vector<1x128xf32>
    %664 = arith.addf %662, %663 : vector<1x128xf32>
    %665 = arith.mulf %224, %333 : vector<1x128xf32>
    %666 = arith.mulf %227, %348 : vector<1x128xf32>
    %667 = arith.addf %665, %666 : vector<1x128xf32>
    %668 = arith.mulf %230, %363 : vector<1x128xf32>
    %669 = arith.addf %667, %668 : vector<1x128xf32>
    %670 = arith.mulf %224, %338 : vector<1x128xf32>
    %671 = arith.mulf %227, %353 : vector<1x128xf32>
    %672 = arith.addf %670, %671 : vector<1x128xf32>
    %673 = arith.mulf %230, %368 : vector<1x128xf32>
    %674 = arith.addf %672, %673 : vector<1x128xf32>
    %675 = arith.mulf %224, %343 : vector<1x128xf32>
    %676 = arith.mulf %227, %358 : vector<1x128xf32>
    %677 = arith.addf %675, %676 : vector<1x128xf32>
    %678 = arith.mulf %230, %373 : vector<1x128xf32>
    %679 = arith.addf %677, %678 : vector<1x128xf32>
    %680 = arith.mulf %233, %333 : vector<1x128xf32>
    %681 = arith.mulf %236, %348 : vector<1x128xf32>
    %682 = arith.addf %680, %681 : vector<1x128xf32>
    %683 = arith.mulf %239, %363 : vector<1x128xf32>
    %684 = arith.addf %682, %683 : vector<1x128xf32>
    %685 = arith.mulf %233, %338 : vector<1x128xf32>
    %686 = arith.mulf %236, %353 : vector<1x128xf32>
    %687 = arith.addf %685, %686 : vector<1x128xf32>
    %688 = arith.mulf %239, %368 : vector<1x128xf32>
    %689 = arith.addf %687, %688 : vector<1x128xf32>
    %690 = arith.mulf %233, %343 : vector<1x128xf32>
    %691 = arith.mulf %236, %358 : vector<1x128xf32>
    %692 = arith.addf %690, %691 : vector<1x128xf32>
    %693 = arith.mulf %239, %373 : vector<1x128xf32>
    %694 = arith.addf %692, %693 : vector<1x128xf32>
    %695 = arith.mulf %96, %383 : vector<1x128xf32>
    %cst_120 = arith.constant 9.000000e-02 : f32
    %696 = vector.broadcast %cst_120 : f32 to vector<1x128xf32>
    %697 = arith.addf %696, %695 : vector<1x128xf32>
    %698 = arith.mulf %100, %393 : vector<1x128xf32>
    %699 = arith.addf %697, %698 : vector<1x128xf32>
    %700 = arith.mulf %102, %403 : vector<1x128xf32>
    %701 = arith.addf %699, %700 : vector<1x128xf32>
    %702 = arith.mulf %224, %383 : vector<1x128xf32>
    %703 = arith.addf %246, %702 : vector<1x128xf32>
    %704 = arith.mulf %227, %393 : vector<1x128xf32>
    %705 = arith.addf %703, %704 : vector<1x128xf32>
    %706 = arith.mulf %230, %403 : vector<1x128xf32>
    %707 = arith.addf %705, %706 : vector<1x128xf32>
    %708 = arith.mulf %233, %383 : vector<1x128xf32>
    %709 = arith.addf %253, %708 : vector<1x128xf32>
    %710 = arith.mulf %236, %393 : vector<1x128xf32>
    %711 = arith.addf %709, %710 : vector<1x128xf32>
    %712 = arith.mulf %239, %403 : vector<1x128xf32>
    %713 = arith.addf %711, %712 : vector<1x128xf32>
    %714 = arith.mulf %258, %406 : vector<1x128xf32>
    %715 = arith.mulf %263, %412 : vector<1x128xf32>
    %716 = arith.addf %714, %715 : vector<1x128xf32>
    %717 = arith.mulf %268, %418 : vector<1x128xf32>
    %718 = arith.addf %716, %717 : vector<1x128xf32>
    %719 = arith.mulf %258, %150 : vector<1x128xf32>
    %720 = arith.mulf %263, %163 : vector<1x128xf32>
    %721 = arith.addf %719, %720 : vector<1x128xf32>
    %722 = arith.mulf %268, %178 : vector<1x128xf32>
    %723 = arith.addf %721, %722 : vector<1x128xf32>
    %724 = arith.mulf %258, %409 : vector<1x128xf32>
    %725 = arith.mulf %263, %415 : vector<1x128xf32>
    %726 = arith.addf %724, %725 : vector<1x128xf32>
    %727 = arith.mulf %268, %421 : vector<1x128xf32>
    %728 = arith.addf %726, %727 : vector<1x128xf32>
    %729 = arith.mulf %273, %406 : vector<1x128xf32>
    %730 = arith.mulf %278, %412 : vector<1x128xf32>
    %731 = arith.addf %729, %730 : vector<1x128xf32>
    %732 = arith.mulf %283, %418 : vector<1x128xf32>
    %733 = arith.addf %731, %732 : vector<1x128xf32>
    %734 = arith.mulf %273, %150 : vector<1x128xf32>
    %735 = arith.mulf %278, %163 : vector<1x128xf32>
    %736 = arith.addf %734, %735 : vector<1x128xf32>
    %737 = arith.mulf %283, %178 : vector<1x128xf32>
    %738 = arith.addf %736, %737 : vector<1x128xf32>
    %739 = arith.mulf %273, %409 : vector<1x128xf32>
    %740 = arith.mulf %278, %415 : vector<1x128xf32>
    %741 = arith.addf %739, %740 : vector<1x128xf32>
    %742 = arith.mulf %283, %421 : vector<1x128xf32>
    %743 = arith.addf %741, %742 : vector<1x128xf32>
    %744 = arith.mulf %288, %406 : vector<1x128xf32>
    %745 = arith.mulf %293, %412 : vector<1x128xf32>
    %746 = arith.addf %744, %745 : vector<1x128xf32>
    %747 = arith.mulf %298, %418 : vector<1x128xf32>
    %748 = arith.addf %746, %747 : vector<1x128xf32>
    %749 = arith.mulf %288, %150 : vector<1x128xf32>
    %750 = arith.mulf %293, %163 : vector<1x128xf32>
    %751 = arith.addf %749, %750 : vector<1x128xf32>
    %752 = arith.mulf %298, %178 : vector<1x128xf32>
    %753 = arith.addf %751, %752 : vector<1x128xf32>
    %754 = arith.mulf %288, %409 : vector<1x128xf32>
    %755 = arith.mulf %293, %415 : vector<1x128xf32>
    %756 = arith.addf %754, %755 : vector<1x128xf32>
    %757 = arith.mulf %298, %421 : vector<1x128xf32>
    %758 = arith.addf %756, %757 : vector<1x128xf32>
    %759 = arith.mulf %258, %431 : vector<1x128xf32>
    %760 = arith.addf %308, %759 : vector<1x128xf32>
    %761 = arith.mulf %263, %441 : vector<1x128xf32>
    %762 = arith.addf %760, %761 : vector<1x128xf32>
    %763 = arith.mulf %268, %451 : vector<1x128xf32>
    %764 = arith.addf %762, %763 : vector<1x128xf32>
    %765 = arith.mulf %273, %431 : vector<1x128xf32>
    %766 = arith.addf %318, %765 : vector<1x128xf32>
    %767 = arith.mulf %278, %441 : vector<1x128xf32>
    %768 = arith.addf %766, %767 : vector<1x128xf32>
    %769 = arith.mulf %283, %451 : vector<1x128xf32>
    %770 = arith.addf %768, %769 : vector<1x128xf32>
    %771 = arith.mulf %288, %431 : vector<1x128xf32>
    %772 = arith.addf %328, %771 : vector<1x128xf32>
    %773 = arith.mulf %293, %441 : vector<1x128xf32>
    %774 = arith.addf %772, %773 : vector<1x128xf32>
    %775 = arith.mulf %298, %451 : vector<1x128xf32>
    %776 = arith.addf %774, %775 : vector<1x128xf32>
    %777 = arith.mulf %80, %552 : vector<1x128xf32>
    %778 = arith.mulf %82, %563 : vector<1x128xf32>
    %779 = arith.addf %777, %778 : vector<1x128xf32>
    %780 = arith.mulf %80, %555 : vector<1x128xf32>
    %781 = arith.mulf %82, %568 : vector<1x128xf32>
    %782 = arith.addf %780, %781 : vector<1x128xf32>
    %783 = arith.mulf %80, %558 : vector<1x128xf32>
    %784 = arith.mulf %82, %573 : vector<1x128xf32>
    %785 = arith.addf %783, %784 : vector<1x128xf32>
    %786 = arith.mulf %79, %552 : vector<1x128xf32>
    %787 = arith.mulf %80, %563 : vector<1x128xf32>
    %788 = arith.addf %786, %787 : vector<1x128xf32>
    %789 = arith.mulf %79, %555 : vector<1x128xf32>
    %790 = arith.mulf %80, %568 : vector<1x128xf32>
    %791 = arith.addf %789, %790 : vector<1x128xf32>
    %792 = arith.mulf %79, %558 : vector<1x128xf32>
    %793 = arith.mulf %80, %573 : vector<1x128xf32>
    %794 = arith.addf %792, %793 : vector<1x128xf32>
    %cst_121 = arith.constant 0.00999999977 : f32
    %795 = vector.broadcast %cst_121 : f32 to vector<1x128xf32>
    %796 = arith.addf %795, %580 : vector<1x128xf32>
    %797 = arith.mulf %80, %586 : vector<1x128xf32>
    %cst_122 = arith.constant 2.000000e-02 : f32
    %798 = vector.broadcast %cst_122 : f32 to vector<1x128xf32>
    %799 = arith.addf %798, %797 : vector<1x128xf32>
    %800 = arith.mulf %82, %593 : vector<1x128xf32>
    %801 = arith.addf %799, %800 : vector<1x128xf32>
    %802 = arith.mulf %79, %586 : vector<1x128xf32>
    %cst_123 = arith.constant 3.000000e-02 : f32
    %803 = vector.broadcast %cst_123 : f32 to vector<1x128xf32>
    %804 = arith.addf %803, %802 : vector<1x128xf32>
    %805 = arith.mulf %80, %593 : vector<1x128xf32>
    %806 = arith.addf %804, %805 : vector<1x128xf32>
    %807 = arith.mulf %84, %598 : vector<1x128xf32>
    %808 = arith.mulf %83, %626 : vector<1x128xf32>
    %809 = arith.addf %807, %808 : vector<1x128xf32>
    %810 = arith.mulf %84, %603 : vector<1x128xf32>
    %811 = arith.mulf %83, %629 : vector<1x128xf32>
    %812 = arith.addf %810, %811 : vector<1x128xf32>
    %813 = arith.mulf %84, %608 : vector<1x128xf32>
    %814 = arith.mulf %83, %632 : vector<1x128xf32>
    %815 = arith.addf %813, %814 : vector<1x128xf32>
    %816 = arith.mulf %186, %598 : vector<1x128xf32>
    %817 = arith.mulf %80, %613 : vector<1x128xf32>
    %818 = arith.addf %816, %817 : vector<1x128xf32>
    %819 = arith.mulf %187, %626 : vector<1x128xf32>
    %820 = arith.addf %818, %819 : vector<1x128xf32>
    %821 = arith.mulf %186, %603 : vector<1x128xf32>
    %822 = arith.mulf %80, %618 : vector<1x128xf32>
    %823 = arith.addf %821, %822 : vector<1x128xf32>
    %824 = arith.mulf %187, %629 : vector<1x128xf32>
    %825 = arith.addf %823, %824 : vector<1x128xf32>
    %826 = arith.mulf %186, %608 : vector<1x128xf32>
    %827 = arith.mulf %80, %623 : vector<1x128xf32>
    %828 = arith.addf %826, %827 : vector<1x128xf32>
    %829 = arith.mulf %187, %632 : vector<1x128xf32>
    %830 = arith.addf %828, %829 : vector<1x128xf32>
    %831 = arith.mulf %188, %598 : vector<1x128xf32>
    %832 = arith.mulf %79, %613 : vector<1x128xf32>
    %833 = arith.addf %831, %832 : vector<1x128xf32>
    %834 = arith.mulf %189, %626 : vector<1x128xf32>
    %835 = arith.addf %833, %834 : vector<1x128xf32>
    %836 = arith.mulf %188, %603 : vector<1x128xf32>
    %837 = arith.mulf %79, %618 : vector<1x128xf32>
    %838 = arith.addf %836, %837 : vector<1x128xf32>
    %839 = arith.mulf %189, %629 : vector<1x128xf32>
    %840 = arith.addf %838, %839 : vector<1x128xf32>
    %841 = arith.mulf %188, %608 : vector<1x128xf32>
    %842 = arith.mulf %79, %623 : vector<1x128xf32>
    %843 = arith.addf %841, %842 : vector<1x128xf32>
    %844 = arith.mulf %189, %632 : vector<1x128xf32>
    %845 = arith.addf %843, %844 : vector<1x128xf32>
    %846 = arith.mulf %84, %638 : vector<1x128xf32>
    %cst_124 = arith.constant 0.00999999977 : f32
    %847 = vector.broadcast %cst_124 : f32 to vector<1x128xf32>
    %848 = arith.addf %847, %846 : vector<1x128xf32>
    %849 = arith.mulf %83, %649 : vector<1x128xf32>
    %850 = arith.addf %848, %849 : vector<1x128xf32>
    %851 = arith.mulf %186, %638 : vector<1x128xf32>
    %cst_125 = arith.constant 2.000000e-02 : f32
    %852 = vector.broadcast %cst_125 : f32 to vector<1x128xf32>
    %853 = arith.addf %852, %851 : vector<1x128xf32>
    %854 = arith.mulf %80, %644 : vector<1x128xf32>
    %855 = arith.addf %853, %854 : vector<1x128xf32>
    %856 = arith.mulf %187, %649 : vector<1x128xf32>
    %857 = arith.addf %855, %856 : vector<1x128xf32>
    %858 = arith.mulf %188, %638 : vector<1x128xf32>
    %cst_126 = arith.constant 3.000000e-02 : f32
    %859 = vector.broadcast %cst_126 : f32 to vector<1x128xf32>
    %860 = arith.addf %859, %858 : vector<1x128xf32>
    %861 = arith.mulf %79, %644 : vector<1x128xf32>
    %862 = arith.addf %860, %861 : vector<1x128xf32>
    %863 = arith.mulf %189, %649 : vector<1x128xf32>
    %864 = arith.addf %862, %863 : vector<1x128xf32>
    %865 = arith.mulf %190, %654 : vector<1x128xf32>
    %866 = arith.mulf %191, %669 : vector<1x128xf32>
    %867 = arith.addf %865, %866 : vector<1x128xf32>
    %868 = arith.mulf %83, %684 : vector<1x128xf32>
    %869 = arith.addf %867, %868 : vector<1x128xf32>
    %870 = arith.mulf %190, %659 : vector<1x128xf32>
    %871 = arith.mulf %191, %674 : vector<1x128xf32>
    %872 = arith.addf %870, %871 : vector<1x128xf32>
    %873 = arith.mulf %83, %689 : vector<1x128xf32>
    %874 = arith.addf %872, %873 : vector<1x128xf32>
    %875 = arith.mulf %190, %664 : vector<1x128xf32>
    %876 = arith.mulf %191, %679 : vector<1x128xf32>
    %877 = arith.addf %875, %876 : vector<1x128xf32>
    %878 = arith.mulf %83, %694 : vector<1x128xf32>
    %879 = arith.addf %877, %878 : vector<1x128xf32>
    %880 = arith.mulf %454, %654 : vector<1x128xf32>
    %881 = arith.mulf %457, %669 : vector<1x128xf32>
    %882 = arith.addf %880, %881 : vector<1x128xf32>
    %883 = arith.mulf %458, %684 : vector<1x128xf32>
    %884 = arith.addf %882, %883 : vector<1x128xf32>
    %885 = arith.mulf %454, %659 : vector<1x128xf32>
    %886 = arith.mulf %457, %674 : vector<1x128xf32>
    %887 = arith.addf %885, %886 : vector<1x128xf32>
    %888 = arith.mulf %458, %689 : vector<1x128xf32>
    %889 = arith.addf %887, %888 : vector<1x128xf32>
    %890 = arith.mulf %454, %664 : vector<1x128xf32>
    %891 = arith.mulf %457, %679 : vector<1x128xf32>
    %892 = arith.addf %890, %891 : vector<1x128xf32>
    %893 = arith.mulf %458, %694 : vector<1x128xf32>
    %894 = arith.addf %892, %893 : vector<1x128xf32>
    %895 = arith.mulf %461, %654 : vector<1x128xf32>
    %896 = arith.mulf %464, %669 : vector<1x128xf32>
    %897 = arith.addf %895, %896 : vector<1x128xf32>
    %898 = arith.mulf %465, %684 : vector<1x128xf32>
    %899 = arith.addf %897, %898 : vector<1x128xf32>
    %900 = arith.mulf %461, %659 : vector<1x128xf32>
    %901 = arith.mulf %464, %674 : vector<1x128xf32>
    %902 = arith.addf %900, %901 : vector<1x128xf32>
    %903 = arith.mulf %465, %689 : vector<1x128xf32>
    %904 = arith.addf %902, %903 : vector<1x128xf32>
    %905 = arith.mulf %461, %664 : vector<1x128xf32>
    %906 = arith.mulf %464, %679 : vector<1x128xf32>
    %907 = arith.addf %905, %906 : vector<1x128xf32>
    %908 = arith.mulf %465, %694 : vector<1x128xf32>
    %909 = arith.addf %907, %908 : vector<1x128xf32>
    %910 = arith.mulf %190, %701 : vector<1x128xf32>
    %911 = arith.addf %467, %910 : vector<1x128xf32>
    %912 = arith.mulf %191, %707 : vector<1x128xf32>
    %913 = arith.addf %911, %912 : vector<1x128xf32>
    %914 = arith.mulf %83, %713 : vector<1x128xf32>
    %915 = arith.addf %913, %914 : vector<1x128xf32>
    %916 = arith.mulf %454, %701 : vector<1x128xf32>
    %917 = arith.addf %473, %916 : vector<1x128xf32>
    %918 = arith.mulf %457, %707 : vector<1x128xf32>
    %919 = arith.addf %917, %918 : vector<1x128xf32>
    %920 = arith.mulf %458, %713 : vector<1x128xf32>
    %921 = arith.addf %919, %920 : vector<1x128xf32>
    %922 = arith.mulf %461, %701 : vector<1x128xf32>
    %923 = arith.addf %479, %922 : vector<1x128xf32>
    %924 = arith.mulf %464, %707 : vector<1x128xf32>
    %925 = arith.addf %923, %924 : vector<1x128xf32>
    %926 = arith.mulf %465, %713 : vector<1x128xf32>
    %927 = arith.addf %925, %926 : vector<1x128xf32>
    %928 = arith.mulf %480, %718 : vector<1x128xf32>
    %929 = arith.mulf %483, %733 : vector<1x128xf32>
    %930 = arith.addf %928, %929 : vector<1x128xf32>
    %931 = arith.mulf %486, %748 : vector<1x128xf32>
    %932 = arith.addf %930, %931 : vector<1x128xf32>
    %933 = arith.mulf %480, %723 : vector<1x128xf32>
    %934 = arith.mulf %483, %738 : vector<1x128xf32>
    %935 = arith.addf %933, %934 : vector<1x128xf32>
    %936 = arith.mulf %486, %753 : vector<1x128xf32>
    %937 = arith.addf %935, %936 : vector<1x128xf32>
    %938 = arith.mulf %480, %728 : vector<1x128xf32>
    %939 = arith.mulf %483, %743 : vector<1x128xf32>
    %940 = arith.addf %938, %939 : vector<1x128xf32>
    %941 = arith.mulf %486, %758 : vector<1x128xf32>
    %942 = arith.addf %940, %941 : vector<1x128xf32>
    %943 = arith.mulf %489, %718 : vector<1x128xf32>
    %944 = arith.mulf %494, %733 : vector<1x128xf32>
    %945 = arith.addf %943, %944 : vector<1x128xf32>
    %946 = arith.mulf %499, %748 : vector<1x128xf32>
    %947 = arith.addf %945, %946 : vector<1x128xf32>
    %948 = arith.mulf %489, %723 : vector<1x128xf32>
    %949 = arith.mulf %494, %738 : vector<1x128xf32>
    %950 = arith.addf %948, %949 : vector<1x128xf32>
    %951 = arith.mulf %499, %753 : vector<1x128xf32>
    %952 = arith.addf %950, %951 : vector<1x128xf32>
    %953 = arith.mulf %489, %728 : vector<1x128xf32>
    %954 = arith.mulf %494, %743 : vector<1x128xf32>
    %955 = arith.addf %953, %954 : vector<1x128xf32>
    %956 = arith.mulf %499, %758 : vector<1x128xf32>
    %957 = arith.addf %955, %956 : vector<1x128xf32>
    %958 = arith.mulf %502, %718 : vector<1x128xf32>
    %959 = arith.mulf %507, %733 : vector<1x128xf32>
    %960 = arith.addf %958, %959 : vector<1x128xf32>
    %961 = arith.mulf %512, %748 : vector<1x128xf32>
    %962 = arith.addf %960, %961 : vector<1x128xf32>
    %963 = arith.mulf %502, %723 : vector<1x128xf32>
    %964 = arith.mulf %507, %738 : vector<1x128xf32>
    %965 = arith.addf %963, %964 : vector<1x128xf32>
    %966 = arith.mulf %512, %753 : vector<1x128xf32>
    %967 = arith.addf %965, %966 : vector<1x128xf32>
    %968 = arith.mulf %502, %728 : vector<1x128xf32>
    %969 = arith.mulf %507, %743 : vector<1x128xf32>
    %970 = arith.addf %968, %969 : vector<1x128xf32>
    %971 = arith.mulf %512, %758 : vector<1x128xf32>
    %972 = arith.addf %970, %971 : vector<1x128xf32>
    %973 = arith.mulf %480, %764 : vector<1x128xf32>
    %974 = arith.addf %518, %973 : vector<1x128xf32>
    %975 = arith.mulf %483, %770 : vector<1x128xf32>
    %976 = arith.addf %974, %975 : vector<1x128xf32>
    %977 = arith.mulf %486, %776 : vector<1x128xf32>
    %978 = arith.addf %976, %977 : vector<1x128xf32>
    %979 = arith.mulf %489, %764 : vector<1x128xf32>
    %980 = arith.addf %526, %979 : vector<1x128xf32>
    %981 = arith.mulf %494, %770 : vector<1x128xf32>
    %982 = arith.addf %980, %981 : vector<1x128xf32>
    %983 = arith.mulf %499, %776 : vector<1x128xf32>
    %984 = arith.addf %982, %983 : vector<1x128xf32>
    %985 = arith.mulf %502, %764 : vector<1x128xf32>
    %986 = arith.addf %534, %985 : vector<1x128xf32>
    %987 = arith.mulf %507, %770 : vector<1x128xf32>
    %988 = arith.addf %986, %987 : vector<1x128xf32>
    %989 = arith.mulf %512, %776 : vector<1x128xf32>
    %990 = arith.addf %988, %989 : vector<1x128xf32>
    %991 = arith.mulf %64, %80 : vector<1x128xf32>
    %992 = arith.mulf %66, %79 : vector<1x128xf32>
    %993 = arith.addf %991, %992 : vector<1x128xf32>
    %994 = arith.mulf %64, %82 : vector<1x128xf32>
    %995 = arith.mulf %66, %80 : vector<1x128xf32>
    %996 = arith.addf %994, %995 : vector<1x128xf32>
    %997 = arith.mulf %70, %80 : vector<1x128xf32>
    %998 = arith.mulf %72, %79 : vector<1x128xf32>
    %999 = arith.addf %997, %998 : vector<1x128xf32>
    %1000 = arith.mulf %70, %82 : vector<1x128xf32>
    %1001 = arith.mulf %72, %80 : vector<1x128xf32>
    %1002 = arith.addf %1000, %1001 : vector<1x128xf32>
    %1003 = arith.mulf %76, %80 : vector<1x128xf32>
    %1004 = arith.mulf %78, %79 : vector<1x128xf32>
    %1005 = arith.addf %1003, %1004 : vector<1x128xf32>
    %1006 = arith.mulf %76, %82 : vector<1x128xf32>
    %1007 = arith.mulf %78, %80 : vector<1x128xf32>
    %1008 = arith.addf %1006, %1007 : vector<1x128xf32>
    %cst_127 = arith.constant 0.00999999977 : f32
    %1009 = vector.broadcast %cst_127 : f32 to vector<1x128xf32>
    %1010 = arith.mulf %1009, %62 : vector<1x128xf32>
    %1011 = arith.addf %3, %1010 : vector<1x128xf32>
    %cst_128 = arith.constant 2.000000e-02 : f32
    %1012 = vector.broadcast %cst_128 : f32 to vector<1x128xf32>
    %1013 = arith.mulf %1012, %64 : vector<1x128xf32>
    %1014 = arith.addf %1011, %1013 : vector<1x128xf32>
    %cst_129 = arith.constant 3.000000e-02 : f32
    %1015 = vector.broadcast %cst_129 : f32 to vector<1x128xf32>
    %1016 = arith.mulf %1015, %66 : vector<1x128xf32>
    %1017 = arith.addf %1014, %1016 : vector<1x128xf32>
    %cst_130 = arith.constant 0.00999999977 : f32
    %1018 = vector.broadcast %cst_130 : f32 to vector<1x128xf32>
    %1019 = arith.mulf %1018, %68 : vector<1x128xf32>
    %1020 = arith.addf %4, %1019 : vector<1x128xf32>
    %cst_131 = arith.constant 2.000000e-02 : f32
    %1021 = vector.broadcast %cst_131 : f32 to vector<1x128xf32>
    %1022 = arith.mulf %1021, %70 : vector<1x128xf32>
    %1023 = arith.addf %1020, %1022 : vector<1x128xf32>
    %cst_132 = arith.constant 3.000000e-02 : f32
    %1024 = vector.broadcast %cst_132 : f32 to vector<1x128xf32>
    %1025 = arith.mulf %1024, %72 : vector<1x128xf32>
    %1026 = arith.addf %1023, %1025 : vector<1x128xf32>
    %cst_133 = arith.constant 0.00999999977 : f32
    %1027 = vector.broadcast %cst_133 : f32 to vector<1x128xf32>
    %1028 = arith.mulf %1027, %74 : vector<1x128xf32>
    %1029 = arith.addf %5, %1028 : vector<1x128xf32>
    %cst_134 = arith.constant 2.000000e-02 : f32
    %1030 = vector.broadcast %cst_134 : f32 to vector<1x128xf32>
    %1031 = arith.mulf %1030, %76 : vector<1x128xf32>
    %1032 = arith.addf %1029, %1031 : vector<1x128xf32>
    %cst_135 = arith.constant 3.000000e-02 : f32
    %1033 = vector.broadcast %cst_135 : f32 to vector<1x128xf32>
    %1034 = arith.mulf %1033, %78 : vector<1x128xf32>
    %1035 = arith.addf %1032, %1034 : vector<1x128xf32>
    %1036 = arith.mulf %62, %84 : vector<1x128xf32>
    %1037 = arith.mulf %64, %186 : vector<1x128xf32>
    %1038 = arith.addf %1036, %1037 : vector<1x128xf32>
    %1039 = arith.mulf %66, %188 : vector<1x128xf32>
    %1040 = arith.addf %1038, %1039 : vector<1x128xf32>
    %1041 = arith.mulf %64, %80 : vector<1x128xf32>
    %1042 = arith.mulf %66, %79 : vector<1x128xf32>
    %1043 = arith.addf %1041, %1042 : vector<1x128xf32>
    %1044 = arith.mulf %62, %83 : vector<1x128xf32>
    %1045 = arith.mulf %64, %187 : vector<1x128xf32>
    %1046 = arith.addf %1044, %1045 : vector<1x128xf32>
    %1047 = arith.mulf %66, %189 : vector<1x128xf32>
    %1048 = arith.addf %1046, %1047 : vector<1x128xf32>
    %1049 = arith.mulf %68, %84 : vector<1x128xf32>
    %1050 = arith.mulf %70, %186 : vector<1x128xf32>
    %1051 = arith.addf %1049, %1050 : vector<1x128xf32>
    %1052 = arith.mulf %72, %188 : vector<1x128xf32>
    %1053 = arith.addf %1051, %1052 : vector<1x128xf32>
    %1054 = arith.mulf %70, %80 : vector<1x128xf32>
    %1055 = arith.mulf %72, %79 : vector<1x128xf32>
    %1056 = arith.addf %1054, %1055 : vector<1x128xf32>
    %1057 = arith.mulf %68, %83 : vector<1x128xf32>
    %1058 = arith.mulf %70, %187 : vector<1x128xf32>
    %1059 = arith.addf %1057, %1058 : vector<1x128xf32>
    %1060 = arith.mulf %72, %189 : vector<1x128xf32>
    %1061 = arith.addf %1059, %1060 : vector<1x128xf32>
    %1062 = arith.mulf %74, %84 : vector<1x128xf32>
    %1063 = arith.mulf %76, %186 : vector<1x128xf32>
    %1064 = arith.addf %1062, %1063 : vector<1x128xf32>
    %1065 = arith.mulf %78, %188 : vector<1x128xf32>
    %1066 = arith.addf %1064, %1065 : vector<1x128xf32>
    %1067 = arith.mulf %76, %80 : vector<1x128xf32>
    %1068 = arith.mulf %78, %79 : vector<1x128xf32>
    %1069 = arith.addf %1067, %1068 : vector<1x128xf32>
    %1070 = arith.mulf %74, %83 : vector<1x128xf32>
    %1071 = arith.mulf %76, %187 : vector<1x128xf32>
    %1072 = arith.addf %1070, %1071 : vector<1x128xf32>
    %1073 = arith.mulf %78, %189 : vector<1x128xf32>
    %1074 = arith.addf %1072, %1073 : vector<1x128xf32>
    %cst_136 = arith.constant 0.00999999977 : f32
    %1075 = vector.broadcast %cst_136 : f32 to vector<1x128xf32>
    %1076 = arith.mulf %1075, %62 : vector<1x128xf32>
    %1077 = arith.addf %3, %1076 : vector<1x128xf32>
    %cst_137 = arith.constant 2.000000e-02 : f32
    %1078 = vector.broadcast %cst_137 : f32 to vector<1x128xf32>
    %1079 = arith.mulf %1078, %64 : vector<1x128xf32>
    %1080 = arith.addf %1077, %1079 : vector<1x128xf32>
    %cst_138 = arith.constant 3.000000e-02 : f32
    %1081 = vector.broadcast %cst_138 : f32 to vector<1x128xf32>
    %1082 = arith.mulf %1081, %66 : vector<1x128xf32>
    %1083 = arith.addf %1080, %1082 : vector<1x128xf32>
    %cst_139 = arith.constant 0.00999999977 : f32
    %1084 = vector.broadcast %cst_139 : f32 to vector<1x128xf32>
    %1085 = arith.mulf %1084, %68 : vector<1x128xf32>
    %1086 = arith.addf %4, %1085 : vector<1x128xf32>
    %cst_140 = arith.constant 2.000000e-02 : f32
    %1087 = vector.broadcast %cst_140 : f32 to vector<1x128xf32>
    %1088 = arith.mulf %1087, %70 : vector<1x128xf32>
    %1089 = arith.addf %1086, %1088 : vector<1x128xf32>
    %cst_141 = arith.constant 3.000000e-02 : f32
    %1090 = vector.broadcast %cst_141 : f32 to vector<1x128xf32>
    %1091 = arith.mulf %1090, %72 : vector<1x128xf32>
    %1092 = arith.addf %1089, %1091 : vector<1x128xf32>
    %cst_142 = arith.constant 0.00999999977 : f32
    %1093 = vector.broadcast %cst_142 : f32 to vector<1x128xf32>
    %1094 = arith.mulf %1093, %74 : vector<1x128xf32>
    %1095 = arith.addf %5, %1094 : vector<1x128xf32>
    %cst_143 = arith.constant 2.000000e-02 : f32
    %1096 = vector.broadcast %cst_143 : f32 to vector<1x128xf32>
    %1097 = arith.mulf %1096, %76 : vector<1x128xf32>
    %1098 = arith.addf %1095, %1097 : vector<1x128xf32>
    %cst_144 = arith.constant 3.000000e-02 : f32
    %1099 = vector.broadcast %cst_144 : f32 to vector<1x128xf32>
    %1100 = arith.mulf %1099, %78 : vector<1x128xf32>
    %1101 = arith.addf %1098, %1100 : vector<1x128xf32>
    %1102 = arith.mulf %62, %190 : vector<1x128xf32>
    %1103 = arith.mulf %64, %454 : vector<1x128xf32>
    %1104 = arith.addf %1102, %1103 : vector<1x128xf32>
    %1105 = arith.mulf %66, %461 : vector<1x128xf32>
    %1106 = arith.addf %1104, %1105 : vector<1x128xf32>
    %1107 = arith.mulf %62, %191 : vector<1x128xf32>
    %1108 = arith.mulf %64, %457 : vector<1x128xf32>
    %1109 = arith.addf %1107, %1108 : vector<1x128xf32>
    %1110 = arith.mulf %66, %464 : vector<1x128xf32>
    %1111 = arith.addf %1109, %1110 : vector<1x128xf32>
    %1112 = arith.mulf %62, %83 : vector<1x128xf32>
    %1113 = arith.mulf %64, %458 : vector<1x128xf32>
    %1114 = arith.addf %1112, %1113 : vector<1x128xf32>
    %1115 = arith.mulf %66, %465 : vector<1x128xf32>
    %1116 = arith.addf %1114, %1115 : vector<1x128xf32>
    %1117 = arith.mulf %68, %190 : vector<1x128xf32>
    %1118 = arith.mulf %70, %454 : vector<1x128xf32>
    %1119 = arith.addf %1117, %1118 : vector<1x128xf32>
    %1120 = arith.mulf %72, %461 : vector<1x128xf32>
    %1121 = arith.addf %1119, %1120 : vector<1x128xf32>
    %1122 = arith.mulf %68, %191 : vector<1x128xf32>
    %1123 = arith.mulf %70, %457 : vector<1x128xf32>
    %1124 = arith.addf %1122, %1123 : vector<1x128xf32>
    %1125 = arith.mulf %72, %464 : vector<1x128xf32>
    %1126 = arith.addf %1124, %1125 : vector<1x128xf32>
    %1127 = arith.mulf %68, %83 : vector<1x128xf32>
    %1128 = arith.mulf %70, %458 : vector<1x128xf32>
    %1129 = arith.addf %1127, %1128 : vector<1x128xf32>
    %1130 = arith.mulf %72, %465 : vector<1x128xf32>
    %1131 = arith.addf %1129, %1130 : vector<1x128xf32>
    %1132 = arith.mulf %74, %190 : vector<1x128xf32>
    %1133 = arith.mulf %76, %454 : vector<1x128xf32>
    %1134 = arith.addf %1132, %1133 : vector<1x128xf32>
    %1135 = arith.mulf %78, %461 : vector<1x128xf32>
    %1136 = arith.addf %1134, %1135 : vector<1x128xf32>
    %1137 = arith.mulf %74, %191 : vector<1x128xf32>
    %1138 = arith.mulf %76, %457 : vector<1x128xf32>
    %1139 = arith.addf %1137, %1138 : vector<1x128xf32>
    %1140 = arith.mulf %78, %464 : vector<1x128xf32>
    %1141 = arith.addf %1139, %1140 : vector<1x128xf32>
    %1142 = arith.mulf %74, %83 : vector<1x128xf32>
    %1143 = arith.mulf %76, %458 : vector<1x128xf32>
    %1144 = arith.addf %1142, %1143 : vector<1x128xf32>
    %1145 = arith.mulf %78, %465 : vector<1x128xf32>
    %1146 = arith.addf %1144, %1145 : vector<1x128xf32>
    %1147 = arith.mulf %62, %467 : vector<1x128xf32>
    %1148 = arith.addf %3, %1147 : vector<1x128xf32>
    %1149 = arith.mulf %64, %473 : vector<1x128xf32>
    %1150 = arith.addf %1148, %1149 : vector<1x128xf32>
    %1151 = arith.mulf %66, %479 : vector<1x128xf32>
    %1152 = arith.addf %1150, %1151 : vector<1x128xf32>
    %1153 = arith.mulf %68, %467 : vector<1x128xf32>
    %1154 = arith.addf %4, %1153 : vector<1x128xf32>
    %1155 = arith.mulf %70, %473 : vector<1x128xf32>
    %1156 = arith.addf %1154, %1155 : vector<1x128xf32>
    %1157 = arith.mulf %72, %479 : vector<1x128xf32>
    %1158 = arith.addf %1156, %1157 : vector<1x128xf32>
    %1159 = arith.mulf %74, %467 : vector<1x128xf32>
    %1160 = arith.addf %5, %1159 : vector<1x128xf32>
    %1161 = arith.mulf %76, %473 : vector<1x128xf32>
    %1162 = arith.addf %1160, %1161 : vector<1x128xf32>
    %1163 = arith.mulf %78, %479 : vector<1x128xf32>
    %1164 = arith.addf %1162, %1163 : vector<1x128xf32>
    %1165 = arith.mulf %62, %480 : vector<1x128xf32>
    %1166 = arith.mulf %64, %489 : vector<1x128xf32>
    %1167 = arith.addf %1165, %1166 : vector<1x128xf32>
    %1168 = arith.mulf %66, %502 : vector<1x128xf32>
    %1169 = arith.addf %1167, %1168 : vector<1x128xf32>
    %1170 = arith.mulf %62, %483 : vector<1x128xf32>
    %1171 = arith.mulf %64, %494 : vector<1x128xf32>
    %1172 = arith.addf %1170, %1171 : vector<1x128xf32>
    %1173 = arith.mulf %66, %507 : vector<1x128xf32>
    %1174 = arith.addf %1172, %1173 : vector<1x128xf32>
    %1175 = arith.mulf %62, %486 : vector<1x128xf32>
    %1176 = arith.mulf %64, %499 : vector<1x128xf32>
    %1177 = arith.addf %1175, %1176 : vector<1x128xf32>
    %1178 = arith.mulf %66, %512 : vector<1x128xf32>
    %1179 = arith.addf %1177, %1178 : vector<1x128xf32>
    %1180 = arith.mulf %68, %480 : vector<1x128xf32>
    %1181 = arith.mulf %70, %489 : vector<1x128xf32>
    %1182 = arith.addf %1180, %1181 : vector<1x128xf32>
    %1183 = arith.mulf %72, %502 : vector<1x128xf32>
    %1184 = arith.addf %1182, %1183 : vector<1x128xf32>
    %1185 = arith.mulf %68, %483 : vector<1x128xf32>
    %1186 = arith.mulf %70, %494 : vector<1x128xf32>
    %1187 = arith.addf %1185, %1186 : vector<1x128xf32>
    %1188 = arith.mulf %72, %507 : vector<1x128xf32>
    %1189 = arith.addf %1187, %1188 : vector<1x128xf32>
    %1190 = arith.mulf %68, %486 : vector<1x128xf32>
    %1191 = arith.mulf %70, %499 : vector<1x128xf32>
    %1192 = arith.addf %1190, %1191 : vector<1x128xf32>
    %1193 = arith.mulf %72, %512 : vector<1x128xf32>
    %1194 = arith.addf %1192, %1193 : vector<1x128xf32>
    %1195 = arith.mulf %74, %480 : vector<1x128xf32>
    %1196 = arith.mulf %76, %489 : vector<1x128xf32>
    %1197 = arith.addf %1195, %1196 : vector<1x128xf32>
    %1198 = arith.mulf %78, %502 : vector<1x128xf32>
    %1199 = arith.addf %1197, %1198 : vector<1x128xf32>
    %1200 = arith.mulf %74, %483 : vector<1x128xf32>
    %1201 = arith.mulf %76, %494 : vector<1x128xf32>
    %1202 = arith.addf %1200, %1201 : vector<1x128xf32>
    %1203 = arith.mulf %78, %507 : vector<1x128xf32>
    %1204 = arith.addf %1202, %1203 : vector<1x128xf32>
    %1205 = arith.mulf %74, %486 : vector<1x128xf32>
    %1206 = arith.mulf %76, %499 : vector<1x128xf32>
    %1207 = arith.addf %1205, %1206 : vector<1x128xf32>
    %1208 = arith.mulf %78, %512 : vector<1x128xf32>
    %1209 = arith.addf %1207, %1208 : vector<1x128xf32>
    %1210 = arith.mulf %62, %518 : vector<1x128xf32>
    %1211 = arith.addf %3, %1210 : vector<1x128xf32>
    %1212 = arith.mulf %64, %526 : vector<1x128xf32>
    %1213 = arith.addf %1211, %1212 : vector<1x128xf32>
    %1214 = arith.mulf %66, %534 : vector<1x128xf32>
    %1215 = arith.addf %1213, %1214 : vector<1x128xf32>
    %1216 = arith.mulf %68, %518 : vector<1x128xf32>
    %1217 = arith.addf %4, %1216 : vector<1x128xf32>
    %1218 = arith.mulf %70, %526 : vector<1x128xf32>
    %1219 = arith.addf %1217, %1218 : vector<1x128xf32>
    %1220 = arith.mulf %72, %534 : vector<1x128xf32>
    %1221 = arith.addf %1219, %1220 : vector<1x128xf32>
    %1222 = arith.mulf %74, %518 : vector<1x128xf32>
    %1223 = arith.addf %5, %1222 : vector<1x128xf32>
    %1224 = arith.mulf %76, %526 : vector<1x128xf32>
    %1225 = arith.addf %1223, %1224 : vector<1x128xf32>
    %1226 = arith.mulf %78, %534 : vector<1x128xf32>
    %1227 = arith.addf %1225, %1226 : vector<1x128xf32>
    %1228 = arith.mulf %62, %539 : vector<1x128xf32>
    %1229 = arith.mulf %64, %779 : vector<1x128xf32>
    %1230 = arith.addf %1228, %1229 : vector<1x128xf32>
    %1231 = arith.mulf %66, %788 : vector<1x128xf32>
    %1232 = arith.addf %1230, %1231 : vector<1x128xf32>
    %1233 = arith.mulf %62, %544 : vector<1x128xf32>
    %1234 = arith.mulf %64, %782 : vector<1x128xf32>
    %1235 = arith.addf %1233, %1234 : vector<1x128xf32>
    %1236 = arith.mulf %66, %791 : vector<1x128xf32>
    %1237 = arith.addf %1235, %1236 : vector<1x128xf32>
    %1238 = arith.mulf %62, %549 : vector<1x128xf32>
    %1239 = arith.mulf %64, %785 : vector<1x128xf32>
    %1240 = arith.addf %1238, %1239 : vector<1x128xf32>
    %1241 = arith.mulf %66, %794 : vector<1x128xf32>
    %1242 = arith.addf %1240, %1241 : vector<1x128xf32>
    %1243 = arith.mulf %68, %539 : vector<1x128xf32>
    %1244 = arith.mulf %70, %779 : vector<1x128xf32>
    %1245 = arith.addf %1243, %1244 : vector<1x128xf32>
    %1246 = arith.mulf %72, %788 : vector<1x128xf32>
    %1247 = arith.addf %1245, %1246 : vector<1x128xf32>
    %1248 = arith.mulf %68, %544 : vector<1x128xf32>
    %1249 = arith.mulf %70, %782 : vector<1x128xf32>
    %1250 = arith.addf %1248, %1249 : vector<1x128xf32>
    %1251 = arith.mulf %72, %791 : vector<1x128xf32>
    %1252 = arith.addf %1250, %1251 : vector<1x128xf32>
    %1253 = arith.mulf %68, %549 : vector<1x128xf32>
    %1254 = arith.mulf %70, %785 : vector<1x128xf32>
    %1255 = arith.addf %1253, %1254 : vector<1x128xf32>
    %1256 = arith.mulf %72, %794 : vector<1x128xf32>
    %1257 = arith.addf %1255, %1256 : vector<1x128xf32>
    %1258 = arith.mulf %74, %539 : vector<1x128xf32>
    %1259 = arith.mulf %76, %779 : vector<1x128xf32>
    %1260 = arith.addf %1258, %1259 : vector<1x128xf32>
    %1261 = arith.mulf %78, %788 : vector<1x128xf32>
    %1262 = arith.addf %1260, %1261 : vector<1x128xf32>
    %1263 = arith.mulf %74, %544 : vector<1x128xf32>
    %1264 = arith.mulf %76, %782 : vector<1x128xf32>
    %1265 = arith.addf %1263, %1264 : vector<1x128xf32>
    %1266 = arith.mulf %78, %791 : vector<1x128xf32>
    %1267 = arith.addf %1265, %1266 : vector<1x128xf32>
    %1268 = arith.mulf %74, %549 : vector<1x128xf32>
    %1269 = arith.mulf %76, %785 : vector<1x128xf32>
    %1270 = arith.addf %1268, %1269 : vector<1x128xf32>
    %1271 = arith.mulf %78, %794 : vector<1x128xf32>
    %1272 = arith.addf %1270, %1271 : vector<1x128xf32>
    %1273 = arith.mulf %62, %796 : vector<1x128xf32>
    %1274 = arith.addf %3, %1273 : vector<1x128xf32>
    %1275 = arith.mulf %64, %801 : vector<1x128xf32>
    %1276 = arith.addf %1274, %1275 : vector<1x128xf32>
    %1277 = arith.mulf %66, %806 : vector<1x128xf32>
    %1278 = arith.addf %1276, %1277 : vector<1x128xf32>
    %1279 = arith.mulf %68, %796 : vector<1x128xf32>
    %1280 = arith.addf %4, %1279 : vector<1x128xf32>
    %1281 = arith.mulf %70, %801 : vector<1x128xf32>
    %1282 = arith.addf %1280, %1281 : vector<1x128xf32>
    %1283 = arith.mulf %72, %806 : vector<1x128xf32>
    %1284 = arith.addf %1282, %1283 : vector<1x128xf32>
    %1285 = arith.mulf %74, %796 : vector<1x128xf32>
    %1286 = arith.addf %5, %1285 : vector<1x128xf32>
    %1287 = arith.mulf %76, %801 : vector<1x128xf32>
    %1288 = arith.addf %1286, %1287 : vector<1x128xf32>
    %1289 = arith.mulf %78, %806 : vector<1x128xf32>
    %1290 = arith.addf %1288, %1289 : vector<1x128xf32>
    %1291 = arith.mulf %62, %809 : vector<1x128xf32>
    %1292 = arith.mulf %64, %820 : vector<1x128xf32>
    %1293 = arith.addf %1291, %1292 : vector<1x128xf32>
    %1294 = arith.mulf %66, %835 : vector<1x128xf32>
    %1295 = arith.addf %1293, %1294 : vector<1x128xf32>
    %1296 = arith.mulf %62, %812 : vector<1x128xf32>
    %1297 = arith.mulf %64, %825 : vector<1x128xf32>
    %1298 = arith.addf %1296, %1297 : vector<1x128xf32>
    %1299 = arith.mulf %66, %840 : vector<1x128xf32>
    %1300 = arith.addf %1298, %1299 : vector<1x128xf32>
    %1301 = arith.mulf %62, %815 : vector<1x128xf32>
    %1302 = arith.mulf %64, %830 : vector<1x128xf32>
    %1303 = arith.addf %1301, %1302 : vector<1x128xf32>
    %1304 = arith.mulf %66, %845 : vector<1x128xf32>
    %1305 = arith.addf %1303, %1304 : vector<1x128xf32>
    %1306 = arith.mulf %68, %809 : vector<1x128xf32>
    %1307 = arith.mulf %70, %820 : vector<1x128xf32>
    %1308 = arith.addf %1306, %1307 : vector<1x128xf32>
    %1309 = arith.mulf %72, %835 : vector<1x128xf32>
    %1310 = arith.addf %1308, %1309 : vector<1x128xf32>
    %1311 = arith.mulf %68, %812 : vector<1x128xf32>
    %1312 = arith.mulf %70, %825 : vector<1x128xf32>
    %1313 = arith.addf %1311, %1312 : vector<1x128xf32>
    %1314 = arith.mulf %72, %840 : vector<1x128xf32>
    %1315 = arith.addf %1313, %1314 : vector<1x128xf32>
    %1316 = arith.mulf %68, %815 : vector<1x128xf32>
    %1317 = arith.mulf %70, %830 : vector<1x128xf32>
    %1318 = arith.addf %1316, %1317 : vector<1x128xf32>
    %1319 = arith.mulf %72, %845 : vector<1x128xf32>
    %1320 = arith.addf %1318, %1319 : vector<1x128xf32>
    %1321 = arith.mulf %74, %809 : vector<1x128xf32>
    %1322 = arith.mulf %76, %820 : vector<1x128xf32>
    %1323 = arith.addf %1321, %1322 : vector<1x128xf32>
    %1324 = arith.mulf %78, %835 : vector<1x128xf32>
    %1325 = arith.addf %1323, %1324 : vector<1x128xf32>
    %1326 = arith.mulf %74, %812 : vector<1x128xf32>
    %1327 = arith.mulf %76, %825 : vector<1x128xf32>
    %1328 = arith.addf %1326, %1327 : vector<1x128xf32>
    %1329 = arith.mulf %78, %840 : vector<1x128xf32>
    %1330 = arith.addf %1328, %1329 : vector<1x128xf32>
    %1331 = arith.mulf %74, %815 : vector<1x128xf32>
    %1332 = arith.mulf %76, %830 : vector<1x128xf32>
    %1333 = arith.addf %1331, %1332 : vector<1x128xf32>
    %1334 = arith.mulf %78, %845 : vector<1x128xf32>
    %1335 = arith.addf %1333, %1334 : vector<1x128xf32>
    %1336 = arith.mulf %62, %850 : vector<1x128xf32>
    %1337 = arith.addf %3, %1336 : vector<1x128xf32>
    %1338 = arith.mulf %64, %857 : vector<1x128xf32>
    %1339 = arith.addf %1337, %1338 : vector<1x128xf32>
    %1340 = arith.mulf %66, %864 : vector<1x128xf32>
    %1341 = arith.addf %1339, %1340 : vector<1x128xf32>
    %1342 = arith.mulf %68, %850 : vector<1x128xf32>
    %1343 = arith.addf %4, %1342 : vector<1x128xf32>
    %1344 = arith.mulf %70, %857 : vector<1x128xf32>
    %1345 = arith.addf %1343, %1344 : vector<1x128xf32>
    %1346 = arith.mulf %72, %864 : vector<1x128xf32>
    %1347 = arith.addf %1345, %1346 : vector<1x128xf32>
    %1348 = arith.mulf %74, %850 : vector<1x128xf32>
    %1349 = arith.addf %5, %1348 : vector<1x128xf32>
    %1350 = arith.mulf %76, %857 : vector<1x128xf32>
    %1351 = arith.addf %1349, %1350 : vector<1x128xf32>
    %1352 = arith.mulf %78, %864 : vector<1x128xf32>
    %1353 = arith.addf %1351, %1352 : vector<1x128xf32>
    %1354 = arith.mulf %62, %869 : vector<1x128xf32>
    %1355 = arith.mulf %64, %884 : vector<1x128xf32>
    %1356 = arith.addf %1354, %1355 : vector<1x128xf32>
    %1357 = arith.mulf %66, %899 : vector<1x128xf32>
    %1358 = arith.addf %1356, %1357 : vector<1x128xf32>
    %1359 = arith.mulf %62, %874 : vector<1x128xf32>
    %1360 = arith.mulf %64, %889 : vector<1x128xf32>
    %1361 = arith.addf %1359, %1360 : vector<1x128xf32>
    %1362 = arith.mulf %66, %904 : vector<1x128xf32>
    %1363 = arith.addf %1361, %1362 : vector<1x128xf32>
    %1364 = arith.mulf %62, %879 : vector<1x128xf32>
    %1365 = arith.mulf %64, %894 : vector<1x128xf32>
    %1366 = arith.addf %1364, %1365 : vector<1x128xf32>
    %1367 = arith.mulf %66, %909 : vector<1x128xf32>
    %1368 = arith.addf %1366, %1367 : vector<1x128xf32>
    %1369 = arith.mulf %68, %869 : vector<1x128xf32>
    %1370 = arith.mulf %70, %884 : vector<1x128xf32>
    %1371 = arith.addf %1369, %1370 : vector<1x128xf32>
    %1372 = arith.mulf %72, %899 : vector<1x128xf32>
    %1373 = arith.addf %1371, %1372 : vector<1x128xf32>
    %1374 = arith.mulf %68, %874 : vector<1x128xf32>
    %1375 = arith.mulf %70, %889 : vector<1x128xf32>
    %1376 = arith.addf %1374, %1375 : vector<1x128xf32>
    %1377 = arith.mulf %72, %904 : vector<1x128xf32>
    %1378 = arith.addf %1376, %1377 : vector<1x128xf32>
    %1379 = arith.mulf %68, %879 : vector<1x128xf32>
    %1380 = arith.mulf %70, %894 : vector<1x128xf32>
    %1381 = arith.addf %1379, %1380 : vector<1x128xf32>
    %1382 = arith.mulf %72, %909 : vector<1x128xf32>
    %1383 = arith.addf %1381, %1382 : vector<1x128xf32>
    %1384 = arith.mulf %74, %869 : vector<1x128xf32>
    %1385 = arith.mulf %76, %884 : vector<1x128xf32>
    %1386 = arith.addf %1384, %1385 : vector<1x128xf32>
    %1387 = arith.mulf %78, %899 : vector<1x128xf32>
    %1388 = arith.addf %1386, %1387 : vector<1x128xf32>
    %1389 = arith.mulf %74, %874 : vector<1x128xf32>
    %1390 = arith.mulf %76, %889 : vector<1x128xf32>
    %1391 = arith.addf %1389, %1390 : vector<1x128xf32>
    %1392 = arith.mulf %78, %904 : vector<1x128xf32>
    %1393 = arith.addf %1391, %1392 : vector<1x128xf32>
    %1394 = arith.mulf %74, %879 : vector<1x128xf32>
    %1395 = arith.mulf %76, %894 : vector<1x128xf32>
    %1396 = arith.addf %1394, %1395 : vector<1x128xf32>
    %1397 = arith.mulf %78, %909 : vector<1x128xf32>
    %1398 = arith.addf %1396, %1397 : vector<1x128xf32>
    %1399 = arith.mulf %62, %915 : vector<1x128xf32>
    %1400 = arith.addf %3, %1399 : vector<1x128xf32>
    %1401 = arith.mulf %64, %921 : vector<1x128xf32>
    %1402 = arith.addf %1400, %1401 : vector<1x128xf32>
    %1403 = arith.mulf %66, %927 : vector<1x128xf32>
    %1404 = arith.addf %1402, %1403 : vector<1x128xf32>
    %1405 = arith.mulf %68, %915 : vector<1x128xf32>
    %1406 = arith.addf %4, %1405 : vector<1x128xf32>
    %1407 = arith.mulf %70, %921 : vector<1x128xf32>
    %1408 = arith.addf %1406, %1407 : vector<1x128xf32>
    %1409 = arith.mulf %72, %927 : vector<1x128xf32>
    %1410 = arith.addf %1408, %1409 : vector<1x128xf32>
    %1411 = arith.mulf %74, %915 : vector<1x128xf32>
    %1412 = arith.addf %5, %1411 : vector<1x128xf32>
    %1413 = arith.mulf %76, %921 : vector<1x128xf32>
    %1414 = arith.addf %1412, %1413 : vector<1x128xf32>
    %1415 = arith.mulf %78, %927 : vector<1x128xf32>
    %1416 = arith.addf %1414, %1415 : vector<1x128xf32>
    %1417 = arith.mulf %62, %932 : vector<1x128xf32>
    %1418 = arith.mulf %64, %947 : vector<1x128xf32>
    %1419 = arith.addf %1417, %1418 : vector<1x128xf32>
    %1420 = arith.mulf %66, %962 : vector<1x128xf32>
    %1421 = arith.addf %1419, %1420 : vector<1x128xf32>
    %1422 = arith.mulf %62, %937 : vector<1x128xf32>
    %1423 = arith.mulf %64, %952 : vector<1x128xf32>
    %1424 = arith.addf %1422, %1423 : vector<1x128xf32>
    %1425 = arith.mulf %66, %967 : vector<1x128xf32>
    %1426 = arith.addf %1424, %1425 : vector<1x128xf32>
    %1427 = arith.mulf %62, %942 : vector<1x128xf32>
    %1428 = arith.mulf %64, %957 : vector<1x128xf32>
    %1429 = arith.addf %1427, %1428 : vector<1x128xf32>
    %1430 = arith.mulf %66, %972 : vector<1x128xf32>
    %1431 = arith.addf %1429, %1430 : vector<1x128xf32>
    %1432 = arith.mulf %68, %932 : vector<1x128xf32>
    %1433 = arith.mulf %70, %947 : vector<1x128xf32>
    %1434 = arith.addf %1432, %1433 : vector<1x128xf32>
    %1435 = arith.mulf %72, %962 : vector<1x128xf32>
    %1436 = arith.addf %1434, %1435 : vector<1x128xf32>
    %1437 = arith.mulf %68, %937 : vector<1x128xf32>
    %1438 = arith.mulf %70, %952 : vector<1x128xf32>
    %1439 = arith.addf %1437, %1438 : vector<1x128xf32>
    %1440 = arith.mulf %72, %967 : vector<1x128xf32>
    %1441 = arith.addf %1439, %1440 : vector<1x128xf32>
    %1442 = arith.mulf %68, %942 : vector<1x128xf32>
    %1443 = arith.mulf %70, %957 : vector<1x128xf32>
    %1444 = arith.addf %1442, %1443 : vector<1x128xf32>
    %1445 = arith.mulf %72, %972 : vector<1x128xf32>
    %1446 = arith.addf %1444, %1445 : vector<1x128xf32>
    %1447 = arith.mulf %74, %932 : vector<1x128xf32>
    %1448 = arith.mulf %76, %947 : vector<1x128xf32>
    %1449 = arith.addf %1447, %1448 : vector<1x128xf32>
    %1450 = arith.mulf %78, %962 : vector<1x128xf32>
    %1451 = arith.addf %1449, %1450 : vector<1x128xf32>
    %1452 = arith.mulf %74, %937 : vector<1x128xf32>
    %1453 = arith.mulf %76, %952 : vector<1x128xf32>
    %1454 = arith.addf %1452, %1453 : vector<1x128xf32>
    %1455 = arith.mulf %78, %967 : vector<1x128xf32>
    %1456 = arith.addf %1454, %1455 : vector<1x128xf32>
    %1457 = arith.mulf %74, %942 : vector<1x128xf32>
    %1458 = arith.mulf %76, %957 : vector<1x128xf32>
    %1459 = arith.addf %1457, %1458 : vector<1x128xf32>
    %1460 = arith.mulf %78, %972 : vector<1x128xf32>
    %1461 = arith.addf %1459, %1460 : vector<1x128xf32>
    %1462 = arith.mulf %62, %978 : vector<1x128xf32>
    %1463 = arith.addf %3, %1462 : vector<1x128xf32>
    %1464 = arith.mulf %64, %984 : vector<1x128xf32>
    %1465 = arith.addf %1463, %1464 : vector<1x128xf32>
    %1466 = arith.mulf %66, %990 : vector<1x128xf32>
    %1467 = arith.addf %1465, %1466 : vector<1x128xf32>
    %1468 = arith.mulf %68, %978 : vector<1x128xf32>
    %1469 = arith.addf %4, %1468 : vector<1x128xf32>
    %1470 = arith.mulf %70, %984 : vector<1x128xf32>
    %1471 = arith.addf %1469, %1470 : vector<1x128xf32>
    %1472 = arith.mulf %72, %990 : vector<1x128xf32>
    %1473 = arith.addf %1471, %1472 : vector<1x128xf32>
    %1474 = arith.mulf %74, %978 : vector<1x128xf32>
    %1475 = arith.addf %5, %1474 : vector<1x128xf32>
    %1476 = arith.mulf %76, %984 : vector<1x128xf32>
    %1477 = arith.addf %1475, %1476 : vector<1x128xf32>
    %1478 = arith.mulf %78, %990 : vector<1x128xf32>
    %1479 = arith.addf %1477, %1478 : vector<1x128xf32>
    %1480 = tpu.concatenate %62, %64, %66, %3, %68, %70, %72, %4, %74, %76, %78, %5, %62, %64, %66, %3 in 0 : vector<1x128xf32>, vector<1x128xf32>, vector<1x128xf32>, vector<1x128xf32>, vector<1x128xf32>, vector<1x128xf32>, vector<1x128xf32>, vector<1x128xf32>, vector<1x128xf32>, vector<1x128xf32>, vector<1x128xf32>, vector<1x128xf32>, vector<1x128xf32>, vector<1x128xf32>, vector<1x128xf32>, vector<1x128xf32> -> vector<16x128xf32>
    %1481 = tpu.concatenate %68, %70, %72, %4, %74, %76, %78, %5, %62, %993, %996, %1017, %68, %999, %1002, %1026 in 0 : vector<1x128xf32>, vector<1x128xf32>, vector<1x128xf32>, vector<1x128xf32>, vector<1x128xf32>, vector<1x128xf32>, vector<1x128xf32>, vector<1x128xf32>, vector<1x128xf32>, vector<1x128xf32>, vector<1x128xf32>, vector<1x128xf32>, vector<1x128xf32>, vector<1x128xf32>, vector<1x128xf32>, vector<1x128xf32> -> vector<16x128xf32>
    %1482 = tpu.concatenate %74, %1005, %1008, %1035, %1040, %1043, %1048, %1083, %1053, %1056, %1061, %1092, %1066, %1069, %1074, %1101 in 0 : vector<1x128xf32>, vector<1x128xf32>, vector<1x128xf32>, vector<1x128xf32>, vector<1x128xf32>, vector<1x128xf32>, vector<1x128xf32>, vector<1x128xf32>, vector<1x128xf32>, vector<1x128xf32>, vector<1x128xf32>, vector<1x128xf32>, vector<1x128xf32>, vector<1x128xf32>, vector<1x128xf32>, vector<1x128xf32> -> vector<16x128xf32>
    %1483 = tpu.concatenate %1106, %1111, %1116, %1152, %1121, %1126, %1131, %1158, %1136, %1141, %1146, %1164, %1169, %1174, %1179, %1215 in 0 : vector<1x128xf32>, vector<1x128xf32>, vector<1x128xf32>, vector<1x128xf32>, vector<1x128xf32>, vector<1x128xf32>, vector<1x128xf32>, vector<1x128xf32>, vector<1x128xf32>, vector<1x128xf32>, vector<1x128xf32>, vector<1x128xf32>, vector<1x128xf32>, vector<1x128xf32>, vector<1x128xf32>, vector<1x128xf32> -> vector<16x128xf32>
    %1484 = tpu.concatenate %1184, %1189, %1194, %1221, %1199, %1204, %1209, %1227, %1232, %1237, %1242, %1278, %1247, %1252, %1257, %1284 in 0 : vector<1x128xf32>, vector<1x128xf32>, vector<1x128xf32>, vector<1x128xf32>, vector<1x128xf32>, vector<1x128xf32>, vector<1x128xf32>, vector<1x128xf32>, vector<1x128xf32>, vector<1x128xf32>, vector<1x128xf32>, vector<1x128xf32>, vector<1x128xf32>, vector<1x128xf32>, vector<1x128xf32>, vector<1x128xf32> -> vector<16x128xf32>
    %1485 = tpu.concatenate %1262, %1267, %1272, %1290, %1295, %1300, %1305, %1341, %1310, %1315, %1320, %1347, %1325, %1330, %1335, %1353 in 0 : vector<1x128xf32>, vector<1x128xf32>, vector<1x128xf32>, vector<1x128xf32>, vector<1x128xf32>, vector<1x128xf32>, vector<1x128xf32>, vector<1x128xf32>, vector<1x128xf32>, vector<1x128xf32>, vector<1x128xf32>, vector<1x128xf32>, vector<1x128xf32>, vector<1x128xf32>, vector<1x128xf32>, vector<1x128xf32> -> vector<16x128xf32>
    %1486 = tpu.concatenate %1358, %1363, %1368, %1404, %1373, %1378, %1383, %1410, %1388, %1393, %1398, %1416, %1421, %1426, %1431, %1467 in 0 : vector<1x128xf32>, vector<1x128xf32>, vector<1x128xf32>, vector<1x128xf32>, vector<1x128xf32>, vector<1x128xf32>, vector<1x128xf32>, vector<1x128xf32>, vector<1x128xf32>, vector<1x128xf32>, vector<1x128xf32>, vector<1x128xf32>, vector<1x128xf32>, vector<1x128xf32>, vector<1x128xf32>, vector<1x128xf32> -> vector<16x128xf32>
    %1487 = tpu.concatenate %1436, %1441, %1446, %1473, %1451, %1456, %1461, %1479 in 0 : vector<1x128xf32>, vector<1x128xf32>, vector<1x128xf32>, vector<1x128xf32>, vector<1x128xf32>, vector<1x128xf32>, vector<1x128xf32>, vector<1x128xf32> -> vector<8x128xf32>
    %1488 = tpu.concatenate %1480, %1481, %1482, %1483, %1484, %1485, %1486, %1487 in 0 : vector<16x128xf32>, vector<16x128xf32>, vector<16x128xf32>, vector<16x128xf32>, vector<16x128xf32>, vector<16x128xf32>, vector<16x128xf32>, vector<8x128xf32> -> vector<120x128xf32>
    %c0_145 = arith.constant 0 : index
    %c0_146 = arith.constant 0 : index
    %1489 = vector.load %arg2[%c0_145, %c0_146] : memref<120x128xf32, #tpu.memory_space<vmem>>, vector<120x128xf32>
    tpu.vector_store %arg2[%c0_145, %c0_146], %1488 {strides = array<i32>} : memref<120x128xf32, #tpu.memory_space<vmem>>, vector<120x128xf32>,
    return
  }
  func.func @transform_0(%arg0: i32) -> (i32, i32) {
    %c0_i32 = arith.constant 0 : i32
    %c0_i32_0 = arith.constant 0 : i32
    return %c0_i32, %arg0 : i32, i32
  }
  func.func @transform_1(%arg0: i32) -> (i32, i32) {
    %c0_i32 = arith.constant 0 : i32
    %c0_i32_0 = arith.constant 0 : i32
    return %c0_i32, %arg0 : i32, i32
  }
}

</mosaic_0001>

<llo_original>
// kernel: forward.1
$region0: #{forward.1}
  #allocation0 [shape = 'u32[]', space=smem, size = 0x4, offset = 0x4, fixed_abs, tag = 'smem constant byte address 0x4 - core index']
  #allocation1 [shape = 'u32[144,128]{1,0:T(1,128)}', space=vmem, size = 0x12000, scoped, tag = 'internal scratch']
  %s0 = inlined_call_operand.vmem [shape: f32[8,128], index: 0, kind: input, shape index: {}]
  %s1 = inlined_call_operand.vmem [shape: f32[120,128], index: 1, kind: output, shape index: {}]
  %s2 = sld [smem:[#allocation0]]
  $region14: #{forward.1} parent=0
    _
  %s4 = ssub.s32 1, %s2
  %s5 = scalar_select 0, %s4, %s2
  // Predicated region
  $region2: #{forward.1} parent=0 // pred_check
    _
  $region3: #{forward.1} parent=0 // pred_check_branch
    %7 = sbr.rel (0) target = $region5
  $region4: #{forward.1} parent=0 // pred_region
    _
  $region5: #{forward.1} parent=0 // pred_fallthru
    _
  %v8 = vld [vmem:[%s0] sm:$0xff]
  %v9 = vand.u32 2147483647, %v8
  %vm10 = vcmp.le.f32.partialorder %v9, 0.7853982
  %vm11 = vcmp.lt.s32.totalorder %v8, 0
  %v12 = vand.u32 %v8, 2139095040
  %v13 = vshrl.u32 %v12, 23
  %v14 = vsub.s32 %v13, 127
  %v15 = vand.u32 2147483647, %v8
  %v16 = vand.u32 %v15, 8388607
  %v17 = vor.u32 %v16, 8388608
  %v18 = vsub.s32 0, %v17
  %v19 = vadd.s32 %v14, 1
  %vm20 = vcmp.gt.s32.totalorder %v19, 0
  %v21 = vsel %vm20, %v19, 0
  %v22 = vshrl.u32 %v21, 5
  %v23 = vand.u32 %v21, 31
  %v24 = vsub.s32 32, %v23
  %v25 = vshrl.u32 683565275, %v24
  %v26 = vshll.u32 683565275, %v23
  %v27 = vshrl.u32 2475754826, %v24
  %v28 = vor.u32 %v26, %v27
  %v29 = vshll.u32 2475754826, %v23
  %v30 = vshrl.u32 2131351028, %v24
  %v31 = vor.u32 %v29, %v30
  %v32 = vshll.u32 2131351028, %v23
  %v33 = vshrl.u32 2102212464, %v24
  %v34 = vor.u32 %v32, %v33
  %v35 = vshll.u32 2102212464, %v23
  %v36 = vshrl.u32 920167782, %v24
  %v37 = vor.u32 %v35, %v36
  %v38 = vshll.u32 920167782, %v23
  %v39 = vshrl.u32 1326507024, %v24
  %v40 = vor.u32 %v38, %v39
  %vm41 = vcmp.lt.s32.totalorder %v22, 1
  %vm42 = vcmp.lt.s32.totalorder %v22, 2
  %vm43 = vcmp.lt.s32.totalorder %v22, 3
  %vm44 = vcmp.lt.s32.totalorder %v22, 4
  %v45 = vsel %vm41, %v25, %v28
  %v46 = vsel %vm44, %v34, 2102212464
  %v47 = vsel %vm43, %v31, %v46
  %v48 = vsel %vm42, %v45, %v47
  %v49 = vsel %vm41, %v28, %v31
  %v50 = vsel %vm44, %v37, 920167782
  %v51 = vsel %vm43, %v34, %v50
  %v52 = vsel %vm42, %v49, %v51
  %v53 = vsel %vm41, %v31, %v34
  %v54 = vsel %vm44, %v40, 1326507024
  %v55 = vsel %vm43, %v37, %v54
  %v56 = vsel %vm42, %v53, %v55
  %v57 = vshll.u32 %v17, 8
  %v58 = vmul.u32.u64.compose %v57, %v56
  %v59 = vextract.low.u32 %v58
  %v60 = vextract.high.u32 %v58
  %v61 = vmul.u32.u64.compose %v57, %v52
  %v62 = vextract.low.u32 %v61
  %v63 = vextract.high.u32 %v61
  %v64 = vmul.u32 %v57, %v48
  %v65 = vadd.s32 %v60, %v62
  %vm66 = vc.u32 %v60, %v62
  %v67 = vadd.s32 %v63, 1
  %v68 = vsel %vm66, %v67, %v63
  %v69 = vadd.s32 %v64, %v68
  %v70 = vadd.s32 %v69, 536870912
  %v71 = vshrl.u32 %v70, 30
  %v72 = vshll.u32 %v71, 30
  %v73 = vsub.s32 %v69, %v72
  %vm74 = vcmp.lt.s32.totalorder %v73, 0
  %v75 = vsub.s32 0, %v73
  %v76 = vsel %vm74, %v75, %v73
  %v77 = vclz %v76
  %v78 = vsub.s32 %v77, 2
  %vm79 = vcmp.gt.s32.totalorder 0, %v78
  %v80 = vsel %vm79, 0, %v78
  %v81 = vsub.s32 32, %v80
  %v82 = vshll.u32 %v73, %v80
  %v83 = vshrl.u32 %v65, %v81
  %v84 = vor.u32 %v82, %v83
  %v85 = vsub.s32 4294967266, %v80
  %v86 = vadd.s32 %v85, 127
  %v87 = vshll.u32 %v86, 23
  %v88 = vor.u32 4788187, %v87
  %v89 = vand.u32 2147483647, %v88
  %v91 = vcvt.s32.f32 %v84
  %v92 = vmul.f32 %v91, %v89
  %v93 = vxor.u32 %v92, 2147483648
  %v94 = vsel %vm11, %v93, %v92
  %v95 = vsub.s32 4, %v71
  %v96 = vsel %vm11, %v95, %v71
  %v97 = vsel %vm10, %v8, %v94
  %v98 = vsel %vm10, 0, %v96
  %v99 = vcosq.f32.pop %v97
  %v100 = vsinq.f32.pop %v97
  %vm101 = vweird.f32 %v8
  %v102 = vadd.s32 %v98, 3
  %v103 = vand.u32 %v102, 3
  %vm104 = vcmp.lt.s32.totalorder %v103, 2
  %vm105 = vcmp.eq.s32.totalorder %v103, 0
  %v106 = vxor.u32 %v100, 2147483648
  %v107 = vsel %vm105, %v99, %v106
  %vm108 = vcmp.eq.s32.totalorder %v103, 2
  %v109 = vxor.u32 %v99, 2147483648
  %v110 = vsel %vm108, %v109, %v100
  %v111 = vsel %vm104, %v107, %v110
  %v112 = vsel %vm101, nan, %v111
  %v113 = vand.u32 2147483647, %v8
  %vm114 = vcmp.le.f32.partialorder %v113, 0.7853982
  %vm115 = vcmp.lt.s32.totalorder %v8, 0
  %v116 = vand.u32 %v8, 2139095040
  %v117 = vshrl.u32 %v116, 23
  %v118 = vsub.s32 %v117, 127
  %v119 = vand.u32 2147483647, %v8
  %v120 = vand.u32 %v119, 8388607
  %v121 = vor.u32 %v120, 8388608
  %v122 = vsub.s32 0, %v121
  %v123 = vadd.s32 %v118, 1
  %vm124 = vcmp.gt.s32.totalorder %v123, 0
  %v125 = vsel %vm124, %v123, 0
  %v126 = vshrl.u32 %v125, 5
  %v127 = vand.u32 %v125, 31
  %v128 = vsub.s32 32, %v127
  %v129 = vshrl.u32 683565275, %v128
  %v130 = vshll.u32 683565275, %v127
  %v131 = vshrl.u32 2475754826, %v128
  %v132 = vor.u32 %v130, %v131
  %v133 = vshll.u32 2475754826, %v127
  %v134 = vshrl.u32 2131351028, %v128
  %v135 = vor.u32 %v133, %v134
  %v136 = vshll.u32 2131351028, %v127
  %v137 = vshrl.u32 2102212464, %v128
  %v138 = vor.u32 %v136, %v137
  %v139 = vshll.u32 2102212464, %v127
  %v140 = vshrl.u32 920167782, %v128
  %v141 = vor.u32 %v139, %v140
  %v142 = vshll.u32 920167782, %v127
  %v143 = vshrl.u32 1326507024, %v128
  %v144 = vor.u32 %v142, %v143
  %vm145 = vcmp.lt.s32.totalorder %v126, 1
  %vm146 = vcmp.lt.s32.totalorder %v126, 2
  %vm147 = vcmp.lt.s32.totalorder %v126, 3
  %vm148 = vcmp.lt.s32.totalorder %v126, 4
  %v149 = vsel %vm145, %v129, %v132
  %v150 = vsel %vm148, %v138, 2102212464
  %v151 = vsel %vm147, %v135, %v150
  %v152 = vsel %vm146, %v149, %v151
  %v153 = vsel %vm145, %v132, %v135
  %v154 = vsel %vm148, %v141, 920167782
  %v155 = vsel %vm147, %v138, %v154
  %v156 = vsel %vm146, %v153, %v155
  %v157 = vsel %vm145, %v135, %v138
  %v158 = vsel %vm148, %v144, 1326507024
  %v159 = vsel %vm147, %v141, %v158
  %v160 = vsel %vm146, %v157, %v159
  %v161 = vshll.u32 %v121, 8
  %v162 = vmul.u32.u64.compose %v161, %v160
  %v163 = vextract.low.u32 %v162
  %v164 = vextract.high.u32 %v162
  %v165 = vmul.u32.u64.compose %v161, %v156
  %v166 = vextract.low.u32 %v165
  %v167 = vextract.high.u32 %v165
  %v168 = vmul.u32 %v161, %v152
  %v169 = vadd.s32 %v164, %v166
  %vm170 = vc.u32 %v164, %v166
  %v171 = vadd.s32 %v167, 1
  %v172 = vsel %vm170, %v171, %v167
  %v173 = vadd.s32 %v168, %v172
  %v174 = vadd.s32 %v173, 536870912
  %v175 = vshrl.u32 %v174, 30
  %v176 = vshll.u32 %v175, 30
  %v177 = vsub.s32 %v173, %v176
  %vm178 = vcmp.lt.s32.totalorder %v177, 0
  %v179 = vsub.s32 0, %v177
  %v180 = vsel %vm178, %v179, %v177
  %v181 = vclz %v180
  %v182 = vsub.s32 %v181, 2
  %vm183 = vcmp.gt.s32.totalorder 0, %v182
  %v184 = vsel %vm183, 0, %v182
  %v185 = vsub.s32 32, %v184
  %v186 = vshll.u32 %v177, %v184
  %v187 = vshrl.u32 %v169, %v185
  %v188 = vor.u32 %v186, %v187
  %v189 = vsub.s32 4294967266, %v184
  %v190 = vadd.s32 %v189, 127
  %v191 = vshll.u32 %v190, 23
  %v192 = vor.u32 4788187, %v191
  %v193 = vand.u32 2147483647, %v192
  %v195 = vcvt.s32.f32 %v188
  %v196 = vmul.f32 %v195, %v193
  %v197 = vxor.u32 %v196, 2147483648
  %v198 = vsel %vm115, %v197, %v196
  %v199 = vsub.s32 4, %v175
  %v200 = vsel %vm115, %v199, %v175
  %v201 = vsel %vm114, %v8, %v198
  %v202 = vsel %vm114, 0, %v200
  %v203 = vcosq.f32.pop %v201
  %v204 = vsinq.f32.pop %v201
  %vm205 = vweird.f32 %v8
  %v206 = vand.u32 %v202, 3
  %vm207 = vcmp.lt.s32.totalorder %v206, 2
  %vm208 = vcmp.eq.s32.totalorder %v206, 0
  %v209 = vxor.u32 %v204, 2147483648
  %v210 = vsel %vm208, %v203, %v209
  %vm211 = vcmp.eq.s32.totalorder %v206, 2
  %v212 = vxor.u32 %v203, 2147483648
  %v213 = vsel %vm211, %v212, %v204
  %v214 = vsel %vm207, %v210, %v213
  %v215 = vsel %vm205, nan, %v214
  %v216 = vmul.f32 %v8, %v8
  %v218 = vrot.slane %v216, 1
  %v220 = vadd.f32 %v216, %v218
  %v221 = vrot.slane %v216, 2
  %v223 = vadd.f32 %v220, %v221
  %v224 = vrsqrt.pop %v223
  %v225 = vmul.f32 %v223, %v224
  %vm226 = vcmp.eq.f32.partialorder %v223, inf
  %v227 = vsel %vm226, %v223, %v225
  %vm228 = vcmp.eq.f32.partialorder %v223, 0.0
  %v229 = vand.u32 %v223, 2147483648
  %v230 = vsel %vm228, %v229, %v227
  %vm231 = vcmp.lt.f32.partialorder %v230, 1e-06
  %v232 = vsel %vm231, 1.0, %v230
  %v233 = vrcp.pop %v232
  %v234 = vmul.f32 1.0, %v233
  %v235 = vmul.f32 %v8, %v234
  %v237 = vrot.slane %v234, 7
  %v239 = vmul.f32 %v8, %v237
  %v240 = vrot.slane %v234, 6
  %v242 = vmul.f32 %v8, %v240
  %v243 = vand.u32 2147483647, %v230
  %vm244 = vcmp.le.f32.partialorder %v243, 0.7853982
  %vm245 = vcmp.lt.s32.totalorder %v230, 0
  %v246 = vand.u32 %v230, 2139095040
  %v247 = vshrl.u32 %v246, 23
  %v248 = vsub.s32 %v247, 127
  %v249 = vand.u32 2147483647, %v230
  %v250 = vand.u32 %v249, 8388607
  %v251 = vor.u32 %v250, 8388608
  %v252 = vsub.s32 0, %v251
  %v253 = vadd.s32 %v248, 1
  %vm254 = vcmp.gt.s32.totalorder %v253, 0
  %v255 = vsel %vm254, %v253, 0
  %v256 = vshrl.u32 %v255, 5
  %v257 = vand.u32 %v255, 31
  %v258 = vsub.s32 32, %v257
  %v259 = vshrl.u32 683565275, %v258
  %v260 = vshll.u32 683565275, %v257
  %v261 = vshrl.u32 2475754826, %v258
  %v262 = vor.u32 %v260, %v261
  %v263 = vshll.u32 2475754826, %v257
  %v264 = vshrl.u32 2131351028, %v258
  %v265 = vor.u32 %v263, %v264
  %v266 = vshll.u32 2131351028, %v257
  %v267 = vshrl.u32 2102212464, %v258
  %v268 = vor.u32 %v266, %v267
  %v269 = vshll.u32 2102212464, %v257
  %v270 = vshrl.u32 920167782, %v258
  %v271 = vor.u32 %v269, %v270
  %v272 = vshll.u32 920167782, %v257
  %v273 = vshrl.u32 1326507024, %v258
  %v274 = vor.u32 %v272, %v273
  %vm275 = vcmp.lt.s32.totalorder %v256, 1
  %vm276 = vcmp.lt.s32.totalorder %v256, 2
  %vm277 = vcmp.lt.s32.totalorder %v256, 3
  %vm278 = vcmp.lt.s32.totalorder %v256, 4
  %v279 = vsel %vm275, %v259, %v262
  %v280 = vsel %vm278, %v268, 2102212464
  %v281 = vsel %vm277, %v265, %v280
  %v282 = vsel %vm276, %v279, %v281
  %v283 = vsel %vm275, %v262, %v265
  %v284 = vsel %vm278, %v271, 920167782
  %v285 = vsel %vm277, %v268, %v284
  %v286 = vsel %vm276, %v283, %v285
  %v287 = vsel %vm275, %v265, %v268
  %v288 = vsel %vm278, %v274, 1326507024
  %v289 = vsel %vm277, %v271, %v288
  %v290 = vsel %vm276, %v287, %v289
  %v291 = vshll.u32 %v251, 8
  %v292 = vmul.u32.u64.compose %v291, %v290
  %v293 = vextract.low.u32 %v292
  %v294 = vextract.high.u32 %v292
  %v295 = vmul.u32.u64.compose %v291, %v286
  %v296 = vextract.low.u32 %v295
  %v297 = vextract.high.u32 %v295
  %v298 = vmul.u32 %v291, %v282
  %v299 = vadd.s32 %v294, %v296
  %vm300 = vc.u32 %v294, %v296
  %v301 = vadd.s32 %v297, 1
  %v302 = vsel %vm300, %v301, %v297
  %v303 = vadd.s32 %v298, %v302
  %v304 = vadd.s32 %v303, 536870912
  %v305 = vshrl.u32 %v304, 30
  %v306 = vshll.u32 %v305, 30
  %v307 = vsub.s32 %v303, %v306
  %vm308 = vcmp.lt.s32.totalorder %v307, 0
  %v309 = vsub.s32 0, %v307
  %v310 = vsel %vm308, %v309, %v307
  %v311 = vclz %v310
  %v312 = vsub.s32 %v311, 2
  %vm313 = vcmp.gt.s32.totalorder 0, %v312
  %v314 = vsel %vm313, 0, %v312
  %v315 = vsub.s32 32, %v314
  %v316 = vshll.u32 %v307, %v314
  %v317 = vshrl.u32 %v299, %v315
  %v318 = vor.u32 %v316, %v317
  %v319 = vsub.s32 4294967266, %v314
  %v320 = vadd.s32 %v319, 127
  %v321 = vshll.u32 %v320, 23
  %v322 = vor.u32 4788187, %v321
  %v323 = vand.u32 2147483647, %v322
  %v325 = vcvt.s32.f32 %v318
  %v326 = vmul.f32 %v325, %v323
  %v327 = vxor.u32 %v326, 2147483648
  %v328 = vsel %vm245, %v327, %v326
  %v329 = vsub.s32 4, %v305
  %v330 = vsel %vm245, %v329, %v305
  %v331 = vsel %vm244, %v230, %v328
  %v332 = vsel %vm244, 0, %v330
  %v333 = vcosq.f32.pop %v331
  %v334 = vsinq.f32.pop %v331
  %vm335 = vweird.f32 %v230
  %v336 = vadd.s32 %v332, 3
  %v337 = vand.u32 %v336, 3
  %vm338 = vcmp.lt.s32.totalorder %v337, 2
  %vm339 = vcmp.eq.s32.totalorder %v337, 0
  %v340 = vxor.u32 %v334, 2147483648
  %v341 = vsel %vm339, %v333, %v340
  %vm342 = vcmp.eq.s32.totalorder %v337, 2
  %v343 = vxor.u32 %v333, 2147483648
  %v344 = vsel %vm342, %v343, %v334
  %v345 = vsel %vm338, %v341, %v344
  %v346 = vsel %vm335, nan, %v345
  %v347 = vand.u32 2147483647, %v230
  %vm348 = vcmp.le.f32.partialorder %v347, 0.7853982
  %vm349 = vcmp.lt.s32.totalorder %v230, 0
  %v350 = vand.u32 %v230, 2139095040
  %v351 = vshrl.u32 %v350, 23
  %v352 = vsub.s32 %v351, 127
  %v353 = vand.u32 2147483647, %v230
  %v354 = vand.u32 %v353, 8388607
  %v355 = vor.u32 %v354, 8388608
  %v356 = vsub.s32 0, %v355
  %v357 = vadd.s32 %v352, 1
  %vm358 = vcmp.gt.s32.totalorder %v357, 0
  %v359 = vsel %vm358, %v357, 0
  %v360 = vshrl.u32 %v359, 5
  %v361 = vand.u32 %v359, 31
  %v362 = vsub.s32 32, %v361
  %v363 = vshrl.u32 683565275, %v362
  %v364 = vshll.u32 683565275, %v361
  %v365 = vshrl.u32 2475754826, %v362
  %v366 = vor.u32 %v364, %v365
  %v367 = vshll.u32 2475754826, %v361
  %v368 = vshrl.u32 2131351028, %v362
  %v369 = vor.u32 %v367, %v368
  %v370 = vshll.u32 2131351028, %v361
  %v371 = vshrl.u32 2102212464, %v362
  %v372 = vor.u32 %v370, %v371
  %v373 = vshll.u32 2102212464, %v361
  %v374 = vshrl.u32 920167782, %v362
  %v375 = vor.u32 %v373, %v374
  %v376 = vshll.u32 920167782, %v361
  %v377 = vshrl.u32 1326507024, %v362
  %v378 = vor.u32 %v376, %v377
  %vm379 = vcmp.lt.s32.totalorder %v360, 1
  %vm380 = vcmp.lt.s32.totalorder %v360, 2
  %vm381 = vcmp.lt.s32.totalorder %v360, 3
  %vm382 = vcmp.lt.s32.totalorder %v360, 4
  %v383 = vsel %vm379, %v363, %v366
  %v384 = vsel %vm382, %v372, 2102212464
  %v385 = vsel %vm381, %v369, %v384
  %v386 = vsel %vm380, %v383, %v385
  %v387 = vsel %vm379, %v366, %v369
  %v388 = vsel %vm382, %v375, 920167782
  %v389 = vsel %vm381, %v372, %v388
  %v390 = vsel %vm380, %v387, %v389
  %v391 = vsel %vm379, %v369, %v372
  %v392 = vsel %vm382, %v378, 1326507024
  %v393 = vsel %vm381, %v375, %v392
  %v394 = vsel %vm380, %v391, %v393
  %v395 = vshll.u32 %v355, 8
  %v396 = vmul.u32.u64.compose %v395, %v394
  %v397 = vextract.low.u32 %v396
  %v398 = vextract.high.u32 %v396
  %v399 = vmul.u32.u64.compose %v395, %v390
  %v400 = vextract.low.u32 %v399
  %v401 = vextract.high.u32 %v399
  %v402 = vmul.u32 %v395, %v386
  %v403 = vadd.s32 %v398, %v400
  %vm404 = vc.u32 %v398, %v400
  %v405 = vadd.s32 %v401, 1
  %v406 = vsel %vm404, %v405, %v401
  %v407 = vadd.s32 %v402, %v406
  %v408 = vadd.s32 %v407, 536870912
  %v409 = vshrl.u32 %v408, 30
  %v410 = vshll.u32 %v409, 30
  %v411 = vsub.s32 %v407, %v410
  %vm412 = vcmp.lt.s32.totalorder %v411, 0
  %v413 = vsub.s32 0, %v411
  %v414 = vsel %vm412, %v413, %v411
  %v415 = vclz %v414
  %v416 = vsub.s32 %v415, 2
  %vm417 = vcmp.gt.s32.totalorder 0, %v416
  %v418 = vsel %vm417, 0, %v416
  %v419 = vsub.s32 32, %v418
  %v420 = vshll.u32 %v411, %v418
  %v421 = vshrl.u32 %v403, %v419
  %v422 = vor.u32 %v420, %v421
  %v423 = vsub.s32 4294967266, %v418
  %v424 = vadd.s32 %v423, 127
  %v425 = vshll.u32 %v424, 23
  %v426 = vor.u32 4788187, %v425
  %v427 = vand.u32 2147483647, %v426
  %v429 = vcvt.s32.f32 %v422
  %v430 = vmul.f32 %v429, %v427
  %v431 = vxor.u32 %v430, 2147483648
  %v432 = vsel %vm349, %v431, %v430
  %v433 = vsub.s32 4, %v409
  %v434 = vsel %vm349, %v433, %v409
  %v435 = vsel %vm348, %v230, %v432
  %v436 = vsel %vm348, 0, %v434
  %v437 = vcosq.f32.pop %v435
  %v438 = vsinq.f32.pop %v435
  %vm439 = vweird.f32 %v230
  %v440 = vand.u32 %v436, 3
  %vm441 = vcmp.lt.s32.totalorder %v440, 2
  %vm442 = vcmp.eq.s32.totalorder %v440, 0
  %v443 = vxor.u32 %v438, 2147483648
  %v444 = vsel %vm442, %v437, %v443
  %vm445 = vcmp.eq.s32.totalorder %v440, 2
  %v446 = vxor.u32 %v437, 2147483648
  %v447 = vsel %vm445, %v446, %v438
  %v448 = vsel %vm441, %v444, %v447
  %v449 = vsel %vm439, nan, %v448
  %v450 = vsub.f32 1.0, %v449
  %v451 = vmul.f32 %v235, %v235
  %v452 = vmul.f32 %v451, %v450
  %v453 = vadd.f32 %v449, %v452
  %v455 = vrot.slane %v239, 1
  %v457 = vmul.f32 %v235, %v455
  %v458 = vmul.f32 %v457, %v450
  %v460 = vrot.slane %v346, 6
  %v462 = vmul.f32 %v242, %v460
  %v464 = vrot.slane %v462, 2
  %v466 = vsub.f32 %v458, %v464
  %v468 = vrot.slane %v242, 2
  %v470 = vmul.f32 %v235, %v468
  %v471 = vmul.f32 %v470, %v450
  %v472 = vrot.slane %v346, 7
  %v474 = vmul.f32 %v239, %v472
  %v476 = vrot.slane %v474, 1
  %v478 = vadd.f32 %v471, %v476
  %v479 = vadd.f32 %v458, %v464
  %v480 = vmul.f32 %v239, %v239
  %v482 = vrot.slane %v450, 7
  %v484 = vmul.f32 %v480, %v482
  %v486 = vrot.slane %v484, 1
  %v488 = vadd.f32 %v449, %v486
  %v489 = vrot.slane %v242, 1
  %v491 = vmul.f32 %v239, %v489
  %v492 = vmul.f32 %v491, %v482
  %v493 = vmul.f32 %v235, %v346
  %v495 = vrot.slane %v493, 7
  %v497 = vsub.f32 %v492, %v495
  %v498 = vsub.f32 %v471, %v476
  %v499 = vadd.f32 %v492, %v495
  %v500 = vmul.f32 %v242, %v242
  %v501 = vrot.slane %v450, 6
  %v503 = vmul.f32 %v500, %v501
  %v505 = vrot.slane %v503, 2
  %v507 = vadd.f32 %v449, %v505
  %v508 = vsel %vm231, 1.0, %v453
  %v509 = vsel %vm231, 0.0, %v466
  %v510 = vsel %vm231, 0.0, %v478
  %v511 = vsel %vm231, 0.0, %v479
  %v512 = vsel %vm231, 1.0, %v488
  %v514 = vrot.slane %v497, 1
  %v516 = vsel %vm231, 0.0, %v514
  %v517 = vsel %vm231, 0.0, %v498
  %v519 = vrot.slane %v499, 1
  %v521 = vsel %vm231, 0.0, %v519
  %v522 = vsel %vm231, 1.0, %v507
  %v523 = vsub.f32 0.0, %v112
  %v524 = vsub.f32 1.0, %v215
  %v525 = vmul.f32 %v112, -0.70710677
  %v526 = vmul.f32 %v112, 0.70710677
  %v527 = vmul.f32 %v524, 0.49999997
  %v528 = vadd.f32 %v215, %v527
  %v529 = vmul.f32 %v524, -0.49999997
  %v530 = vmul.f32 %v524, 0.3333333
  %v531 = vadd.f32 %v215, %v530
  %v532 = vmul.f32 %v112, -0.57735026
  %v533 = vadd.f32 %v530, %v532
  %v534 = vmul.f32 %v112, 0.57735026
  %v535 = vadd.f32 %v530, %v534
  %v537 = vrot.slane %v523, 1
  %v539 = vmul.f32 %v523, %v537
  %v541 = vrot.slane %v215, 1
  %v543 = vmul.f32 %v523, %v541
  %v544 = vmul.f32 %v215, %v537
  %v545 = vmul.f32 %v215, %v541
  %v546 = vmul.f32 %v215, 0.03
  %v547 = vmul.f32 %v112, 0.09
  %v548 = vadd.f32 %v546, %v547
  %v549 = vmul.f32 %v523, 0.03
  %v550 = vmul.f32 %v215, 0.09
  %v551 = vadd.f32 %v549, %v550
  %v552 = vmul.f32 %v215, 0.04
  %v553 = vadd.f32 %v552, 0.03
  %v554 = vmul.f32 %v523, 0.08
  %v555 = vadd.f32 %v553, %v554
  %v556 = vmul.f32 %v112, 0.04
  %v557 = vadd.f32 %v556, 0.06
  %v558 = vmul.f32 %v215, 0.08
  %v559 = vadd.f32 %v557, %v558
  %v561 = vrot.slane %v526, 1
  %v563 = vmul.f32 %v215, %v561
  %v565 = vrot.slane %v525, 1
  %v567 = vmul.f32 %v523, %v565
  %v568 = vadd.f32 %v563, %v567
  %v570 = vrot.slane %v528, 1
  %v572 = vmul.f32 %v215, %v570
  %v574 = vrot.slane %v527, 1
  %v576 = vmul.f32 %v523, %v574
  %v577 = vadd.f32 %v572, %v576
  %v578 = vmul.f32 %v215, %v574
  %v579 = vmul.f32 %v523, %v570
  %v580 = vadd.f32 %v578, %v579
  %v581 = vmul.f32 %v112, %v561
  %v582 = vmul.f32 %v215, %v565
  %v583 = vadd.f32 %v581, %v582
  %v584 = vmul.f32 %v112, %v570
  %v585 = vadd.f32 %v584, %v578
  %v586 = vmul.f32 %v112, %v574
  %v587 = vadd.f32 %v586, %v572
  %v588 = vmul.f32 %v215, 0.1
  %v589 = vadd.f32 %v588, 0.08
  %v590 = vmul.f32 %v523, 0.15
  %v591 = vadd.f32 %v589, %v590
  %v592 = vmul.f32 %v112, 0.1
  %v593 = vadd.f32 %v592, 0.12
  %v594 = vmul.f32 %v215, 0.15
  %v595 = vadd.f32 %v593, %v594
  %v596 = vmul.f32 %v525, %v565
  %v597 = vadd.f32 %v572, %v596
  %v599 = vrot.slane %v529, 1
  %v601 = vmul.f32 %v526, %v599
  %v602 = vadd.f32 %v597, %v601
  %v603 = vmul.f32 %v525, %v541
  %v604 = vadd.f32 %v563, %v603
  %v605 = vmul.f32 %v526, %v561
  %v606 = vadd.f32 %v604, %v605
  %v607 = vmul.f32 %v215, %v599
  %v608 = vadd.f32 %v607, %v596
  %v609 = vmul.f32 %v526, %v570
  %v610 = vadd.f32 %v608, %v609
  %v611 = vmul.f32 %v528, %v565
  %v612 = vadd.f32 %v609, %v611
  %v613 = vmul.f32 %v527, %v599
  %v614 = vadd.f32 %v612, %v613
  %v615 = vmul.f32 %v528, %v541
  %v616 = vadd.f32 %v605, %v615
  %v617 = vmul.f32 %v527, %v561
  %v618 = vadd.f32 %v616, %v617
  %v619 = vadd.f32 %v601, %v611
  %v620 = vmul.f32 %v527, %v570
  %v621 = vadd.f32 %v619, %v620
  %v622 = vmul.f32 %v525, %v570
  %v623 = vmul.f32 %v527, %v565
  %v624 = vadd.f32 %v622, %v623
  %v625 = vmul.f32 %v528, %v599
  %v626 = vadd.f32 %v624, %v625
  %v627 = vmul.f32 %v525, %v561
  %v628 = vmul.f32 %v527, %v541
  %v629 = vadd.f32 %v627, %v628
  %v630 = vmul.f32 %v528, %v561
  %v631 = vadd.f32 %v629, %v630
  %v632 = vmul.f32 %v525, %v599
  %v633 = vadd.f32 %v632, %v623
  %v634 = vmul.f32 %v528, %v570
  %v635 = vadd.f32 %v633, %v634
  %v636 = vmul.f32 %v215, 0.06
  %v637 = vadd.f32 %v636, 0.05
  %v638 = vmul.f32 %v525, 0.12
  %v639 = vadd.f32 %v637, %v638
  %v640 = vmul.f32 %v526, 0.18
  %v641 = vadd.f32 %v639, %v640
  %v642 = vmul.f32 %v526, 0.06
  %v643 = vadd.f32 %v642, 0.1
  %v644 = vmul.f32 %v528, 0.12
  %v645 = vadd.f32 %v643, %v644
  %v646 = vmul.f32 %v527, 0.18
  %v647 = vadd.f32 %v645, %v646
  %v648 = vmul.f32 %v525, 0.06
  %v649 = vadd.f32 %v648, 0.15
  %v650 = vmul.f32 %v527, 0.12
  %v651 = vadd.f32 %v649, %v650
  %v652 = vmul.f32 %v528, 0.18
  %v653 = vadd.f32 %v651, %v652
  %v655 = vrot.slane %v531, 1
  %v657 = vmul.f32 %v528, %v655
  %v659 = vrot.slane %v535, 1
  %v661 = vmul.f32 %v526, %v659
  %v662 = vadd.f32 %v657, %v661
  %v664 = vrot.slane %v533, 1
  %v666 = vmul.f32 %v529, %v664
  %v667 = vadd.f32 %v662, %v666
  %v668 = vmul.f32 %v528, %v664
  %v669 = vmul.f32 %v526, %v655
  %v670 = vadd.f32 %v668, %v669
  %v671 = vmul.f32 %v529, %v659
  %v672 = vadd.f32 %v670, %v671
  %v673 = vmul.f32 %v528, %v659
  %v674 = vmul.f32 %v526, %v664
  %v675 = vadd.f32 %v673, %v674
  %v676 = vmul.f32 %v529, %v655
  %v677 = vadd.f32 %v675, %v676
  %v678 = vmul.f32 %v525, %v655
  %v679 = vmul.f32 %v215, %v659
  %v680 = vadd.f32 %v678, %v679
  %v681 = vmul.f32 %v525, %v664
  %v682 = vadd.f32 %v680, %v681
  %v683 = vmul.f32 %v215, %v655
  %v684 = vadd.f32 %v681, %v683
  %v685 = vmul.f32 %v525, %v659
  %v686 = vadd.f32 %v684, %v685
  %v687 = vmul.f32 %v215, %v664
  %v688 = vadd.f32 %v685, %v687
  %v689 = vadd.f32 %v688, %v678
  %v690 = vadd.f32 %v676, %v661
  %v691 = vadd.f32 %v690, %v668
  %v692 = vadd.f32 %v666, %v669
  %v693 = vadd.f32 %v692, %v673
  %v694 = vadd.f32 %v671, %v674
  %v695 = vadd.f32 %v694, %v657
  %v696 = vmul.f32 %v528, 0.07
  %v697 = vadd.f32 %v696, 0.06
  %v698 = vmul.f32 %v526, 0.14
  %v699 = vadd.f32 %v697, %v698
  %v700 = vmul.f32 %v529, 0.21
  %v701 = vadd.f32 %v699, %v700
  %v702 = vmul.f32 %v525, 0.07
  %v703 = vadd.f32 %v702, 0.12
  %v704 = vmul.f32 %v215, 0.14
  %v705 = vadd.f32 %v703, %v704
  %v706 = vmul.f32 %v525, 0.21
  %v707 = vadd.f32 %v705, %v706
  %v708 = vmul.f32 %v529, 0.07
  %v709 = vadd.f32 %v708, 0.18
  %v710 = vadd.f32 %v709, %v698
  %v711 = vmul.f32 %v528, 0.21
  %v712 = vadd.f32 %v710, %v711
  %v713 = vmul.f32 %v531, %v541
  %v714 = vmul.f32 %v535, %v537
  %v715 = vadd.f32 %v713, %v714
  %v717 = vrot.slane %v112, 1
  %v719 = vmul.f32 %v531, %v717
  %v720 = vmul.f32 %v535, %v541
  %v721 = vadd.f32 %v719, %v720
  %v722 = vmul.f32 %v533, %v537
  %v723 = vadd.f32 %v720, %v722
  %v724 = vmul.f32 %v535, %v717
  %v725 = vmul.f32 %v533, %v541
  %v726 = vadd.f32 %v724, %v725
  %v727 = vmul.f32 %v531, %v537
  %v728 = vadd.f32 %v725, %v727
  %v729 = vmul.f32 %v533, %v717
  %v730 = vadd.f32 %v729, %v713
  %v731 = vmul.f32 %v531, 0.08
  %v732 = vadd.f32 %v731, 0.07
  %v733 = vmul.f32 %v533, 0.16
  %v734 = vadd.f32 %v732, %v733
  %v735 = vmul.f32 %v535, 0.24
  %v736 = vadd.f32 %v734, %v735
  %v737 = vmul.f32 %v535, 0.08
  %v738 = vadd.f32 %v737, 0.14
  %v739 = vmul.f32 %v531, 0.16
  %v740 = vadd.f32 %v738, %v739
  %v741 = vmul.f32 %v533, 0.24
  %v742 = vadd.f32 %v740, %v741
  %v743 = vmul.f32 %v533, 0.08
  %v744 = vadd.f32 %v743, 0.21
  %v745 = vmul.f32 %v535, 0.16
  %v746 = vadd.f32 %v744, %v745
  %v747 = vmul.f32 %v531, 0.24
  %v748 = vadd.f32 %v746, %v747
  %v749 = vrot.slane %v112, 2
  %v751 = vmul.f32 %v215, %v749
  %v753 = vrot.slane %v543, 1
  %v755 = vmul.f32 %v523, %v753
  %v756 = vadd.f32 %v751, %v755
  %v757 = vrot.slane %v215, 2
  %v759 = vmul.f32 %v215, %v757
  %v761 = vrot.slane %v539, 1
  %v763 = vmul.f32 %v523, %v761
  %v764 = vadd.f32 %v759, %v763
  %v765 = vmul.f32 %v112, %v749
  %v766 = vmul.f32 %v215, %v753
  %v767 = vadd.f32 %v765, %v766
  %v768 = vmul.f32 %v112, %v757
  %v769 = vmul.f32 %v215, %v761
  %v770 = vadd.f32 %v768, %v769
  %v771 = vadd.f32 %v548, 0.01
  %v772 = vadd.f32 %v636, 0.02
  %v774 = vrot.slane %v551, 1
  %v776 = vmul.f32 %v523, %v774
  %v777 = vadd.f32 %v772, %v776
  %v778 = vmul.f32 %v112, 0.06
  %v779 = vadd.f32 %v778, 0.03
  %v780 = vmul.f32 %v215, %v774
  %v781 = vadd.f32 %v779, %v780
  %v782 = vmul.f32 %v539, %v757
  %v783 = vadd.f32 %v782, %v751
  %v784 = vrot.slane %v543, 2
  %v786 = vmul.f32 %v539, %v784
  %v788 = vrot.slane %v545, 2
  %v790 = vmul.f32 %v215, %v788
  %v791 = vadd.f32 %v786, %v790
  %v792 = vrot.slane %v112, 3
  %v794 = vmul.f32 %v543, %v792
  %v795 = vadd.f32 %v791, %v794
  %v796 = vrot.slane %v539, 2
  %v798 = vmul.f32 %v539, %v796
  %v800 = vrot.slane %v544, 2
  %v802 = vmul.f32 %v215, %v800
  %v803 = vadd.f32 %v798, %v802
  %v804 = vrot.slane %v215, 3
  %v806 = vmul.f32 %v543, %v804
  %v807 = vadd.f32 %v803, %v806
  %v808 = vmul.f32 %v544, %v757
  %v809 = vadd.f32 %v808, %v765
  %v810 = vmul.f32 %v544, %v784
  %v811 = vmul.f32 %v112, %v788
  %v812 = vadd.f32 %v810, %v811
  %v813 = vmul.f32 %v545, %v792
  %v814 = vadd.f32 %v812, %v813
  %v815 = vmul.f32 %v544, %v796
  %v816 = vmul.f32 %v112, %v800
  %v817 = vadd.f32 %v815, %v816
  %v818 = vmul.f32 %v545, %v804
  %v819 = vadd.f32 %v817, %v818
  %v821 = vrot.slane %v555, 1
  %v823 = vmul.f32 %v215, %v821
  %v824 = vadd.f32 %v823, 0.01
  %v825 = vmul.f32 %v112, 0.21000001
  %v826 = vadd.f32 %v824, %v825
  %v827 = vrot.slane %v555, 2
  %v829 = vmul.f32 %v539, %v827
  %v830 = vadd.f32 %v829, 0.02
  %v832 = vrot.slane %v559, 2
  %v834 = vmul.f32 %v215, %v832
  %v835 = vadd.f32 %v830, %v834
  %v836 = vmul.f32 %v543, 0.21000001
  %v837 = vadd.f32 %v835, %v836
  %v838 = vmul.f32 %v544, %v827
  %v839 = vadd.f32 %v838, 0.03
  %v840 = vmul.f32 %v112, %v832
  %v841 = vadd.f32 %v839, %v840
  %v842 = vmul.f32 %v545, 0.21000001
  %v843 = vadd.f32 %v841, %v842
  %v845 = vrot.slane %v568, 2
  %v847 = vmul.f32 %v544, %v845
  %v848 = vadd.f32 %v818, %v847
  %v850 = vrot.slane %v583, 2
  %v852 = vmul.f32 %v112, %v850
  %v853 = vadd.f32 %v848, %v852
  %v854 = vrot.slane %v525, 3
  %v856 = vmul.f32 %v545, %v854
  %v858 = vrot.slane %v577, 2
  %v860 = vmul.f32 %v544, %v858
  %v861 = vadd.f32 %v856, %v860
  %v863 = vrot.slane %v585, 2
  %v865 = vmul.f32 %v112, %v863
  %v866 = vadd.f32 %v861, %v865
  %v867 = vrot.slane %v526, 3
  %v869 = vmul.f32 %v545, %v867
  %v871 = vrot.slane %v580, 2
  %v873 = vmul.f32 %v544, %v871
  %v874 = vadd.f32 %v869, %v873
  %v876 = vrot.slane %v587, 2
  %v878 = vmul.f32 %v112, %v876
  %v879 = vadd.f32 %v874, %v878
  %v880 = vrot.slane %v568, 1
  %v882 = vmul.f32 %v215, %v880
  %v883 = vadd.f32 %v768, %v882
  %v884 = vrot.slane %v525, 2
  %v886 = vmul.f32 %v112, %v884
  %v887 = vrot.slane %v577, 1
  %v889 = vmul.f32 %v215, %v887
  %v890 = vadd.f32 %v886, %v889
  %v891 = vrot.slane %v526, 2
  %v893 = vmul.f32 %v112, %v891
  %v894 = vrot.slane %v580, 1
  %v896 = vmul.f32 %v215, %v894
  %v897 = vadd.f32 %v893, %v896
  %v898 = vmul.f32 %v539, %v845
  %v899 = vadd.f32 %v806, %v898
  %v900 = vmul.f32 %v215, %v850
  %v901 = vadd.f32 %v899, %v900
  %v902 = vmul.f32 %v543, %v854
  %v903 = vmul.f32 %v539, %v858
  %v904 = vadd.f32 %v902, %v903
  %v905 = vmul.f32 %v215, %v863
  %v906 = vadd.f32 %v904, %v905
  %v907 = vmul.f32 %v543, %v867
  %v908 = vmul.f32 %v539, %v871
  %v909 = vadd.f32 %v907, %v908
  %v910 = vmul.f32 %v215, %v876
  %v911 = vadd.f32 %v909, %v910
  %v912 = vmul.f32 %v545, 0.09
  %v913 = vadd.f32 %v548, %v912
  %v915 = vrot.slane %v591, 2
  %v917 = vmul.f32 %v544, %v915
  %v918 = vadd.f32 %v913, %v917
  %v920 = vrot.slane %v595, 2
  %v922 = vmul.f32 %v112, %v920
  %v923 = vadd.f32 %v918, %v922
  %v924 = vadd.f32 %v547, 0.06
  %v925 = vrot.slane %v591, 1
  %v927 = vmul.f32 %v215, %v925
  %v928 = vadd.f32 %v924, %v927
  %v929 = vmul.f32 %v543, 0.09
  %v930 = vadd.f32 %v551, %v929
  %v931 = vmul.f32 %v539, %v915
  %v932 = vadd.f32 %v930, %v931
  %v933 = vmul.f32 %v215, %v920
  %v934 = vadd.f32 %v932, %v933
  %v936 = vrot.slane %v602, 2
  %v938 = vmul.f32 %v215, %v936
  %v940 = vrot.slane %v614, 2
  %v942 = vmul.f32 %v543, %v940
  %v943 = vadd.f32 %v938, %v942
  %v945 = vrot.slane %v626, 2
  %v947 = vmul.f32 %v539, %v945
  %v948 = vadd.f32 %v943, %v947
  %v950 = vrot.slane %v606, 2
  %v952 = vmul.f32 %v215, %v950
  %v954 = vrot.slane %v618, 2
  %v956 = vmul.f32 %v543, %v954
  %v957 = vadd.f32 %v952, %v956
  %v959 = vrot.slane %v631, 2
  %v961 = vmul.f32 %v539, %v959
  %v962 = vadd.f32 %v957, %v961
  %v964 = vrot.slane %v610, 2
  %v966 = vmul.f32 %v215, %v964
  %v968 = vrot.slane %v621, 2
  %v970 = vmul.f32 %v543, %v968
  %v971 = vadd.f32 %v966, %v970
  %v973 = vrot.slane %v635, 2
  %v975 = vmul.f32 %v539, %v973
  %v976 = vadd.f32 %v971, %v975
  %v977 = vmul.f32 %v112, %v936
  %v978 = vmul.f32 %v545, %v940
  %v979 = vadd.f32 %v977, %v978
  %v980 = vmul.f32 %v544, %v945
  %v981 = vadd.f32 %v979, %v980
  %v982 = vmul.f32 %v112, %v950
  %v983 = vmul.f32 %v545, %v954
  %v984 = vadd.f32 %v982, %v983
  %v985 = vmul.f32 %v544, %v959
  %v986 = vadd.f32 %v984, %v985
  %v987 = vmul.f32 %v112, %v964
  %v988 = vmul.f32 %v545, %v968
  %v989 = vadd.f32 %v987, %v988
  %v990 = vmul.f32 %v544, %v973
  %v991 = vadd.f32 %v989, %v990
  %v992 = vrot.slane %v614, 1
  %v994 = vmul.f32 %v112, %v992
  %v995 = vrot.slane %v626, 1
  %v997 = vmul.f32 %v215, %v995
  %v998 = vadd.f32 %v994, %v997
  %v999 = vrot.slane %v618, 1
  %v1001 = vmul.f32 %v112, %v999
  %v1002 = vrot.slane %v631, 1
  %v1004 = vmul.f32 %v215, %v1002
  %v1005 = vadd.f32 %v1001, %v1004
  %v1006 = vrot.slane %v621, 1
  %v1008 = vmul.f32 %v112, %v1006
  %v1009 = vrot.slane %v635, 1
  %v1011 = vmul.f32 %v215, %v1009
  %v1012 = vadd.f32 %v1008, %v1011
  %v1014 = vrot.slane %v641, 2
  %v1016 = vmul.f32 %v215, %v1014
  %v1017 = vadd.f32 %v555, %v1016
  %v1019 = vrot.slane %v647, 2
  %v1021 = vmul.f32 %v543, %v1019
  %v1022 = vadd.f32 %v1017, %v1021
  %v1024 = vrot.slane %v653, 2
  %v1026 = vmul.f32 %v539, %v1024
  %v1027 = vadd.f32 %v1022, %v1026
  %v1028 = vmul.f32 %v112, %v1014
  %v1029 = vadd.f32 %v559, %v1028
  %v1030 = vmul.f32 %v545, %v1019
  %v1031 = vadd.f32 %v1029, %v1030
  %v1032 = vmul.f32 %v544, %v1024
  %v1033 = vadd.f32 %v1031, %v1032
  %v1034 = vrot.slane %v647, 1
  %v1036 = vmul.f32 %v112, %v1034
  %v1037 = vadd.f32 %v1036, 0.21000001
  %v1038 = vrot.slane %v653, 1
  %v1040 = vmul.f32 %v215, %v1038
  %v1041 = vadd.f32 %v1037, %v1040
  %v1043 = vrot.slane %v667, 1
  %v1045 = vmul.f32 %v215, %v1043
  %v1047 = vrot.slane %v682, 1
  %v1049 = vmul.f32 %v525, %v1047
  %v1050 = vadd.f32 %v1045, %v1049
  %v1052 = vrot.slane %v691, 1
  %v1054 = vmul.f32 %v526, %v1052
  %v1055 = vadd.f32 %v1050, %v1054
  %v1057 = vrot.slane %v672, 1
  %v1059 = vmul.f32 %v215, %v1057
  %v1061 = vrot.slane %v686, 1
  %v1063 = vmul.f32 %v525, %v1061
  %v1064 = vadd.f32 %v1059, %v1063
  %v1066 = vrot.slane %v693, 1
  %v1068 = vmul.f32 %v526, %v1066
  %v1069 = vadd.f32 %v1064, %v1068
  %v1071 = vrot.slane %v677, 1
  %v1073 = vmul.f32 %v215, %v1071
  %v1075 = vrot.slane %v689, 1
  %v1077 = vmul.f32 %v525, %v1075
  %v1078 = vadd.f32 %v1073, %v1077
  %v1080 = vrot.slane %v695, 1
  %v1082 = vmul.f32 %v526, %v1080
  %v1083 = vadd.f32 %v1078, %v1082
  %v1084 = vrot.slane %v667, 2
  %v1086 = vmul.f32 %v568, %v1084
  %v1087 = vrot.slane %v682, 2
  %v1089 = vmul.f32 %v577, %v1087
  %v1090 = vadd.f32 %v1086, %v1089
  %v1091 = vrot.slane %v691, 2
  %v1093 = vmul.f32 %v580, %v1091
  %v1094 = vadd.f32 %v1090, %v1093
  %v1095 = vrot.slane %v672, 2
  %v1097 = vmul.f32 %v568, %v1095
  %v1098 = vrot.slane %v686, 2
  %v1100 = vmul.f32 %v577, %v1098
  %v1101 = vadd.f32 %v1097, %v1100
  %v1102 = vrot.slane %v693, 2
  %v1104 = vmul.f32 %v580, %v1102
  %v1105 = vadd.f32 %v1101, %v1104
  %v1106 = vrot.slane %v677, 2
  %v1108 = vmul.f32 %v568, %v1106
  %v1109 = vrot.slane %v689, 2
  %v1111 = vmul.f32 %v577, %v1109
  %v1112 = vadd.f32 %v1108, %v1111
  %v1113 = vrot.slane %v695, 2
  %v1115 = vmul.f32 %v580, %v1113
  %v1116 = vadd.f32 %v1112, %v1115
  %v1117 = vmul.f32 %v583, %v1084
  %v1118 = vmul.f32 %v585, %v1087
  %v1119 = vadd.f32 %v1117, %v1118
  %v1120 = vmul.f32 %v587, %v1091
  %v1121 = vadd.f32 %v1119, %v1120
  %v1122 = vmul.f32 %v583, %v1095
  %v1123 = vmul.f32 %v585, %v1098
  %v1124 = vadd.f32 %v1122, %v1123
  %v1125 = vmul.f32 %v587, %v1102
  %v1126 = vadd.f32 %v1124, %v1125
  %v1127 = vmul.f32 %v583, %v1106
  %v1128 = vmul.f32 %v585, %v1109
  %v1129 = vadd.f32 %v1127, %v1128
  %v1130 = vmul.f32 %v587, %v1113
  %v1131 = vadd.f32 %v1129, %v1130
  %v1133 = vrot.slane %v701, 1
  %v1135 = vmul.f32 %v215, %v1133
  %v1136 = vadd.f32 %v1135, 0.09
  %v1138 = vrot.slane %v707, 1
  %v1140 = vmul.f32 %v525, %v1138
  %v1141 = vadd.f32 %v1136, %v1140
  %v1143 = vrot.slane %v712, 1
  %v1145 = vmul.f32 %v526, %v1143
  %v1146 = vadd.f32 %v1141, %v1145
  %v1147 = vrot.slane %v701, 2
  %v1149 = vmul.f32 %v568, %v1147
  %v1150 = vadd.f32 %v591, %v1149
  %v1151 = vrot.slane %v707, 2
  %v1153 = vmul.f32 %v577, %v1151
  %v1154 = vadd.f32 %v1150, %v1153
  %v1155 = vrot.slane %v712, 2
  %v1157 = vmul.f32 %v580, %v1155
  %v1158 = vadd.f32 %v1154, %v1157
  %v1159 = vmul.f32 %v583, %v1147
  %v1160 = vadd.f32 %v595, %v1159
  %v1161 = vmul.f32 %v585, %v1151
  %v1162 = vadd.f32 %v1160, %v1161
  %v1163 = vmul.f32 %v587, %v1155
  %v1164 = vadd.f32 %v1162, %v1163
  %v1166 = vrot.slane %v715, 2
  %v1168 = vmul.f32 %v602, %v1166
  %v1170 = vrot.slane %v723, 2
  %v1172 = vmul.f32 %v606, %v1170
  %v1173 = vadd.f32 %v1168, %v1172
  %v1175 = vrot.slane %v728, 2
  %v1177 = vmul.f32 %v610, %v1175
  %v1178 = vadd.f32 %v1173, %v1177
  %v1179 = vrot.slane %v533, 2
  %v1181 = vmul.f32 %v602, %v1179
  %v1182 = vrot.slane %v531, 2
  %v1184 = vmul.f32 %v606, %v1182
  %v1185 = vadd.f32 %v1181, %v1184
  %v1186 = vrot.slane %v535, 2
  %v1188 = vmul.f32 %v610, %v1186
  %v1189 = vadd.f32 %v1185, %v1188
  %v1191 = vrot.slane %v721, 2
  %v1193 = vmul.f32 %v602, %v1191
  %v1195 = vrot.slane %v726, 2
  %v1197 = vmul.f32 %v606, %v1195
  %v1198 = vadd.f32 %v1193, %v1197
  %v1200 = vrot.slane %v730, 2
  %v1202 = vmul.f32 %v610, %v1200
  %v1203 = vadd.f32 %v1198, %v1202
  %v1204 = vmul.f32 %v614, %v1166
  %v1205 = vmul.f32 %v618, %v1170
  %v1206 = vadd.f32 %v1204, %v1205
  %v1207 = vmul.f32 %v621, %v1175
  %v1208 = vadd.f32 %v1206, %v1207
  %v1209 = vmul.f32 %v614, %v1179
  %v1210 = vmul.f32 %v618, %v1182
  %v1211 = vadd.f32 %v1209, %v1210
  %v1212 = vmul.f32 %v621, %v1186
  %v1213 = vadd.f32 %v1211, %v1212
  %v1214 = vmul.f32 %v614, %v1191
  %v1215 = vmul.f32 %v618, %v1195
  %v1216 = vadd.f32 %v1214, %v1215
  %v1217 = vmul.f32 %v621, %v1200
  %v1218 = vadd.f32 %v1216, %v1217
  %v1219 = vmul.f32 %v626, %v1166
  %v1220 = vmul.f32 %v631, %v1170
  %v1221 = vadd.f32 %v1219, %v1220
  %v1222 = vmul.f32 %v635, %v1175
  %v1223 = vadd.f32 %v1221, %v1222
  %v1224 = vmul.f32 %v626, %v1179
  %v1225 = vmul.f32 %v631, %v1182
  %v1226 = vadd.f32 %v1224, %v1225
  %v1227 = vmul.f32 %v635, %v1186
  %v1228 = vadd.f32 %v1226, %v1227
  %v1229 = vmul.f32 %v626, %v1191
  %v1230 = vmul.f32 %v631, %v1195
  %v1231 = vadd.f32 %v1229, %v1230
  %v1232 = vmul.f32 %v635, %v1200
  %v1233 = vadd.f32 %v1231, %v1232
  %v1235 = vrot.slane %v736, 2
  %v1237 = vmul.f32 %v602, %v1235
  %v1238 = vadd.f32 %v641, %v1237
  %v1240 = vrot.slane %v742, 2
  %v1242 = vmul.f32 %v606, %v1240
  %v1243 = vadd.f32 %v1238, %v1242
  %v1245 = vrot.slane %v748, 2
  %v1247 = vmul.f32 %v610, %v1245
  %v1248 = vadd.f32 %v1243, %v1247
  %v1249 = vmul.f32 %v614, %v1235
  %v1250 = vadd.f32 %v647, %v1249
  %v1251 = vmul.f32 %v618, %v1240
  %v1252 = vadd.f32 %v1250, %v1251
  %v1253 = vmul.f32 %v621, %v1245
  %v1254 = vadd.f32 %v1252, %v1253
  %v1255 = vmul.f32 %v626, %v1235
  %v1256 = vadd.f32 %v653, %v1255
  %v1257 = vmul.f32 %v631, %v1240
  %v1258 = vadd.f32 %v1256, %v1257
  %v1259 = vmul.f32 %v635, %v1245
  %v1260 = vadd.f32 %v1258, %v1259
  %v1262 = vrot.slane %v883, 2
  %v1264 = vmul.f32 %v215, %v1262
  %v1266 = vrot.slane %v901, 1
  %v1268 = vmul.f32 %v523, %v1266
  %v1269 = vadd.f32 %v1264, %v1268
  %v1271 = vrot.slane %v890, 2
  %v1273 = vmul.f32 %v215, %v1271
  %v1275 = vrot.slane %v906, 1
  %v1277 = vmul.f32 %v523, %v1275
  %v1278 = vadd.f32 %v1273, %v1277
  %v1280 = vrot.slane %v897, 2
  %v1282 = vmul.f32 %v215, %v1280
  %v1284 = vrot.slane %v911, 1
  %v1286 = vmul.f32 %v523, %v1284
  %v1287 = vadd.f32 %v1282, %v1286
  %v1288 = vmul.f32 %v112, %v1262
  %v1289 = vmul.f32 %v215, %v1266
  %v1290 = vadd.f32 %v1288, %v1289
  %v1291 = vmul.f32 %v112, %v1271
  %v1292 = vmul.f32 %v215, %v1275
  %v1293 = vadd.f32 %v1291, %v1292
  %v1294 = vmul.f32 %v112, %v1280
  %v1295 = vmul.f32 %v215, %v1284
  %v1296 = vadd.f32 %v1294, %v1295
  %v1297 = vadd.f32 %v923, 0.01
  %v1299 = vrot.slane %v928, 2
  %v1301 = vmul.f32 %v215, %v1299
  %v1302 = vadd.f32 %v1301, 0.02
  %v1304 = vrot.slane %v934, 1
  %v1306 = vmul.f32 %v523, %v1304
  %v1307 = vadd.f32 %v1302, %v1306
  %v1308 = vmul.f32 %v112, %v1299
  %v1309 = vadd.f32 %v1308, 0.03
  %v1310 = vmul.f32 %v215, %v1304
  %v1311 = vadd.f32 %v1309, %v1310
  %v1313 = vrot.slane %v948, 1
  %v1315 = vmul.f32 %v215, %v1313
  %v1317 = vrot.slane %v998, 2
  %v1319 = vmul.f32 %v112, %v1317
  %v1320 = vadd.f32 %v1315, %v1319
  %v1322 = vrot.slane %v962, 1
  %v1324 = vmul.f32 %v215, %v1322
  %v1326 = vrot.slane %v1005, 2
  %v1328 = vmul.f32 %v112, %v1326
  %v1329 = vadd.f32 %v1324, %v1328
  %v1331 = vrot.slane %v976, 1
  %v1333 = vmul.f32 %v215, %v1331
  %v1335 = vrot.slane %v1012, 2
  %v1337 = vmul.f32 %v112, %v1335
  %v1338 = vadd.f32 %v1333, %v1337
  %v1339 = vrot.slane %v948, 2
  %v1341 = vmul.f32 %v539, %v1339
  %v1343 = vrot.slane %v981, 2
  %v1345 = vmul.f32 %v215, %v1343
  %v1346 = vadd.f32 %v1341, %v1345
  %v1347 = vrot.slane %v998, 3
  %v1349 = vmul.f32 %v543, %v1347
  %v1350 = vadd.f32 %v1346, %v1349
  %v1351 = vrot.slane %v962, 2
  %v1353 = vmul.f32 %v539, %v1351
  %v1355 = vrot.slane %v986, 2
  %v1357 = vmul.f32 %v215, %v1355
  %v1358 = vadd.f32 %v1353, %v1357
  %v1359 = vrot.slane %v1005, 3
  %v1361 = vmul.f32 %v543, %v1359
  %v1362 = vadd.f32 %v1358, %v1361
  %v1363 = vrot.slane %v976, 2
  %v1365 = vmul.f32 %v539, %v1363
  %v1367 = vrot.slane %v991, 2
  %v1369 = vmul.f32 %v215, %v1367
  %v1370 = vadd.f32 %v1365, %v1369
  %v1371 = vrot.slane %v1012, 3
  %v1373 = vmul.f32 %v543, %v1371
  %v1374 = vadd.f32 %v1370, %v1373
  %v1375 = vmul.f32 %v544, %v1339
  %v1376 = vmul.f32 %v112, %v1343
  %v1377 = vadd.f32 %v1375, %v1376
  %v1378 = vmul.f32 %v545, %v1347
  %v1379 = vadd.f32 %v1377, %v1378
  %v1380 = vmul.f32 %v544, %v1351
  %v1381 = vmul.f32 %v112, %v1355
  %v1382 = vadd.f32 %v1380, %v1381
  %v1383 = vmul.f32 %v545, %v1359
  %v1384 = vadd.f32 %v1382, %v1383
  %v1385 = vmul.f32 %v544, %v1363
  %v1386 = vmul.f32 %v112, %v1367
  %v1387 = vadd.f32 %v1385, %v1386
  %v1388 = vmul.f32 %v545, %v1371
  %v1389 = vadd.f32 %v1387, %v1388
  %v1391 = vrot.slane %v1027, 1
  %v1393 = vmul.f32 %v215, %v1391
  %v1394 = vadd.f32 %v1393, 0.01
  %v1396 = vrot.slane %v1041, 2
  %v1398 = vmul.f32 %v112, %v1396
  %v1399 = vadd.f32 %v1394, %v1398
  %v1400 = vrot.slane %v1027, 2
  %v1402 = vmul.f32 %v539, %v1400
  %v1403 = vadd.f32 %v1402, 0.02
  %v1405 = vrot.slane %v1033, 2
  %v1407 = vmul.f32 %v215, %v1405
  %v1408 = vadd.f32 %v1403, %v1407
  %v1409 = vrot.slane %v1041, 3
  %v1411 = vmul.f32 %v543, %v1409
  %v1412 = vadd.f32 %v1408, %v1411
  %v1413 = vmul.f32 %v544, %v1400
  %v1414 = vadd.f32 %v1413, 0.03
  %v1415 = vmul.f32 %v112, %v1405
  %v1416 = vadd.f32 %v1414, %v1415
  %v1417 = vmul.f32 %v545, %v1409
  %v1418 = vadd.f32 %v1416, %v1417
  %v1420 = vrot.slane %v1055, 3
  %v1422 = vmul.f32 %v545, %v1420
  %v1424 = vrot.slane %v1094, 2
  %v1426 = vmul.f32 %v544, %v1424
  %v1427 = vadd.f32 %v1422, %v1426
  %v1429 = vrot.slane %v1121, 2
  %v1431 = vmul.f32 %v112, %v1429
  %v1432 = vadd.f32 %v1427, %v1431
  %v1434 = vrot.slane %v1069, 3
  %v1436 = vmul.f32 %v545, %v1434
  %v1438 = vrot.slane %v1105, 2
  %v1440 = vmul.f32 %v544, %v1438
  %v1441 = vadd.f32 %v1436, %v1440
  %v1443 = vrot.slane %v1126, 2
  %v1445 = vmul.f32 %v112, %v1443
  %v1446 = vadd.f32 %v1441, %v1445
  %v1448 = vrot.slane %v1083, 3
  %v1450 = vmul.f32 %v545, %v1448
  %v1452 = vrot.slane %v1116, 2
  %v1454 = vmul.f32 %v544, %v1452
  %v1455 = vadd.f32 %v1450, %v1454
  %v1457 = vrot.slane %v1131, 2
  %v1459 = vmul.f32 %v112, %v1457
  %v1460 = vadd.f32 %v1455, %v1459
  %v1461 = vrot.slane %v1055, 4
  %v1463 = vmul.f32 %v756, %v1461
  %v1464 = vrot.slane %v1094, 3
  %v1466 = vmul.f32 %v764, %v1464
  %v1467 = vadd.f32 %v1463, %v1466
  %v1468 = vrot.slane %v1121, 3
  %v1470 = vmul.f32 %v543, %v1468
  %v1471 = vadd.f32 %v1467, %v1470
  %v1472 = vrot.slane %v1069, 4
  %v1474 = vmul.f32 %v756, %v1472
  %v1475 = vrot.slane %v1105, 3
  %v1477 = vmul.f32 %v764, %v1475
  %v1478 = vadd.f32 %v1474, %v1477
  %v1479 = vrot.slane %v1126, 3
  %v1481 = vmul.f32 %v543, %v1479
  %v1482 = vadd.f32 %v1478, %v1481
  %v1483 = vrot.slane %v1083, 4
  %v1485 = vmul.f32 %v756, %v1483
  %v1486 = vrot.slane %v1116, 3
  %v1488 = vmul.f32 %v764, %v1486
  %v1489 = vadd.f32 %v1485, %v1488
  %v1490 = vrot.slane %v1131, 3
  %v1492 = vmul.f32 %v543, %v1490
  %v1493 = vadd.f32 %v1489, %v1492
  %v1494 = vmul.f32 %v767, %v1461
  %v1495 = vmul.f32 %v770, %v1464
  %v1496 = vadd.f32 %v1494, %v1495
  %v1497 = vmul.f32 %v545, %v1468
  %v1498 = vadd.f32 %v1496, %v1497
  %v1499 = vmul.f32 %v767, %v1472
  %v1500 = vmul.f32 %v770, %v1475
  %v1501 = vadd.f32 %v1499, %v1500
  %v1502 = vmul.f32 %v545, %v1479
  %v1503 = vadd.f32 %v1501, %v1502
  %v1504 = vmul.f32 %v767, %v1483
  %v1505 = vmul.f32 %v770, %v1486
  %v1506 = vadd.f32 %v1504, %v1505
  %v1507 = vmul.f32 %v545, %v1490
  %v1508 = vadd.f32 %v1506, %v1507
  %v1510 = vrot.slane %v1146, 3
  %v1512 = vmul.f32 %v545, %v1510
  %v1513 = vadd.f32 %v771, %v1512
  %v1515 = vrot.slane %v1158, 2
  %v1517 = vmul.f32 %v544, %v1515
  %v1518 = vadd.f32 %v1513, %v1517
  %v1520 = vrot.slane %v1164, 2
  %v1522 = vmul.f32 %v112, %v1520
  %v1523 = vadd.f32 %v1518, %v1522
  %v1524 = vrot.slane %v1146, 4
  %v1526 = vmul.f32 %v756, %v1524
  %v1527 = vadd.f32 %v777, %v1526
  %v1528 = vrot.slane %v1158, 3
  %v1530 = vmul.f32 %v764, %v1528
  %v1531 = vadd.f32 %v1527, %v1530
  %v1532 = vrot.slane %v1164, 3
  %v1534 = vmul.f32 %v543, %v1532
  %v1535 = vadd.f32 %v1531, %v1534
  %v1536 = vmul.f32 %v767, %v1524
  %v1537 = vadd.f32 %v781, %v1536
  %v1538 = vmul.f32 %v770, %v1528
  %v1539 = vadd.f32 %v1537, %v1538
  %v1540 = vmul.f32 %v545, %v1532
  %v1541 = vadd.f32 %v1539, %v1540
  %v1543 = vrot.slane %v1178, 3
  %v1545 = vmul.f32 %v545, %v1543
  %v1547 = vrot.slane %v1208, 3
  %v1549 = vmul.f32 %v767, %v1547
  %v1550 = vadd.f32 %v1545, %v1549
  %v1552 = vrot.slane %v1223, 3
  %v1554 = vmul.f32 %v770, %v1552
  %v1555 = vadd.f32 %v1550, %v1554
  %v1557 = vrot.slane %v1189, 3
  %v1559 = vmul.f32 %v545, %v1557
  %v1561 = vrot.slane %v1213, 3
  %v1563 = vmul.f32 %v767, %v1561
  %v1564 = vadd.f32 %v1559, %v1563
  %v1566 = vrot.slane %v1228, 3
  %v1568 = vmul.f32 %v770, %v1566
  %v1569 = vadd.f32 %v1564, %v1568
  %v1571 = vrot.slane %v1203, 3
  %v1573 = vmul.f32 %v545, %v1571
  %v1575 = vrot.slane %v1218, 3
  %v1577 = vmul.f32 %v767, %v1575
  %v1578 = vadd.f32 %v1573, %v1577
  %v1580 = vrot.slane %v1233, 3
  %v1582 = vmul.f32 %v770, %v1580
  %v1583 = vadd.f32 %v1578, %v1582
  %v1584 = vrot.slane %v1178, 4
  %v1586 = vmul.f32 %v783, %v1584
  %v1587 = vrot.slane %v1208, 4
  %v1589 = vmul.f32 %v795, %v1587
  %v1590 = vadd.f32 %v1586, %v1589
  %v1591 = vrot.slane %v1223, 4
  %v1593 = vmul.f32 %v807, %v1591
  %v1594 = vadd.f32 %v1590, %v1593
  %v1595 = vrot.slane %v1189, 4
  %v1597 = vmul.f32 %v783, %v1595
  %v1598 = vrot.slane %v1213, 4
  %v1600 = vmul.f32 %v795, %v1598
  %v1601 = vadd.f32 %v1597, %v1600
  %v1602 = vrot.slane %v1228, 4
  %v1604 = vmul.f32 %v807, %v1602
  %v1605 = vadd.f32 %v1601, %v1604
  %v1606 = vrot.slane %v1203, 4
  %v1608 = vmul.f32 %v783, %v1606
  %v1609 = vrot.slane %v1218, 4
  %v1611 = vmul.f32 %v795, %v1609
  %v1612 = vadd.f32 %v1608, %v1611
  %v1613 = vrot.slane %v1233, 4
  %v1615 = vmul.f32 %v807, %v1613
  %v1616 = vadd.f32 %v1612, %v1615
  %v1617 = vmul.f32 %v809, %v1584
  %v1618 = vmul.f32 %v814, %v1587
  %v1619 = vadd.f32 %v1617, %v1618
  %v1620 = vmul.f32 %v819, %v1591
  %v1621 = vadd.f32 %v1619, %v1620
  %v1622 = vmul.f32 %v809, %v1595
  %v1623 = vmul.f32 %v814, %v1598
  %v1624 = vadd.f32 %v1622, %v1623
  %v1625 = vmul.f32 %v819, %v1602
  %v1626 = vadd.f32 %v1624, %v1625
  %v1627 = vmul.f32 %v809, %v1606
  %v1628 = vmul.f32 %v814, %v1609
  %v1629 = vadd.f32 %v1627, %v1628
  %v1630 = vmul.f32 %v819, %v1613
  %v1631 = vadd.f32 %v1629, %v1630
  %v1633 = vrot.slane %v1248, 3
  %v1635 = vmul.f32 %v545, %v1633
  %v1636 = vadd.f32 %v826, %v1635
  %v1638 = vrot.slane %v1254, 3
  %v1640 = vmul.f32 %v767, %v1638
  %v1641 = vadd.f32 %v1636, %v1640
  %v1643 = vrot.slane %v1260, 3
  %v1645 = vmul.f32 %v770, %v1643
  %v1646 = vadd.f32 %v1641, %v1645
  %v1647 = vrot.slane %v1248, 4
  %v1649 = vmul.f32 %v783, %v1647
  %v1650 = vadd.f32 %v837, %v1649
  %v1651 = vrot.slane %v1254, 4
  %v1653 = vmul.f32 %v795, %v1651
  %v1654 = vadd.f32 %v1650, %v1653
  %v1655 = vrot.slane %v1260, 4
  %v1657 = vmul.f32 %v807, %v1655
  %v1658 = vadd.f32 %v1654, %v1657
  %v1659 = vmul.f32 %v809, %v1647
  %v1660 = vadd.f32 %v843, %v1659
  %v1661 = vmul.f32 %v814, %v1651
  %v1662 = vadd.f32 %v1660, %v1661
  %v1663 = vmul.f32 %v819, %v1655
  %v1664 = vadd.f32 %v1662, %v1663
  %v1665 = vrot.slane %v215, 5
  %v1667 = vmul.f32 %v509, %v1665
  %v1668 = vrot.slane %v112, 5
  %v1670 = vmul.f32 %v510, %v1668
  %v1671 = vadd.f32 %v1667, %v1670
  %v1672 = vrot.slane %v523, 5
  %v1674 = vmul.f32 %v509, %v1672
  %v1675 = vmul.f32 %v510, %v1665
  %v1676 = vadd.f32 %v1674, %v1675
  %v1677 = vmul.f32 %v512, %v1665
  %v1678 = vmul.f32 %v516, %v1668
  %v1679 = vadd.f32 %v1677, %v1678
  %v1680 = vmul.f32 %v512, %v1672
  %v1681 = vmul.f32 %v516, %v1665
  %v1682 = vadd.f32 %v1680, %v1681
  %v1683 = vmul.f32 %v521, %v1665
  %v1684 = vmul.f32 %v522, %v1668
  %v1685 = vadd.f32 %v1683, %v1684
  %v1686 = vmul.f32 %v521, %v1672
  %v1687 = vmul.f32 %v522, %v1665
  %v1688 = vadd.f32 %v1686, %v1687
  %v1689 = vmul.f32 %v508, 0.01
  %v1691 = vrot.slane %v1689, 3
  %v1693 = vadd.f32 %v8, %v1691
  %v1694 = vmul.f32 %v509, 0.02
  %v1696 = vrot.slane %v1694, 3
  %v1698 = vadd.f32 %v1693, %v1696
  %v1699 = vmul.f32 %v510, 0.03
  %v1701 = vrot.slane %v1699, 3
  %v1703 = vadd.f32 %v1698, %v1701
  %v1704 = vmul.f32 %v511, 0.01
  %v1706 = vrot.slane %v1704, 2
  %v1708 = vadd.f32 %v8, %v1706
  %v1709 = vmul.f32 %v512, 0.02
  %v1711 = vrot.slane %v1709, 2
  %v1713 = vadd.f32 %v1708, %v1711
  %v1714 = vmul.f32 %v516, 0.03
  %v1716 = vrot.slane %v1714, 2
  %v1718 = vadd.f32 %v1713, %v1716
  %v1719 = vmul.f32 %v517, 0.01
  %v1721 = vrot.slane %v1719, 1
  %v1723 = vadd.f32 %v8, %v1721
  %v1724 = vmul.f32 %v521, 0.02
  %v1726 = vrot.slane %v1724, 1
  %v1728 = vadd.f32 %v1723, %v1726
  %v1729 = vmul.f32 %v522, 0.03
  %v1731 = vrot.slane %v1729, 1
  %v1733 = vadd.f32 %v1728, %v1731
  %v1734 = vrot.slane %v215, 6
  %v1736 = vmul.f32 %v508, %v1734
  %v1737 = vrot.slane %v539, 5
  %v1739 = vmul.f32 %v509, %v1737
  %v1740 = vadd.f32 %v1736, %v1739
  %v1741 = vrot.slane %v544, 5
  %v1743 = vmul.f32 %v510, %v1741
  %v1744 = vadd.f32 %v1740, %v1743
  %v1745 = vrot.slane %v112, 6
  %v1747 = vmul.f32 %v508, %v1745
  %v1748 = vrot.slane %v543, 5
  %v1750 = vmul.f32 %v509, %v1748
  %v1751 = vadd.f32 %v1747, %v1750
  %v1752 = vrot.slane %v545, 5
  %v1754 = vmul.f32 %v510, %v1752
  %v1755 = vadd.f32 %v1751, %v1754
  %v1756 = vmul.f32 %v511, %v1734
  %v1757 = vmul.f32 %v512, %v1737
  %v1758 = vadd.f32 %v1756, %v1757
  %v1759 = vmul.f32 %v516, %v1741
  %v1760 = vadd.f32 %v1758, %v1759
  %v1761 = vmul.f32 %v511, %v1745
  %v1762 = vmul.f32 %v512, %v1748
  %v1763 = vadd.f32 %v1761, %v1762
  %v1764 = vmul.f32 %v516, %v1752
  %v1765 = vadd.f32 %v1763, %v1764
  %v1766 = vmul.f32 %v517, %v1734
  %v1767 = vmul.f32 %v521, %v1737
  %v1768 = vadd.f32 %v1766, %v1767
  %v1769 = vmul.f32 %v522, %v1741
  %v1770 = vadd.f32 %v1768, %v1769
  %v1771 = vmul.f32 %v517, %v1745
  %v1772 = vmul.f32 %v521, %v1748
  %v1773 = vadd.f32 %v1771, %v1772
  %v1774 = vmul.f32 %v522, %v1752
  %v1775 = vadd.f32 %v1773, %v1774
  %v1776 = vrot.slane %v545, 6
  %v1778 = vmul.f32 %v508, %v1776
  %v1780 = vrot.slane %v756, 5
  %v1782 = vmul.f32 %v509, %v1780
  %v1783 = vadd.f32 %v1778, %v1782
  %v1785 = vrot.slane %v767, 5
  %v1787 = vmul.f32 %v510, %v1785
  %v1788 = vadd.f32 %v1783, %v1787
  %v1789 = vrot.slane %v544, 6
  %v1791 = vmul.f32 %v508, %v1789
  %v1793 = vrot.slane %v764, 5
  %v1795 = vmul.f32 %v509, %v1793
  %v1796 = vadd.f32 %v1791, %v1795
  %v1798 = vrot.slane %v770, 5
  %v1800 = vmul.f32 %v510, %v1798
  %v1801 = vadd.f32 %v1796, %v1800
  %v1802 = vmul.f32 %v511, %v1776
  %v1803 = vmul.f32 %v512, %v1780
  %v1804 = vadd.f32 %v1802, %v1803
  %v1805 = vmul.f32 %v516, %v1785
  %v1806 = vadd.f32 %v1804, %v1805
  %v1807 = vmul.f32 %v511, %v1789
  %v1808 = vmul.f32 %v512, %v1793
  %v1809 = vadd.f32 %v1807, %v1808
  %v1810 = vmul.f32 %v516, %v1798
  %v1811 = vadd.f32 %v1809, %v1810
  %v1812 = vmul.f32 %v517, %v1776
  %v1813 = vmul.f32 %v521, %v1780
  %v1814 = vadd.f32 %v1812, %v1813
  %v1815 = vmul.f32 %v522, %v1785
  %v1816 = vadd.f32 %v1814, %v1815
  %v1817 = vmul.f32 %v517, %v1789
  %v1818 = vmul.f32 %v521, %v1793
  %v1819 = vadd.f32 %v1817, %v1818
  %v1820 = vmul.f32 %v522, %v1798
  %v1821 = vadd.f32 %v1819, %v1820
  %v1823 = vrot.slane %v771, 6
  %v1825 = vmul.f32 %v508, %v1823
  %v1827 = vrot.slane %v1825, 3
  %v1829 = vadd.f32 %v8, %v1827
  %v1831 = vrot.slane %v777, 5
  %v1833 = vmul.f32 %v509, %v1831
  %v1835 = vrot.slane %v1833, 3
  %v1837 = vadd.f32 %v1829, %v1835
  %v1839 = vrot.slane %v781, 5
  %v1841 = vmul.f32 %v510, %v1839
  %v1843 = vrot.slane %v1841, 3
  %v1845 = vadd.f32 %v1837, %v1843
  %v1846 = vmul.f32 %v511, %v1823
  %v1848 = vrot.slane %v1846, 2
  %v1850 = vadd.f32 %v8, %v1848
  %v1851 = vmul.f32 %v512, %v1831
  %v1853 = vrot.slane %v1851, 2
  %v1855 = vadd.f32 %v1850, %v1853
  %v1856 = vmul.f32 %v516, %v1839
  %v1858 = vrot.slane %v1856, 2
  %v1860 = vadd.f32 %v1855, %v1858
  %v1861 = vmul.f32 %v517, %v1823
  %v1863 = vrot.slane %v1861, 1
  %v1865 = vadd.f32 %v8, %v1863
  %v1866 = vmul.f32 %v521, %v1831
  %v1868 = vrot.slane %v1866, 1
  %v1870 = vadd.f32 %v1865, %v1868
  %v1871 = vmul.f32 %v522, %v1839
  %v1873 = vrot.slane %v1871, 1
  %v1875 = vadd.f32 %v1870, %v1873
  %v1877 = vrot.slane %v783, 5
  %v1879 = vmul.f32 %v509, %v1877
  %v1880 = vadd.f32 %v1778, %v1879
  %v1882 = vrot.slane %v809, 5
  %v1884 = vmul.f32 %v510, %v1882
  %v1885 = vadd.f32 %v1880, %v1884
  %v1886 = vrot.slane %v767, 6
  %v1888 = vmul.f32 %v508, %v1886
  %v1890 = vrot.slane %v795, 5
  %v1892 = vmul.f32 %v509, %v1890
  %v1893 = vadd.f32 %v1888, %v1892
  %v1895 = vrot.slane %v814, 5
  %v1897 = vmul.f32 %v510, %v1895
  %v1898 = vadd.f32 %v1893, %v1897
  %v1899 = vrot.slane %v770, 6
  %v1901 = vmul.f32 %v508, %v1899
  %v1903 = vrot.slane %v807, 5
  %v1905 = vmul.f32 %v509, %v1903
  %v1906 = vadd.f32 %v1901, %v1905
  %v1908 = vrot.slane %v819, 5
  %v1910 = vmul.f32 %v510, %v1908
  %v1911 = vadd.f32 %v1906, %v1910
  %v1912 = vmul.f32 %v512, %v1877
  %v1913 = vadd.f32 %v1802, %v1912
  %v1914 = vmul.f32 %v516, %v1882
  %v1915 = vadd.f32 %v1913, %v1914
  %v1916 = vmul.f32 %v511, %v1886
  %v1917 = vmul.f32 %v512, %v1890
  %v1918 = vadd.f32 %v1916, %v1917
  %v1919 = vmul.f32 %v516, %v1895
  %v1920 = vadd.f32 %v1918, %v1919
  %v1921 = vmul.f32 %v511, %v1899
  %v1922 = vmul.f32 %v512, %v1903
  %v1923 = vadd.f32 %v1921, %v1922
  %v1924 = vmul.f32 %v516, %v1908
  %v1925 = vadd.f32 %v1923, %v1924
  %v1926 = vmul.f32 %v521, %v1877
  %v1927 = vadd.f32 %v1812, %v1926
  %v1928 = vmul.f32 %v522, %v1882
  %v1929 = vadd.f32 %v1927, %v1928
  %v1930 = vmul.f32 %v517, %v1886
  %v1931 = vmul.f32 %v521, %v1890
  %v1932 = vadd.f32 %v1930, %v1931
  %v1933 = vmul.f32 %v522, %v1895
  %v1934 = vadd.f32 %v1932, %v1933
  %v1935 = vmul.f32 %v517, %v1899
  %v1936 = vmul.f32 %v521, %v1903
  %v1937 = vadd.f32 %v1935, %v1936
  %v1938 = vmul.f32 %v522, %v1908
  %v1939 = vadd.f32 %v1937, %v1938
  %v1941 = vrot.slane %v826, 6
  %v1943 = vmul.f32 %v508, %v1941
  %v1945 = vrot.slane %v1943, 3
  %v1947 = vadd.f32 %v8, %v1945
  %v1949 = vrot.slane %v837, 5
  %v1951 = vmul.f32 %v509, %v1949
  %v1953 = vrot.slane %v1951, 3
  %v1955 = vadd.f32 %v1947, %v1953
  %v1957 = vrot.slane %v843, 5
  %v1959 = vmul.f32 %v510, %v1957
  %v1961 = vrot.slane %v1959, 3
  %v1963 = vadd.f32 %v1955, %v1961
  %v1964 = vmul.f32 %v511, %v1941
  %v1966 = vrot.slane %v1964, 2
  %v1968 = vadd.f32 %v8, %v1966
  %v1969 = vmul.f32 %v512, %v1949
  %v1971 = vrot.slane %v1969, 2
  %v1973 = vadd.f32 %v1968, %v1971
  %v1974 = vmul.f32 %v516, %v1957
  %v1976 = vrot.slane %v1974, 2
  %v1978 = vadd.f32 %v1973, %v1976
  %v1979 = vmul.f32 %v517, %v1941
  %v1981 = vrot.slane %v1979, 1
  %v1983 = vadd.f32 %v8, %v1981
  %v1984 = vmul.f32 %v521, %v1949
  %v1986 = vrot.slane %v1984, 1
  %v1988 = vadd.f32 %v1983, %v1986
  %v1989 = vmul.f32 %v522, %v1957
  %v1991 = vrot.slane %v1989, 1
  %v1993 = vadd.f32 %v1988, %v1991
  %v1995 = vrot.slane %v853, 6
  %v1997 = vmul.f32 %v508, %v1995
  %v1999 = vrot.slane %v1269, 5
  %v2001 = vmul.f32 %v509, %v1999
  %v2002 = vadd.f32 %v1997, %v2001
  %v2004 = vrot.slane %v1290, 5
  %v2006 = vmul.f32 %v510, %v2004
  %v2007 = vadd.f32 %v2002, %v2006
  %v2009 = vrot.slane %v866, 6
  %v2011 = vmul.f32 %v508, %v2009
  %v2013 = vrot.slane %v1278, 5
  %v2015 = vmul.f32 %v509, %v2013
  %v2016 = vadd.f32 %v2011, %v2015
  %v2018 = vrot.slane %v1293, 5
  %v2020 = vmul.f32 %v510, %v2018
  %v2021 = vadd.f32 %v2016, %v2020
  %v2023 = vrot.slane %v879, 6
  %v2025 = vmul.f32 %v508, %v2023
  %v2027 = vrot.slane %v1287, 5
  %v2029 = vmul.f32 %v509, %v2027
  %v2030 = vadd.f32 %v2025, %v2029
  %v2032 = vrot.slane %v1296, 5
  %v2034 = vmul.f32 %v510, %v2032
  %v2035 = vadd.f32 %v2030, %v2034
  %v2036 = vmul.f32 %v511, %v1995
  %v2037 = vmul.f32 %v512, %v1999
  %v2038 = vadd.f32 %v2036, %v2037
  %v2039 = vmul.f32 %v516, %v2004
  %v2040 = vadd.f32 %v2038, %v2039
  %v2041 = vmul.f32 %v511, %v2009
  %v2042 = vmul.f32 %v512, %v2013
  %v2043 = vadd.f32 %v2041, %v2042
  %v2044 = vmul.f32 %v516, %v2018
  %v2045 = vadd.f32 %v2043, %v2044
  %v2046 = vmul.f32 %v511, %v2023
  %v2047 = vmul.f32 %v512, %v2027
  %v2048 = vadd.f32 %v2046, %v2047
  %v2049 = vmul.f32 %v516, %v2032
  %v2050 = vadd.f32 %v2048, %v2049
  %v2051 = vmul.f32 %v517, %v1995
  %v2052 = vmul.f32 %v521, %v1999
  %v2053 = vadd.f32 %v2051, %v2052
  %v2054 = vmul.f32 %v522, %v2004
  %v2055 = vadd.f32 %v2053, %v2054
  %v2056 = vmul.f32 %v517, %v2009
  %v2057 = vmul.f32 %v521, %v2013
  %v2058 = vadd.f32 %v2056, %v2057
  %v2059 = vmul.f32 %v522, %v2018
  %v2060 = vadd.f32 %v2058, %v2059
  %v2061 = vmul.f32 %v517, %v2023
  %v2062 = vmul.f32 %v521, %v2027
  %v2063 = vadd.f32 %v2061, %v2062
  %v2064 = vmul.f32 %v522, %v2032
  %v2065 = vadd.f32 %v2063, %v2064
  %v2067 = vrot.slane %v1297, 6
  %v2069 = vmul.f32 %v508, %v2067
  %v2071 = vrot.slane %v2069, 3
  %v2073 = vadd.f32 %v8, %v2071
  %v2075 = vrot.slane %v1307, 5
  %v2077 = vmul.f32 %v509, %v2075
  %v2079 = vrot.slane %v2077, 3
  %v2081 = vadd.f32 %v2073, %v2079
  %v2083 = vrot.slane %v1311, 5
  %v2085 = vmul.f32 %v510, %v2083
  %v2087 = vrot.slane %v2085, 3
  %v2089 = vadd.f32 %v2081, %v2087
  %v2090 = vmul.f32 %v511, %v2067
  %v2092 = vrot.slane %v2090, 2
  %v2094 = vadd.f32 %v8, %v2092
  %v2095 = vmul.f32 %v512, %v2075
  %v2097 = vrot.slane %v2095, 2
  %v2099 = vadd.f32 %v2094, %v2097
  %v2100 = vmul.f32 %v516, %v2083
  %v2102 = vrot.slane %v2100, 2
  %v2104 = vadd.f32 %v2099, %v2102
  %v2105 = vmul.f32 %v517, %v2067
  %v2107 = vrot.slane %v2105, 1
  %v2109 = vadd.f32 %v8, %v2107
  %v2110 = vmul.f32 %v521, %v2075
  %v2112 = vrot.slane %v2110, 1
  %v2114 = vadd.f32 %v2109, %v2112
  %v2115 = vmul.f32 %v522, %v2083
  %v2117 = vrot.slane %v2115, 1
  %v2119 = vadd.f32 %v2114, %v2117
  %v2121 = vrot.slane %v1320, 6
  %v2123 = vmul.f32 %v508, %v2121
  %v2125 = vrot.slane %v1350, 5
  %v2127 = vmul.f32 %v509, %v2125
  %v2128 = vadd.f32 %v2123, %v2127
  %v2130 = vrot.slane %v1379, 5
  %v2132 = vmul.f32 %v510, %v2130
  %v2133 = vadd.f32 %v2128, %v2132
  %v2135 = vrot.slane %v1329, 6
  %v2137 = vmul.f32 %v508, %v2135
  %v2139 = vrot.slane %v1362, 5
  %v2141 = vmul.f32 %v509, %v2139
  %v2142 = vadd.f32 %v2137, %v2141
  %v2144 = vrot.slane %v1384, 5
  %v2146 = vmul.f32 %v510, %v2144
  %v2147 = vadd.f32 %v2142, %v2146
  %v2149 = vrot.slane %v1338, 6
  %v2151 = vmul.f32 %v508, %v2149
  %v2153 = vrot.slane %v1374, 5
  %v2155 = vmul.f32 %v509, %v2153
  %v2156 = vadd.f32 %v2151, %v2155
  %v2158 = vrot.slane %v1389, 5
  %v2160 = vmul.f32 %v510, %v2158
  %v2161 = vadd.f32 %v2156, %v2160
  %v2162 = vmul.f32 %v511, %v2121
  %v2163 = vmul.f32 %v512, %v2125
  %v2164 = vadd.f32 %v2162, %v2163
  %v2165 = vmul.f32 %v516, %v2130
  %v2166 = vadd.f32 %v2164, %v2165
  %v2167 = vmul.f32 %v511, %v2135
  %v2168 = vmul.f32 %v512, %v2139
  %v2169 = vadd.f32 %v2167, %v2168
  %v2170 = vmul.f32 %v516, %v2144
  %v2171 = vadd.f32 %v2169, %v2170
  %v2172 = vmul.f32 %v511, %v2149
  %v2173 = vmul.f32 %v512, %v2153
  %v2174 = vadd.f32 %v2172, %v2173
  %v2175 = vmul.f32 %v516, %v2158
  %v2176 = vadd.f32 %v2174, %v2175
  %v2177 = vmul.f32 %v517, %v2121
  %v2178 = vmul.f32 %v521, %v2125
  %v2179 = vadd.f32 %v2177, %v2178
  %v2180 = vmul.f32 %v522, %v2130
  %v2181 = vadd.f32 %v2179, %v2180
  %v2182 = vmul.f32 %v517, %v2135
  %v2183 = vmul.f32 %v521, %v2139
  %v2184 = vadd.f32 %v2182, %v2183
  %v2185 = vmul.f32 %v522, %v2144
  %v2186 = vadd.f32 %v2184, %v2185
  %v2187 = vmul.f32 %v517, %v2149
  %v2188 = vmul.f32 %v521, %v2153
  %v2189 = vadd.f32 %v2187, %v2188
  %v2190 = vmul.f32 %v522, %v2158
  %v2191 = vadd.f32 %v2189, %v2190
  %v2193 = vrot.slane %v1399, 6
  %v2195 = vmul.f32 %v508, %v2193
  %v2197 = vrot.slane %v2195, 3
  %v2199 = vadd.f32 %v8, %v2197
  %v2201 = vrot.slane %v1412, 5
  %v2203 = vmul.f32 %v509, %v2201
  %v2205 = vrot.slane %v2203, 3
  %v2207 = vadd.f32 %v2199, %v2205
  %v2209 = vrot.slane %v1418, 5
  %v2211 = vmul.f32 %v510, %v2209
  %v2213 = vrot.slane %v2211, 3
  %v2215 = vadd.f32 %v2207, %v2213
  %v2216 = vmul.f32 %v511, %v2193
  %v2218 = vrot.slane %v2216, 2
  %v2220 = vadd.f32 %v8, %v2218
  %v2221 = vmul.f32 %v512, %v2201
  %v2223 = vrot.slane %v2221, 2
  %v2225 = vadd.f32 %v2220, %v2223
  %v2226 = vmul.f32 %v516, %v2209
  %v2228 = vrot.slane %v2226, 2
  %v2230 = vadd.f32 %v2225, %v2228
  %v2231 = vmul.f32 %v517, %v2193
  %v2233 = vrot.slane %v2231, 1
  %v2235 = vadd.f32 %v8, %v2233
  %v2236 = vmul.f32 %v521, %v2201
  %v2238 = vrot.slane %v2236, 1
  %v2240 = vadd.f32 %v2235, %v2238
  %v2241 = vmul.f32 %v522, %v2209
  %v2243 = vrot.slane %v2241, 1
  %v2245 = vadd.f32 %v2240, %v2243
  %v2247 = vrot.slane %v1432, 6
  %v2249 = vmul.f32 %v508, %v2247
  %v2251 = vrot.slane %v1471, 5
  %v2253 = vmul.f32 %v509, %v2251
  %v2254 = vadd.f32 %v2249, %v2253
  %v2256 = vrot.slane %v1498, 5
  %v2258 = vmul.f32 %v510, %v2256
  %v2259 = vadd.f32 %v2254, %v2258
  %v2261 = vrot.slane %v1446, 6
  %v2263 = vmul.f32 %v508, %v2261
  %v2265 = vrot.slane %v1482, 5
  %v2267 = vmul.f32 %v509, %v2265
  %v2268 = vadd.f32 %v2263, %v2267
  %v2270 = vrot.slane %v1503, 5
  %v2272 = vmul.f32 %v510, %v2270
  %v2273 = vadd.f32 %v2268, %v2272
  %v2275 = vrot.slane %v1460, 6
  %v2277 = vmul.f32 %v508, %v2275
  %v2279 = vrot.slane %v1493, 5
  %v2281 = vmul.f32 %v509, %v2279
  %v2282 = vadd.f32 %v2277, %v2281
  %v2284 = vrot.slane %v1508, 5
  %v2286 = vmul.f32 %v510, %v2284
  %v2287 = vadd.f32 %v2282, %v2286
  %v2288 = vmul.f32 %v511, %v2247
  %v2289 = vmul.f32 %v512, %v2251
  %v2290 = vadd.f32 %v2288, %v2289
  %v2291 = vmul.f32 %v516, %v2256
  %v2292 = vadd.f32 %v2290, %v2291
  %v2293 = vmul.f32 %v511, %v2261
  %v2294 = vmul.f32 %v512, %v2265
  %v2295 = vadd.f32 %v2293, %v2294
  %v2296 = vmul.f32 %v516, %v2270
  %v2297 = vadd.f32 %v2295, %v2296
  %v2298 = vmul.f32 %v511, %v2275
  %v2299 = vmul.f32 %v512, %v2279
  %v2300 = vadd.f32 %v2298, %v2299
  %v2301 = vmul.f32 %v516, %v2284
  %v2302 = vadd.f32 %v2300, %v2301
  %v2303 = vmul.f32 %v517, %v2247
  %v2304 = vmul.f32 %v521, %v2251
  %v2305 = vadd.f32 %v2303, %v2304
  %v2306 = vmul.f32 %v522, %v2256
  %v2307 = vadd.f32 %v2305, %v2306
  %v2308 = vmul.f32 %v517, %v2261
  %v2309 = vmul.f32 %v521, %v2265
  %v2310 = vadd.f32 %v2308, %v2309
  %v2311 = vmul.f32 %v522, %v2270
  %v2312 = vadd.f32 %v2310, %v2311
  %v2313 = vmul.f32 %v517, %v2275
  %v2314 = vmul.f32 %v521, %v2279
  %v2315 = vadd.f32 %v2313, %v2314
  %v2316 = vmul.f32 %v522, %v2284
  %v2317 = vadd.f32 %v2315, %v2316
  %v2319 = vrot.slane %v1523, 6
  %v2321 = vmul.f32 %v508, %v2319
  %v2323 = vrot.slane %v2321, 3
  %v2325 = vadd.f32 %v8, %v2323
  %v2327 = vrot.slane %v1535, 5
  %v2329 = vmul.f32 %v509, %v2327
  %v2331 = vrot.slane %v2329, 3
  %v2333 = vadd.f32 %v2325, %v2331
  %v2335 = vrot.slane %v1541, 5
  %v2337 = vmul.f32 %v510, %v2335
  %v2339 = vrot.slane %v2337, 3
  %v2341 = vadd.f32 %v2333, %v2339
  %v2342 = vmul.f32 %v511, %v2319
  %v2344 = vrot.slane %v2342, 2
  %v2346 = vadd.f32 %v8, %v2344
  %v2347 = vmul.f32 %v512, %v2327
  %v2349 = vrot.slane %v2347, 2
  %v2351 = vadd.f32 %v2346, %v2349
  %v2352 = vmul.f32 %v516, %v2335
  %v2354 = vrot.slane %v2352, 2
  %v2356 = vadd.f32 %v2351, %v2354
  %v2357 = vmul.f32 %v517, %v2319
  %v2359 = vrot.slane %v2357, 1
  %v2361 = vadd.f32 %v8, %v2359
  %v2362 = vmul.f32 %v521, %v2327
  %v2364 = vrot.slane %v2362, 1
  %v2366 = vadd.f32 %v2361, %v2364
  %v2367 = vmul.f32 %v522, %v2335
  %v2369 = vrot.slane %v2367, 1
  %v2371 = vadd.f32 %v2366, %v2369
  %v2373 = vrot.slane %v1555, 6
  %v2375 = vmul.f32 %v508, %v2373
  %v2377 = vrot.slane %v1594, 5
  %v2379 = vmul.f32 %v509, %v2377
  %v2380 = vadd.f32 %v2375, %v2379
  %v2382 = vrot.slane %v1621, 5
  %v2384 = vmul.f32 %v510, %v2382
  %v2385 = vadd.f32 %v2380, %v2384
  %v2387 = vrot.slane %v1569, 6
  %v2389 = vmul.f32 %v508, %v2387
  %v2391 = vrot.slane %v1605, 5
  %v2393 = vmul.f32 %v509, %v2391
  %v2394 = vadd.f32 %v2389, %v2393
  %v2396 = vrot.slane %v1626, 5
  %v2398 = vmul.f32 %v510, %v2396
  %v2399 = vadd.f32 %v2394, %v2398
  %v2401 = vrot.slane %v1583, 6
  %v2403 = vmul.f32 %v508, %v2401
  %v2405 = vrot.slane %v1616, 5
  %v2407 = vmul.f32 %v509, %v2405
  %v2408 = vadd.f32 %v2403, %v2407
  %v2410 = vrot.slane %v1631, 5
  %v2412 = vmul.f32 %v510, %v2410
  %v2413 = vadd.f32 %v2408, %v2412
  %v2414 = vmul.f32 %v511, %v2373
  %v2415 = vmul.f32 %v512, %v2377
  %v2416 = vadd.f32 %v2414, %v2415
  %v2417 = vmul.f32 %v516, %v2382
  %v2418 = vadd.f32 %v2416, %v2417
  %v2419 = vmul.f32 %v511, %v2387
  %v2420 = vmul.f32 %v512, %v2391
  %v2421 = vadd.f32 %v2419, %v2420
  %v2422 = vmul.f32 %v516, %v2396
  %v2423 = vadd.f32 %v2421, %v2422
  %v2424 = vmul.f32 %v511, %v2401
  %v2425 = vmul.f32 %v512, %v2405
  %v2426 = vadd.f32 %v2424, %v2425
  %v2427 = vmul.f32 %v516, %v2410
  %v2428 = vadd.f32 %v2426, %v2427
  %v2429 = vmul.f32 %v517, %v2373
  %v2430 = vmul.f32 %v521, %v2377
  %v2431 = vadd.f32 %v2429, %v2430
  %v2432 = vmul.f32 %v522, %v2382
  %v2433 = vadd.f32 %v2431, %v2432
  %v2434 = vmul.f32 %v517, %v2387
  %v2435 = vmul.f32 %v521, %v2391
  %v2436 = vadd.f32 %v2434, %v2435
  %v2437 = vmul.f32 %v522, %v2396
  %v2438 = vadd.f32 %v2436, %v2437
  %v2439 = vmul.f32 %v517, %v2401
  %v2440 = vmul.f32 %v521, %v2405
  %v2441 = vadd.f32 %v2439, %v2440
  %v2442 = vmul.f32 %v522, %v2410
  %v2443 = vadd.f32 %v2441, %v2442
  %v2445 = vrot.slane %v1646, 6
  %v2447 = vmul.f32 %v508, %v2445
  %v2449 = vrot.slane %v2447, 3
  %v2451 = vadd.f32 %v8, %v2449
  %v2453 = vrot.slane %v1658, 5
  %v2455 = vmul.f32 %v509, %v2453
  %v2457 = vrot.slane %v2455, 3
  %v2459 = vadd.f32 %v2451, %v2457
  %v2461 = vrot.slane %v1664, 5
  %v2463 = vmul.f32 %v510, %v2461
  %v2465 = vrot.slane %v2463, 3
  %v2467 = vadd.f32 %v2459, %v2465
  %v2468 = vmul.f32 %v511, %v2445
  %v2470 = vrot.slane %v2468, 2
  %v2472 = vadd.f32 %v8, %v2470
  %v2473 = vmul.f32 %v512, %v2453
  %v2475 = vrot.slane %v2473, 2
  %v2477 = vadd.f32 %v2472, %v2475
  %v2478 = vmul.f32 %v516, %v2461
  %v2480 = vrot.slane %v2478, 2
  %v2482 = vadd.f32 %v2477, %v2480
  %v2483 = vmul.f32 %v517, %v2445
  %v2485 = vrot.slane %v2483, 1
  %v2487 = vadd.f32 %v8, %v2485
  %v2488 = vmul.f32 %v521, %v2453
  %v2490 = vrot.slane %v2488, 1
  %v2492 = vadd.f32 %v2487, %v2490
  %v2493 = vmul.f32 %v522, %v2461
  %v2495 = vrot.slane %v2493, 1
  %v2497 = vadd.f32 %v2492, %v2495
  %v2499 = vrot.slane %v508, 3
  %v2502 = vrot.slane %v509, 2
  %v2505 = vrot.slane %v510, 1
  %v2508 = vrot.slane %v8, 5
  %v2511 = vrot.slane %v511, 7
  %v2514 = vrot.slane %v512, 6
  %v2517 = vrot.slane %v516, 5
  %v2519 = vrot.slane %v8, 2
  %v2522 = vrot.slane %v517, 3
  %v2525 = vrot.slane %v521, 2
  %v2528 = vrot.slane %v522, 1
  %v2530 = vrot.slane %v8, 7
  %v2532 = vrot.slane %v508, 7
  %v2534 = vrot.slane %v509, 6
  %v2536 = vrot.slane %v510, 5
  %v2538 = vrot.slane %v8, 1
  %vm2540 = vcmask 1040384
  %v2541 = vsel %vm2540, %v2499, %v2502
  %vm2542 = vcmask 1041408
  %v2543 = vsel %vm2542, %v2541, %v2505
  %vm2544 = vcmask 1042432
  %v2545 = vsel %vm2544, %v2543, %v2508
  %vm2546 = vcmask 1043456
  %v2547 = vsel %vm2546, %v2545, %v2511
  %vm2548 = vcmask 1044480
  %v2549 = vsel %vm2548, %v2547, %v2514
  %vm2550 = vcmask 1045504
  %v2551 = vsel %vm2550, %v2549, %v2517
  %vm2552 = vcmask 1046528
  %v2553 = vsel %vm2552, %v2551, %v2519
  %v2554 = vsel %vm2540, %v2522, %v2525
  %v2555 = vsel %vm2542, %v2554, %v2528
  %v2556 = vsel %vm2544, %v2555, %v2530
  %v2557 = vsel %vm2546, %v2556, %v2532
  %v2558 = vsel %vm2548, %v2557, %v2534
  %v2559 = vsel %vm2550, %v2558, %v2536
  %v2560 = vsel %vm2552, %v2559, %v2538
  %v2561 = vrot.slane %v511, 3
  %v2563 = vrot.slane %v512, 2
  %v2565 = vrot.slane %v516, 1
  %v2567 = vrot.slane %v8, 6
  %v2569 = vrot.slane %v517, 7
  %v2571 = vrot.slane %v521, 6
  %v2573 = vrot.slane %v522, 5
  %v2575 = vrot.slane %v8, 3
  %v2578 = vrot.slane %v1671, 2
  %v2581 = vrot.slane %v1676, 1
  %v2584 = vrot.slane %v1703, 5
  %v2587 = vrot.slane %v1679, 6
  %v2590 = vrot.slane %v1682, 5
  %v2593 = vrot.slane %v1718, 2
  %v2595 = vsel %vm2540, %v2561, %v2563
  %v2596 = vsel %vm2542, %v2595, %v2565
  %v2597 = vsel %vm2544, %v2596, %v2567
  %v2598 = vsel %vm2546, %v2597, %v2569
  %v2599 = vsel %vm2548, %v2598, %v2571
  %v2600 = vsel %vm2550, %v2599, %v2573
  %v2601 = vsel %vm2552, %v2600, %v2575
  %v2602 = vsel %vm2540, %v2499, %v2578
  %v2603 = vsel %vm2542, %v2602, %v2581
  %v2604 = vsel %vm2544, %v2603, %v2584
  %v2605 = vsel %vm2546, %v2604, %v2511
  %v2606 = vsel %vm2548, %v2605, %v2587
  %v2607 = vsel %vm2550, %v2606, %v2590
  %v2608 = vsel %vm2552, %v2607, %v2593
  %v2610 = vrot.slane %v1685, 2
  %v2613 = vrot.slane %v1688, 1
  %v2616 = vrot.slane %v1733, 7
  %v2619 = vrot.slane %v1744, 7
  %v2621 = vrot.slane %v1671, 6
  %v2624 = vrot.slane %v1755, 5
  %v2626 = vrot.slane %v1703, 1
  %v2629 = vrot.slane %v1760, 3
  %v2631 = vrot.slane %v1679, 2
  %v2634 = vrot.slane %v1765, 1
  %v2636 = vrot.slane %v1718, 6
  %v2639 = vrot.slane %v1770, 7
  %v2641 = vrot.slane %v1685, 6
  %v2644 = vrot.slane %v1775, 5
  %v2646 = vrot.slane %v1733, 3
  %v2648 = vsel %vm2540, %v2522, %v2610
  %v2649 = vsel %vm2542, %v2648, %v2613
  %v2650 = vsel %vm2544, %v2649, %v2616
  %v2651 = vsel %vm2546, %v2650, %v2619
  %v2652 = vsel %vm2548, %v2651, %v2621
  %v2653 = vsel %vm2550, %v2652, %v2624
  %v2654 = vsel %vm2552, %v2653, %v2626
  %v2655 = vsel %vm2540, %v2629, %v2631
  %v2656 = vsel %vm2542, %v2655, %v2634
  %v2657 = vsel %vm2544, %v2656, %v2636
  %v2658 = vsel %vm2546, %v2657, %v2639
  %v2659 = vsel %vm2548, %v2658, %v2641
  %v2660 = vsel %vm2550, %v2659, %v2644
  %v2661 = vsel %vm2552, %v2660, %v2646
  %v2663 = vrot.slane %v1788, 3
  %v2666 = vrot.slane %v1801, 2
  %v2668 = vrot.slane %v1755, 1
  %v2671 = vrot.slane %v1845, 5
  %v2674 = vrot.slane %v1806, 7
  %v2677 = vrot.slane %v1811, 6
  %v2679 = vrot.slane %v1765, 5
  %v2682 = vrot.slane %v1860, 2
  %v2685 = vrot.slane %v1816, 3
  %v2688 = vrot.slane %v1821, 2
  %v2690 = vrot.slane %v1775, 1
  %v2693 = vrot.slane %v1875, 7
  %v2696 = vrot.slane %v1885, 7
  %v2699 = vrot.slane %v1898, 6
  %v2702 = vrot.slane %v1911, 5
  %v2705 = vrot.slane %v1963, 1
  %v2707 = vsel %vm2540, %v2663, %v2666
  %v2708 = vsel %vm2542, %v2707, %v2668
  %v2709 = vsel %vm2544, %v2708, %v2671
  %v2710 = vsel %vm2546, %v2709, %v2674
  %v2711 = vsel %vm2548, %v2710, %v2677
  %v2712 = vsel %vm2550, %v2711, %v2679
  %v2713 = vsel %vm2552, %v2712, %v2682
  %v2714 = vsel %vm2540, %v2685, %v2688
  %v2715 = vsel %vm2542, %v2714, %v2690
  %v2716 = vsel %vm2544, %v2715, %v2693
  %v2717 = vsel %vm2546, %v2716, %v2696
  %v2718 = vsel %vm2548, %v2717, %v2699
  %v2719 = vsel %vm2550, %v2718, %v2702
  %v2720 = vsel %vm2552, %v2719, %v2705
  %v2722 = vrot.slane %v1915, 3
  %v2725 = vrot.slane %v1920, 2
  %v2728 = vrot.slane %v1925, 1
  %v2731 = vrot.slane %v1978, 6
  %v2734 = vrot.slane %v1929, 7
  %v2737 = vrot.slane %v1934, 6
  %v2740 = vrot.slane %v1939, 5
  %v2743 = vrot.slane %v1993, 3
  %v2746 = vrot.slane %v2007, 3
  %v2749 = vrot.slane %v2021, 2
  %v2752 = vrot.slane %v2035, 1
  %v2755 = vrot.slane %v2089, 5
  %v2758 = vrot.slane %v2040, 7
  %v2761 = vrot.slane %v2045, 6
  %v2764 = vrot.slane %v2050, 5
  %v2767 = vrot.slane %v2104, 2
  %v2769 = vsel %vm2540, %v2722, %v2725
  %v2770 = vsel %vm2542, %v2769, %v2728
  %v2771 = vsel %vm2544, %v2770, %v2731
  %v2772 = vsel %vm2546, %v2771, %v2734
  %v2773 = vsel %vm2548, %v2772, %v2737
  %v2774 = vsel %vm2550, %v2773, %v2740
  %v2775 = vsel %vm2552, %v2774, %v2743
  %v2776 = vsel %vm2540, %v2746, %v2749
  %v2777 = vsel %vm2542, %v2776, %v2752
  %v2778 = vsel %vm2544, %v2777, %v2755
  %v2779 = vsel %vm2546, %v2778, %v2758
  %v2780 = vsel %vm2548, %v2779, %v2761
  %v2781 = vsel %vm2550, %v2780, %v2764
  %v2782 = vsel %vm2552, %v2781, %v2767
  %v2784 = vrot.slane %v2055, 3
  %v2787 = vrot.slane %v2060, 2
  %v2790 = vrot.slane %v2065, 1
  %v2793 = vrot.slane %v2119, 7
  %v2796 = vrot.slane %v2133, 7
  %v2799 = vrot.slane %v2147, 6
  %v2802 = vrot.slane %v2161, 5
  %v2805 = vrot.slane %v2215, 1
  %v2808 = vrot.slane %v2166, 3
  %v2811 = vrot.slane %v2171, 2
  %v2814 = vrot.slane %v2176, 1
  %v2817 = vrot.slane %v2230, 6
  %v2820 = vrot.slane %v2181, 7
  %v2823 = vrot.slane %v2186, 6
  %v2826 = vrot.slane %v2191, 5
  %v2829 = vrot.slane %v2245, 3
  %v2831 = vsel %vm2540, %v2784, %v2787
  %v2832 = vsel %vm2542, %v2831, %v2790
  %v2833 = vsel %vm2544, %v2832, %v2793
  %v2834 = vsel %vm2546, %v2833, %v2796
  %v2835 = vsel %vm2548, %v2834, %v2799
  %v2836 = vsel %vm2550, %v2835, %v2802
  %v2837 = vsel %vm2552, %v2836, %v2805
  %v2838 = vsel %vm2540, %v2808, %v2811
  %v2839 = vsel %vm2542, %v2838, %v2814
  %v2840 = vsel %vm2544, %v2839, %v2817
  %v2841 = vsel %vm2546, %v2840, %v2820
  %v2842 = vsel %vm2548, %v2841, %v2823
  %v2843 = vsel %vm2550, %v2842, %v2826
  %v2844 = vsel %vm2552, %v2843, %v2829
  %v2846 = vrot.slane %v2259, 3
  %v2849 = vrot.slane %v2273, 2
  %v2852 = vrot.slane %v2287, 1
  %v2855 = vrot.slane %v2341, 5
  %v2858 = vrot.slane %v2292, 7
  %v2861 = vrot.slane %v2297, 6
  %v2864 = vrot.slane %v2302, 5
  %v2867 = vrot.slane %v2356, 2
  %v2870 = vrot.slane %v2307, 3
  %v2873 = vrot.slane %v2312, 2
  %v2876 = vrot.slane %v2317, 1
  %v2879 = vrot.slane %v2371, 7
  %v2882 = vrot.slane %v2385, 7
  %v2885 = vrot.slane %v2399, 6
  %v2888 = vrot.slane %v2413, 5
  %v2891 = vrot.slane %v2467, 1
  %v2893 = vsel %vm2540, %v2846, %v2849
  %v2894 = vsel %vm2542, %v2893, %v2852
  %v2895 = vsel %vm2544, %v2894, %v2855
  %v2896 = vsel %vm2546, %v2895, %v2858
  %v2897 = vsel %vm2548, %v2896, %v2861
  %v2898 = vsel %vm2550, %v2897, %v2864
  %v2899 = vsel %vm2552, %v2898, %v2867
  %v2900 = vsel %vm2540, %v2870, %v2873
  %v2901 = vsel %vm2542, %v2900, %v2876
  %v2902 = vsel %vm2544, %v2901, %v2879
  %v2903 = vsel %vm2546, %v2902, %v2882
  %v2904 = vsel %vm2548, %v2903, %v2885
  %v2905 = vsel %vm2550, %v2904, %v2888
  %v2906 = vsel %vm2552, %v2905, %v2891
  %v2908 = vrot.slane %v2418, 3
  %v2911 = vrot.slane %v2423, 2
  %v2914 = vrot.slane %v2428, 1
  %v2917 = vrot.slane %v2482, 6
  %v2920 = vrot.slane %v2433, 7
  %v2923 = vrot.slane %v2438, 6
  %v2926 = vrot.slane %v2443, 5
  %v2929 = vrot.slane %v2497, 3
  %v2931 = vsel %vm2540, %v2908, %v2911
  %v2932 = vsel %vm2542, %v2931, %v2914
  %v2933 = vsel %vm2544, %v2932, %v2917
  %v2934 = vsel %vm2546, %v2933, %v2920
  %v2935 = vsel %vm2548, %v2934, %v2923
  %v2936 = vsel %vm2550, %v2935, %v2926
  %v2937 = vsel %vm2552, %v2936, %v2929
  %2938 = vst [vmem:[%s1] sm:$0xff] %v2553
  %2939 = vst [vmem:[%s1 + $0x8] sm:$0xff] %v2560
  %2940 = vst [vmem:[%s1 + $0x10] sm:$0xff] %v2601
  %2941 = vst [vmem:[%s1 + $0x18] sm:$0xff] %v2608
  %2942 = vst [vmem:[%s1 + $0x20] sm:$0xff] %v2654
  %2943 = vst [vmem:[%s1 + $0x28] sm:$0xff] %v2661
  %2944 = vst [vmem:[%s1 + $0x30] sm:$0xff] %v2713
  %2945 = vst [vmem:[%s1 + $0x38] sm:$0xff] %v2720
  %2946 = vst [vmem:[%s1 + $0x40] sm:$0xff] %v2775
  %2947 = vst [vmem:[%s1 + $0x48] sm:$0xff] %v2782
  %2948 = vst [vmem:[%s1 + $0x50] sm:$0xff] %v2837
  %2949 = vst [vmem:[%s1 + $0x58] sm:$0xff] %v2844
  %2950 = vst [vmem:[%s1 + $0x60] sm:$0xff] %v2899
  %2951 = vst [vmem:[%s1 + $0x68] sm:$0xff] %v2906
  %2952 = vst [vmem:[%s1 + $0x70] sm:$0xff] %v2937
  // Predicated region
  $region6: #{forward.1} parent=0 // pred_check
    _
  $region7: #{forward.1} parent=0 // pred_check_branch
    %2954 = sbr.rel (0) target = $region9
  $region8: #{forward.1} parent=0 // pred_region
    _
  $region9: #{forward.1} parent=0 // pred_fallthru
    _
  // Predicated region
  $region10: #{forward.1} parent=0 // pred_check
    _
  $region11: #{forward.1} parent=0 // pred_check_branch
    %2956 = sbr.rel (0) target = $region13
  $region12: #{forward.1} parent=0 // pred_region
    _
  $region13: #{forward.1} parent=0 // pred_fallthru
    _

</llo_original>
